<compile_context>
chip_gen: v5e
topology: v5e:2x2
jax: 0.10.0
libtpu: 0.0.40
codegen_flags: <defaults>
</compile_context>

<pallas_src>
import jax
import jax.numpy as jnp
from jax.experimental import pallas as pl
from jax.experimental.pallas import tpu as pltpu

# ---- hyper-parameters (SuperModel(input_channel=96, hidden_channel=16,
# ----                   linear_transform=32, output_channel=8, classes=...)) ----
C_IN = 96            # input_channel
C1 = 8               # output_channel          (conv1 out channels)
C2 = 16              # output_channel * 2      (conv2 out channels) == LSTM "batch"
HID = 16             # hidden_channel          (LSTM hidden size)
LIN = 32             # linear_transform
NUM_LAYERS = 3       # LSTM layers
L = 1400             # sequence length: 1400/2/2 == 350 == LSTM input size (hardcoded in RNN1)
LQ = L // 4          # 350
N = 2                # batch size
NUM_CLASSES = 3      # number of RNN1 classifiers inside SuperModel

PARAM_ORDER = ["c1w", "c1b", "c2w", "c2b",
               "wih0", "whh0", "b0",
               "wih1", "whh1", "b1",
               "wih2", "whh2", "b2",
               "l1w", "l1b", "l2w", "l2b"]
BF16_PARAMS = ("c1w", "c2w", "wih0")   # feed the MXU bf16 for the big matmuls


def _sigmoid(v):
    # 0.5*(tanh(0.5 v)+1): stays on the EUP slot (no VALU divide per gate).
    return 0.5 * (jnp.tanh(0.5 * v) + 1.0)


def _lstm_cell(gates, c_prev, H):
    # PyTorch gate order: i, f, g, o
    i = _sigmoid(gates[:, 0 * H:1 * H])
    f = _sigmoid(gates[:, 1 * H:2 * H])
    g = jnp.tanh(gates[:, 2 * H:3 * H])
    o = _sigmoid(gates[:, 3 * H:4 * H])
    c_new = f * c_prev + i * g
    h_new = o * jnp.tanh(c_new)
    return h_new, c_new


def _shift_right(y):
    # y[:, i] -> y[:, i-1], zero shifted in at column 0
    z = jnp.zeros((y.shape[0], 1), y.dtype)
    return jnp.concatenate([z, y[:, :-1]], axis=1)


def _shift_left(y):
    # y[:, i] -> y[:, i+1], zero shifted in at the last column
    z = jnp.zeros((y.shape[0], 1), y.dtype)
    return jnp.concatenate([y[:, 1:], z], axis=1)


def rnn1_kernel(x_ref,
                c1w_ref, c1b_ref, c2w_ref, c2b_ref,
                wih0_ref, whh0_ref, b0_ref,
                wih1_ref, whh1_ref, b1_ref,
                wih2_ref, whh2_ref, b2_ref,
                l1w_ref, l1b_ref, l2w_ref, l2b_ref,
                logits_ref, hn_ref, cn_ref):
    # x_ref: (N, 4, C_IN, LQ+1) bf16 -- 4-phase de-interleaved, length-on-lanes.
    #        phase r, column i  ==  x_padded[:, 4*i + r]   (conv pad of 1 on the left).
    f32 = jnp.float32
    bf16 = jnp.bfloat16
    H = HID
    n_batch = x_ref.shape[0]
    Lq = x_ref.shape[3] - 1                     # 350

    c1w = c1w_ref[0]        # (3*C1, C_IN) bf16   rows [k*C1:(k+1)*C1] == conv1 tap k
    c1b = c1b_ref[0]        # (C1, 1)       f32
    c2w = c2w_ref[0]        # (3*C2, C1)   bf16   rows [k*C2:(k+1)*C2] == conv2 tap k
    c2b = c2b_ref[0]        # (C2, 1)       f32
    wih0 = wih0_ref[0]      # (LQ, 4H)     bf16   (W_ih_l0 transposed)
    whh0 = whh0_ref[0]      # (H, 4H)       f32   (W_hh_l0 transposed)
    b0 = b0_ref[0]          # (1, 4H)       f32   (b_ih + b_hh)
    wih1, whh1, b1 = wih1_ref[0], whh1_ref[0], b1_ref[0]
    wih2, whh2, b2 = wih2_ref[0], whh2_ref[0], b2_ref[0]
    l1w = l1w_ref[0]        # (H, LIN)
    l1b = l1b_ref[0]        # (1, LIN)
    l2w = l2w_ref[0]        # (1, LIN)
    l2b = l2b_ref[0]        # (1, 1)

    # ---------------- conv stack (per original batch element) ----------------
    lstm_inputs = []
    for n in range(n_batch):                    # N is small and static -> unrolled
        # Z[r][k*C1:(k+1)*C1, i] == conv1 tap k applied at padded-input position 4*i + r
        Z = [jnp.dot(c1w, x_ref[n, r], preferred_element_type=f32) for r in range(4)]

        def tap(r, k, off):
            return Z[r][k * C1:(k + 1) * C1, off:off + Lq]

        # conv1 outputs at positions 4i, 4i+1, 4i+2, 4i+3  (all contiguous slices)
        out0 = c1b + tap(0, 0, 0) + tap(1, 1, 0) + tap(2, 2, 0)
        out1 = c1b + tap(1, 0, 0) + tap(2, 1, 0) + tap(3, 2, 0)
        out2 = c1b + tap(2, 0, 0) + tap(3, 1, 0) + tap(0, 2, 1)
        out3 = c1b + tap(3, 0, 0) + tap(0, 1, 1) + tap(1, 2, 1)

        # ReLU + MaxPool1d(2): pooled1 kept split into even/odd columns
        p1e = jnp.maximum(jnp.maximum(out0, 0.0), jnp.maximum(out1, 0.0))   # (C1, Lq)
        p1o = jnp.maximum(jnp.maximum(out2, 0.0), jnp.maximum(out3, 0.0))   # (C1, Lq)

        # conv2 (k=3, pad=1) + ReLU + MaxPool1d(2), same shift trick (no scratch buffer)
        ge = jnp.dot(c2w, p1e.astype(bf16), preferred_element_type=f32)     # (3*C2, Lq)
        go = jnp.dot(c2w, p1o.astype(bf16), preferred_element_type=f32)     # (3*C2, Lq)

        c2_even = (c2b + _shift_right(go[0:C2])
                   + ge[C2:2 * C2] + go[2 * C2:3 * C2])                     # conv2 @ 2i
        c2_odd = (c2b + ge[0:C2] + go[C2:2 * C2]
                  + _shift_left(ge[2 * C2:3 * C2]))                         # conv2 @ 2i+1
        pooled2 = jnp.maximum(jnp.maximum(c2_even, 0.0),
                              jnp.maximum(c2_odd, 0.0))                     # (C2, Lq)
        lstm_inputs.append(pooled2)

    # ---------------- 3-layer LSTM ----------------
    # Torch quirk reproduced: conv output (N, C2, Lq) feeds an LSTM with batch_first=False,
    # so the time axis == original batch N and the LSTM batch == C2.
    B = C2
    h = [jnp.zeros((B, H), f32) for _ in range(NUM_LAYERS)]
    c = [jnp.zeros((B, H), f32) for _ in range(NUM_LAYERS)]
    upper = [(wih1, whh1, b1), (wih2, whh2, b2)]
    feats = []
    for t in range(n_batch):
        x_t = lstm_inputs[t]                                       # (C2, Lq), K on lanes
        gates = (jnp.dot(x_t.astype(bf16), wih0, preferred_element_type=f32)
                 + jnp.dot(h[0], whh0, preferred_element_type=f32) + b0)
        h[0], c[0] = _lstm_cell(gates, c[0], H)
        inp = h[0]
        for li, (wih, whh, bl) in enumerate(upper, start=1):
            gates = (jnp.dot(inp, wih, preferred_element_type=f32)
                     + jnp.dot(h[li], whh, preferred_element_type=f32) + bl)
            h[li], c[li] = _lstm_cell(gates, c[li], H)
            inp = h[li]
        # x[:, -1] in the torch code: last "batch" row of the top-layer output
        feats.append(h[NUM_LAYERS - 1][B - 1:B, :])                # (1, H)

    # ---------------- classifier head ----------------
    feat = jnp.concatenate(feats, axis=0)                          # (N, H)
    z = jnp.maximum(jnp.dot(feat, l1w, preferred_element_type=f32) + l1b, 0.0)
    logits = jnp.sum(z * l2w, axis=1, keepdims=True) + l2b          # (N, 1)

    logits_ref[0] = logits
    for li in range(NUM_LAYERS):
        hn_ref[0, li] = h[li]
        cn_ref[0, li] = c[li]


def _param_shapes(T):
    # Kernel-ready layouts (mapping from torch):
    #   c1w[t, k*C1:(k+1)*C1, :] = conv1.weight[:, :, k]          (C1, C_IN)
    #   c2w[t, k*C2:(k+1)*C2, :] = conv2.weight[:, :, k]          (C2, C1)
    #   wih*/whh* are transposed torch weights;  b* = b_ih + b_hh (combined LSTM bias)
    #   l1w/l2w are transposed torch Linear weights.
    return {
        "c1w": (T, 3 * C1, C_IN), "c1b": (T, C1, 1),
        "c2w": (T, 3 * C2, C1),   "c2b": (T, C2, 1),
        "wih0": (T, LQ, 4 * HID), "whh0": (T, HID, 4 * HID), "b0": (T, 1, 4 * HID),
        "wih1": (T, HID, 4 * HID), "whh1": (T, HID, 4 * HID), "b1": (T, 1, 4 * HID),
        "wih2": (T, HID, 4 * HID), "whh2": (T, HID, 4 * HID), "b2": (T, 1, 4 * HID),
        "l1w": (T, HID, LIN), "l1b": (T, 1, LIN),
        "l2w": (T, 1, LIN),   "l2b": (T, 1, 1),
    }


def init_params(key, num_classes):
    """Deterministic synthetic parameters, stacked over classifiers (leading dim T)."""
    shapes = _param_shapes(num_classes)
    keys = jax.random.split(key, len(PARAM_ORDER))
    return {name: 0.1 * jax.random.normal(k, shapes[name], jnp.float32)
            for name, k in zip(PARAM_ORDER, keys)}


@jax.jit
def super_model_forward(x, params):
    """x: (N, C_IN, L) float32 in PyTorch NCW layout."""
    n, c_in, length = x.shape
    lq = length // 4
    T = params["c1w"].shape[0]

    # Layout glue (outside the kernel): pad the length axis (1 left for conv pad=1,
    # 3 right to round up to a multiple of 4) and de-interleave into 4 phases so every
    # in-kernel access is a contiguous, lane-dense slice.
    #   phases[n, r, c, i] = x_pad[n, c, 4*i + r]
    xp = jnp.pad(x, ((0, 0), (0, 0), (1, 3)))
    phases = jnp.transpose(xp.reshape(n, c_in, lq + 1, 4), (0, 3, 1, 2))
    phases = phases.astype(jnp.bfloat16)

    p = {k: (params[k].astype(jnp.bfloat16) if k in BF16_PARAMS else params[k])
         for k in PARAM_ORDER}

    def pspec(arr):
        nd = arr.ndim
        return pl.BlockSpec((1,) + arr.shape[1:],
                            lambda t, _nd=nd: (t,) + (0,) * (_nd - 1))

    in_specs = [pl.BlockSpec(phases.shape, lambda t: (0, 0, 0, 0))]
    in_specs += [pspec(p[k]) for k in PARAM_ORDER]

    out_shapes = (
        jax.ShapeDtypeStruct((T, n, 1), jnp.float32),
        jax.ShapeDtypeStruct((T, NUM_LAYERS, C2, HID), jnp.float32),
        jax.ShapeDtypeStruct((T, NUM_LAYERS, C2, HID), jnp.float32),
    )
    out_specs = (
        pl.BlockSpec((1, n, 1), lambda t: (t, 0, 0)),
        pl.BlockSpec((1, NUM_LAYERS, C2, HID), lambda t: (t, 0, 0, 0)),
        pl.BlockSpec((1, NUM_LAYERS, C2, HID), lambda t: (t, 0, 0, 0)),
    )

    logits, h_n, c_n = pl.pallas_call(
        rnn1_kernel,
        out_shape=out_shapes,
        grid_spec=pltpu.PrefetchScalarGridSpec(
            num_scalar_prefetch=0,
            grid=(T,),                               # one step per RNN1 classifier
            in_specs=in_specs,
            out_specs=out_specs,
        ),
        compiler_params=pltpu.CompilerParams(
            dimension_semantics=("parallel",)),      # classifiers are independent
    )(phases, *[p[k] for k in PARAM_ORDER])
    return logits, h_n, c_n


if __name__ == "__main__":
    key = jax.random.PRNGKey(0)
    kx, kp = jax.random.split(key)
    x = jax.random.normal(kx, (N, C_IN, L), jnp.float32)
    params = init_params(kp, NUM_CLASSES)

    logits, h_n, c_n = super_model_forward(x, params)
    jax.block_until_ready((logits, h_n, c_n))

    # SuperModel.forward returns a list of (logits, (h_n, c_n)) per classifier.
    results = [(logits[t], (h_n[t], c_n[t])) for t in range(NUM_CLASSES)]

    assert logits.shape == (NUM_CLASSES, N, 1)
    assert h_n.shape == (NUM_CLASSES, NUM_LAYERS, C2, HID)
    assert c_n.shape == (NUM_CLASSES, NUM_LAYERS, C2, HID)
    assert len(results) == NUM_CLASSES
    assert bool(jnp.all(jnp.isfinite(logits)))
    print("KERNEL_OK")
</pallas_src>

<mosaic_0001>
module attributes {stable_mosaic.version = 11 : i64} {
  func.func @rnn1_kernel(%arg0: i32, %arg1: memref<2x4x96x351xbf16, #tpu.memory_space<vmem>>, %arg2: memref<1x24x96xbf16, #tpu.memory_space<vmem>>, %arg3: memref<1x8x1xf32, #tpu.memory_space<vmem>>, %arg4: memref<1x48x8xbf16, #tpu.memory_space<vmem>>, %arg5: memref<1x16x1xf32, #tpu.memory_space<vmem>>, %arg6: memref<1x350x64xbf16, #tpu.memory_space<vmem>>, %arg7: memref<1x16x64xf32, #tpu.memory_space<vmem>>, %arg8: memref<1x1x64xf32, #tpu.memory_space<vmem>>, %arg9: memref<1x16x64xf32, #tpu.memory_space<vmem>>, %arg10: memref<1x16x64xf32, #tpu.memory_space<vmem>>, %arg11: memref<1x1x64xf32, #tpu.memory_space<vmem>>, %arg12: memref<1x16x64xf32, #tpu.memory_space<vmem>>, %arg13: memref<1x16x64xf32, #tpu.memory_space<vmem>>, %arg14: memref<1x1x64xf32, #tpu.memory_space<vmem>>, %arg15: memref<1x16x32xf32, #tpu.memory_space<vmem>>, %arg16: memref<1x1x32xf32, #tpu.memory_space<vmem>>, %arg17: memref<1x1x32xf32, #tpu.memory_space<vmem>>, %arg18: memref<1x1x1xf32, #tpu.memory_space<vmem>>, %arg19: memref<1x2x1xf32, #tpu.memory_space<vmem>>, %arg20: memref<1x3x16x16xf32, #tpu.memory_space<vmem>>, %arg21: memref<1x3x16x16xf32, #tpu.memory_space<vmem>>) attributes {dimension_semantics = [#tpu.dimension_semantics<parallel>], iteration_bounds = array<i64: 3>, scalar_prefetch = 0 : i64, scratch_operands = 0 : i64, tpu.core_type = #tpu.core_type<tc>, window_params = [{pipeline_mode = #tpu.pipeline_mode<synchronous>, transform_indices = @transform_0, window_bounds = array<i64: 2, 4, 96, 351>}, {transform_indices = @transform_1, window_bounds = array<i64: 1, 24, 96>}, {transform_indices = @transform_2, window_bounds = array<i64: 1, 8, 1>}, {transform_indices = @transform_3, window_bounds = array<i64: 1, 48, 8>}, {transform_indices = @transform_4, window_bounds = array<i64: 1, 16, 1>}, {transform_indices = @transform_5, window_bounds = array<i64: 1, 350, 64>}, {transform_indices = @transform_6, window_bounds = array<i64: 1, 16, 64>}, {transform_indices = @transform_7, window_bounds = array<i64: 1, 1, 64>}, {transform_indices = @transform_8, window_bounds = array<i64: 1, 16, 64>}, {transform_indices = @transform_9, window_bounds = array<i64: 1, 16, 64>}, {transform_indices = @transform_10, window_bounds = array<i64: 1, 1, 64>}, {transform_indices = @transform_11, window_bounds = array<i64: 1, 16, 64>}, {transform_indices = @transform_12, window_bounds = array<i64: 1, 16, 64>}, {transform_indices = @transform_13, window_bounds = array<i64: 1, 1, 64>}, {transform_indices = @transform_14, window_bounds = array<i64: 1, 16, 32>}, {transform_indices = @transform_15, window_bounds = array<i64: 1, 1, 32>}, {transform_indices = @transform_16, window_bounds = array<i64: 1, 1, 32>}, {transform_indices = @transform_17, window_bounds = array<i64: 1, 1, 1>}, {transform_indices = @transform_18, window_bounds = array<i64: 1, 2, 1>}, {transform_indices = @transform_19, window_bounds = array<i64: 1, 3, 16, 16>}, {transform_indices = @transform_20, window_bounds = array<i64: 1, 3, 16, 16>}]} {
    %c0 = arith.constant 0 : index
    %c0_0 = arith.constant 0 : index
    %c0_1 = arith.constant 0 : index
    %0 = vector.load %arg2[%c0, %c0_0, %c0_1] : memref<1x24x96xbf16, #tpu.memory_space<vmem>>, vector<1x24x96xbf16>
    %1 = vector.shape_cast %0 : vector<1x24x96xbf16> to vector<24x96xbf16>
    %c0_2 = arith.constant 0 : index
    %c0_3 = arith.constant 0 : index
    %c0_4 = arith.constant 0 : index
    %2 = vector.load %arg3[%c0_2, %c0_3, %c0_4] : memref<1x8x1xf32, #tpu.memory_space<vmem>>, vector<1x8x1xf32>
    %3 = vector.shape_cast %2 : vector<1x8x1xf32> to vector<8x1xf32>
    %c0_5 = arith.constant 0 : index
    %c0_6 = arith.constant 0 : index
    %c0_7 = arith.constant 0 : index
    %4 = vector.load %arg4[%c0_5, %c0_6, %c0_7] : memref<1x48x8xbf16, #tpu.memory_space<vmem>>, vector<1x48x8xbf16>
    %5 = vector.shape_cast %4 : vector<1x48x8xbf16> to vector<48x8xbf16>
    %c0_8 = arith.constant 0 : index
    %c0_9 = arith.constant 0 : index
    %c0_10 = arith.constant 0 : index
    %6 = vector.load %arg5[%c0_8, %c0_9, %c0_10] : memref<1x16x1xf32, #tpu.memory_space<vmem>>, vector<1x16x1xf32>
    %7 = vector.shape_cast %6 : vector<1x16x1xf32> to vector<16x1xf32>
    %c0_11 = arith.constant 0 : index
    %c0_12 = arith.constant 0 : index
    %c0_13 = arith.constant 0 : index
    %8 = vector.load %arg6[%c0_11, %c0_12, %c0_13] : memref<1x350x64xbf16, #tpu.memory_space<vmem>>, vector<1x350x64xbf16>
    %9 = vector.shape_cast %8 : vector<1x350x64xbf16> to vector<350x64xbf16>
    %c0_14 = arith.constant 0 : index
    %c0_15 = arith.constant 0 : index
    %c0_16 = arith.constant 0 : index
    %10 = vector.load %arg7[%c0_14, %c0_15, %c0_16] : memref<1x16x64xf32, #tpu.memory_space<vmem>>, vector<1x16x64xf32>
    %11 = vector.shape_cast %10 : vector<1x16x64xf32> to vector<16x64xf32>
    %c0_17 = arith.constant 0 : index
    %c0_18 = arith.constant 0 : index
    %c0_19 = arith.constant 0 : index
    %12 = vector.load %arg8[%c0_17, %c0_18, %c0_19] : memref<1x1x64xf32, #tpu.memory_space<vmem>>, vector<1x1x64xf32>
    %13 = vector.shape_cast %12 : vector<1x1x64xf32> to vector<1x64xf32>
    %c0_20 = arith.constant 0 : index
    %c0_21 = arith.constant 0 : index
    %c0_22 = arith.constant 0 : index
    %14 = vector.load %arg9[%c0_20, %c0_21, %c0_22] : memref<1x16x64xf32, #tpu.memory_space<vmem>>, vector<1x16x64xf32>
    %15 = vector.shape_cast %14 : vector<1x16x64xf32> to vector<16x64xf32>
    %c0_23 = arith.constant 0 : index
    %c0_24 = arith.constant 0 : index
    %c0_25 = arith.constant 0 : index
    %16 = vector.load %arg10[%c0_23, %c0_24, %c0_25] : memref<1x16x64xf32, #tpu.memory_space<vmem>>, vector<1x16x64xf32>
    %17 = vector.shape_cast %16 : vector<1x16x64xf32> to vector<16x64xf32>
    %c0_26 = arith.constant 0 : index
    %c0_27 = arith.constant 0 : index
    %c0_28 = arith.constant 0 : index
    %18 = vector.load %arg11[%c0_26, %c0_27, %c0_28] : memref<1x1x64xf32, #tpu.memory_space<vmem>>, vector<1x1x64xf32>
    %19 = vector.shape_cast %18 : vector<1x1x64xf32> to vector<1x64xf32>
    %c0_29 = arith.constant 0 : index
    %c0_30 = arith.constant 0 : index
    %c0_31 = arith.constant 0 : index
    %20 = vector.load %arg12[%c0_29, %c0_30, %c0_31] : memref<1x16x64xf32, #tpu.memory_space<vmem>>, vector<1x16x64xf32>
    %21 = vector.shape_cast %20 : vector<1x16x64xf32> to vector<16x64xf32>
    %c0_32 = arith.constant 0 : index
    %c0_33 = arith.constant 0 : index
    %c0_34 = arith.constant 0 : index
    %22 = vector.load %arg13[%c0_32, %c0_33, %c0_34] : memref<1x16x64xf32, #tpu.memory_space<vmem>>, vector<1x16x64xf32>
    %23 = vector.shape_cast %22 : vector<1x16x64xf32> to vector<16x64xf32>
    %c0_35 = arith.constant 0 : index
    %c0_36 = arith.constant 0 : index
    %c0_37 = arith.constant 0 : index
    %24 = vector.load %arg14[%c0_35, %c0_36, %c0_37] : memref<1x1x64xf32, #tpu.memory_space<vmem>>, vector<1x1x64xf32>
    %25 = vector.shape_cast %24 : vector<1x1x64xf32> to vector<1x64xf32>
    %c0_38 = arith.constant 0 : index
    %c0_39 = arith.constant 0 : index
    %c0_40 = arith.constant 0 : index
    %26 = vector.load %arg15[%c0_38, %c0_39, %c0_40] : memref<1x16x32xf32, #tpu.memory_space<vmem>>, vector<1x16x32xf32>
    %27 = vector.shape_cast %26 : vector<1x16x32xf32> to vector<16x32xf32>
    %c0_41 = arith.constant 0 : index
    %c0_42 = arith.constant 0 : index
    %c0_43 = arith.constant 0 : index
    %28 = vector.load %arg16[%c0_41, %c0_42, %c0_43] : memref<1x1x32xf32, #tpu.memory_space<vmem>>, vector<1x1x32xf32>
    %29 = vector.shape_cast %28 : vector<1x1x32xf32> to vector<1x32xf32>
    %c0_44 = arith.constant 0 : index
    %c0_45 = arith.constant 0 : index
    %c0_46 = arith.constant 0 : index
    %30 = vector.load %arg17[%c0_44, %c0_45, %c0_46] : memref<1x1x32xf32, #tpu.memory_space<vmem>>, vector<1x1x32xf32>
    %31 = vector.shape_cast %30 : vector<1x1x32xf32> to vector<1x32xf32>
    %c0_47 = arith.constant 0 : index
    %c0_48 = arith.constant 0 : index
    %c0_49 = arith.constant 0 : index
    %32 = vector.load %arg18[%c0_47, %c0_48, %c0_49] : memref<1x1x1xf32, #tpu.memory_space<vmem>>, vector<1x1x1xf32>
    %33 = vector.shape_cast %32 : vector<1x1x1xf32> to vector<1x1xf32>
    %c0_50 = arith.constant 0 : index
    %c0_51 = arith.constant 0 : index
    %c0_52 = arith.constant 0 : index
    %c0_53 = arith.constant 0 : index
    %34 = vector.load %arg1[%c0_50, %c0_51, %c0_52, %c0_53] : memref<2x4x96x351xbf16, #tpu.memory_space<vmem>>, vector<1x1x96x351xbf16>
    %35 = vector.shape_cast %34 : vector<1x1x96x351xbf16> to vector<96x351xbf16>
    %cst = arith.constant dense<0.000000e+00> : vector<24x351xf32>
    %36 = tpu.matmul %1, %35, %cst {dimension_numbers = #tpu.dot_dimension_numbers<[1], [0], [0], [1], [0, 0, 1, 1], [], []>} : vector<24x96xbf16>, vector<96x351xbf16>, vector<24x351xf32> -> vector<24x351xf32>
    %c0_54 = arith.constant 0 : index
    %c1 = arith.constant 1 : index
    %c0_55 = arith.constant 0 : index
    %c0_56 = arith.constant 0 : index
    %37 = vector.load %arg1[%c0_54, %c1, %c0_55, %c0_56] : memref<2x4x96x351xbf16, #tpu.memory_space<vmem>>, vector<1x1x96x351xbf16>
    %38 = vector.shape_cast %37 : vector<1x1x96x351xbf16> to vector<96x351xbf16>
    %cst_57 = arith.constant dense<0.000000e+00> : vector<24x351xf32>
    %39 = tpu.matmul %1, %38, %cst_57 {dimension_numbers = #tpu.dot_dimension_numbers<[1], [0], [0], [1], [0, 0, 1, 1], [], []>} : vector<24x96xbf16>, vector<96x351xbf16>, vector<24x351xf32> -> vector<24x351xf32>
    %c0_58 = arith.constant 0 : index
    %c2 = arith.constant 2 : index
    %c0_59 = arith.constant 0 : index
    %c0_60 = arith.constant 0 : index
    %40 = vector.load %arg1[%c0_58, %c2, %c0_59, %c0_60] : memref<2x4x96x351xbf16, #tpu.memory_space<vmem>>, vector<1x1x96x351xbf16>
    %41 = vector.shape_cast %40 : vector<1x1x96x351xbf16> to vector<96x351xbf16>
    %cst_61 = arith.constant dense<0.000000e+00> : vector<24x351xf32>
    %42 = tpu.matmul %1, %41, %cst_61 {dimension_numbers = #tpu.dot_dimension_numbers<[1], [0], [0], [1], [0, 0, 1, 1], [], []>} : vector<24x96xbf16>, vector<96x351xbf16>, vector<24x351xf32> -> vector<24x351xf32>
    %c0_62 = arith.constant 0 : index
    %c3 = arith.constant 3 : index
    %c0_63 = arith.constant 0 : index
    %c0_64 = arith.constant 0 : index
    %43 = vector.load %arg1[%c0_62, %c3, %c0_63, %c0_64] : memref<2x4x96x351xbf16, #tpu.memory_space<vmem>>, vector<1x1x96x351xbf16>
    %44 = vector.shape_cast %43 : vector<1x1x96x351xbf16> to vector<96x351xbf16>
    %cst_65 = arith.constant dense<0.000000e+00> : vector<24x351xf32>
    %45 = tpu.matmul %1, %44, %cst_65 {dimension_numbers = #tpu.dot_dimension_numbers<[1], [0], [0], [1], [0, 0, 1, 1], [], []>} : vector<24x96xbf16>, vector<96x351xbf16>, vector<24x351xf32> -> vector<24x351xf32>
    %46 = vector.extract_strided_slice %36 {offsets = [0, 0], sizes = [8, 350], strides = [1, 1]} : vector<24x351xf32> to vector<8x350xf32>
    %47 = vector.broadcast %3 : vector<8x1xf32> to vector<8x350xf32>
    %48 = arith.addf %47, %46 : vector<8x350xf32>
    %49 = vector.extract_strided_slice %39 {offsets = [8, 0], sizes = [8, 350], strides = [1, 1]} : vector<24x351xf32> to vector<8x350xf32>
    %50 = arith.addf %48, %49 : vector<8x350xf32>
    %51 = vector.extract_strided_slice %42 {offsets = [16, 0], sizes = [8, 350], strides = [1, 1]} : vector<24x351xf32> to vector<8x350xf32>
    %52 = arith.addf %50, %51 : vector<8x350xf32>
    %53 = vector.extract_strided_slice %39 {offsets = [0, 0], sizes = [8, 350], strides = [1, 1]} : vector<24x351xf32> to vector<8x350xf32>
    %54 = vector.broadcast %3 : vector<8x1xf32> to vector<8x350xf32>
    %55 = arith.addf %54, %53 : vector<8x350xf32>
    %56 = vector.extract_strided_slice %42 {offsets = [8, 0], sizes = [8, 350], strides = [1, 1]} : vector<24x351xf32> to vector<8x350xf32>
    %57 = arith.addf %55, %56 : vector<8x350xf32>
    %58 = vector.extract_strided_slice %45 {offsets = [16, 0], sizes = [8, 350], strides = [1, 1]} : vector<24x351xf32> to vector<8x350xf32>
    %59 = arith.addf %57, %58 : vector<8x350xf32>
    %60 = vector.extract_strided_slice %42 {offsets = [0, 0], sizes = [8, 350], strides = [1, 1]} : vector<24x351xf32> to vector<8x350xf32>
    %61 = vector.broadcast %3 : vector<8x1xf32> to vector<8x350xf32>
    %62 = arith.addf %61, %60 : vector<8x350xf32>
    %63 = vector.extract_strided_slice %45 {offsets = [8, 0], sizes = [8, 350], strides = [1, 1]} : vector<24x351xf32> to vector<8x350xf32>
    %64 = arith.addf %62, %63 : vector<8x350xf32>
    %65 = vector.extract_strided_slice %36 {offsets = [16, 1], sizes = [8, 350], strides = [1, 1]} : vector<24x351xf32> to vector<8x350xf32>
    %66 = arith.addf %64, %65 : vector<8x350xf32>
    %67 = vector.extract_strided_slice %45 {offsets = [0, 0], sizes = [8, 350], strides = [1, 1]} : vector<24x351xf32> to vector<8x350xf32>
    %68 = vector.broadcast %3 : vector<8x1xf32> to vector<8x350xf32>
    %69 = arith.addf %68, %67 : vector<8x350xf32>
    %70 = vector.extract_strided_slice %36 {offsets = [8, 1], sizes = [8, 350], strides = [1, 1]} : vector<24x351xf32> to vector<8x350xf32>
    %71 = arith.addf %69, %70 : vector<8x350xf32>
    %72 = vector.extract_strided_slice %39 {offsets = [16, 1], sizes = [8, 350], strides = [1, 1]} : vector<24x351xf32> to vector<8x350xf32>
    %73 = arith.addf %71, %72 : vector<8x350xf32>
    %cst_66 = arith.constant 0.000000e+00 : f32
    %74 = vector.broadcast %cst_66 : f32 to vector<8x350xf32>
    %75 = arith.maximumf %52, %74 : vector<8x350xf32>
    %cst_67 = arith.constant 0.000000e+00 : f32
    %76 = vector.broadcast %cst_67 : f32 to vector<8x350xf32>
    %77 = arith.maximumf %59, %76 : vector<8x350xf32>
    %78 = arith.maximumf %75, %77 : vector<8x350xf32>
    %cst_68 = arith.constant 0.000000e+00 : f32
    %79 = vector.broadcast %cst_68 : f32 to vector<8x350xf32>
    %80 = arith.maximumf %66, %79 : vector<8x350xf32>
    %cst_69 = arith.constant 0.000000e+00 : f32
    %81 = vector.broadcast %cst_69 : f32 to vector<8x350xf32>
    %82 = arith.maximumf %73, %81 : vector<8x350xf32>
    %83 = arith.maximumf %80, %82 : vector<8x350xf32>
    %84 = arith.truncf %78 : vector<8x350xf32> to vector<8x350xbf16>
    %cst_70 = arith.constant dense<0.000000e+00> : vector<48x350xf32>
    %85 = tpu.matmul %5, %84, %cst_70 {dimension_numbers = #tpu.dot_dimension_numbers<[1], [0], [0], [1], [0, 0, 1, 1], [], []>} : vector<48x8xbf16>, vector<8x350xbf16>, vector<48x350xf32> -> vector<48x350xf32>
    %86 = arith.truncf %83 : vector<8x350xf32> to vector<8x350xbf16>
    %cst_71 = arith.constant dense<0.000000e+00> : vector<48x350xf32>
    %87 = tpu.matmul %5, %86, %cst_71 {dimension_numbers = #tpu.dot_dimension_numbers<[1], [0], [0], [1], [0, 0, 1, 1], [], []>} : vector<48x8xbf16>, vector<8x350xbf16>, vector<48x350xf32> -> vector<48x350xf32>
    %88 = vector.extract_strided_slice %87 {offsets = [0, 0], sizes = [16, 350], strides = [1, 1]} : vector<48x350xf32> to vector<16x350xf32>
    %cst_72 = arith.constant 0.000000e+00 : f32
    %89 = vector.broadcast %cst_72 : f32 to vector<16x1xf32>
    %90 = vector.extract_strided_slice %88 {offsets = [0, 0], sizes = [16, 349], strides = [1, 1]} : vector<16x350xf32> to vector<16x349xf32>
    %91 = tpu.concatenate %89, %90 in 1 : vector<16x1xf32>, vector<16x349xf32> -> vector<16x350xf32>
    %92 = vector.broadcast %7 : vector<16x1xf32> to vector<16x350xf32>
    %93 = arith.addf %92, %91 : vector<16x350xf32>
    %94 = vector.extract_strided_slice %85 {offsets = [16, 0], sizes = [16, 350], strides = [1, 1]} : vector<48x350xf32> to vector<16x350xf32>
    %95 = arith.addf %93, %94 : vector<16x350xf32>
    %96 = vector.extract_strided_slice %87 {offsets = [32, 0], sizes = [16, 350], strides = [1, 1]} : vector<48x350xf32> to vector<16x350xf32>
    %97 = arith.addf %95, %96 : vector<16x350xf32>
    %98 = vector.extract_strided_slice %85 {offsets = [0, 0], sizes = [16, 350], strides = [1, 1]} : vector<48x350xf32> to vector<16x350xf32>
    %99 = vector.broadcast %7 : vector<16x1xf32> to vector<16x350xf32>
    %100 = arith.addf %99, %98 : vector<16x350xf32>
    %101 = vector.extract_strided_slice %87 {offsets = [16, 0], sizes = [16, 350], strides = [1, 1]} : vector<48x350xf32> to vector<16x350xf32>
    %102 = arith.addf %100, %101 : vector<16x350xf32>
    %103 = vector.extract_strided_slice %85 {offsets = [32, 0], sizes = [16, 350], strides = [1, 1]} : vector<48x350xf32> to vector<16x350xf32>
    %cst_73 = arith.constant 0.000000e+00 : f32
    %104 = vector.broadcast %cst_73 : f32 to vector<16x1xf32>
    %105 = vector.extract_strided_slice %103 {offsets = [0, 1], sizes = [16, 349], strides = [1, 1]} : vector<16x350xf32> to vector<16x349xf32>
    %106 = tpu.concatenate %105, %104 in 1 : vector<16x349xf32>, vector<16x1xf32> -> vector<16x350xf32>
    %107 = arith.addf %102, %106 : vector<16x350xf32>
    %cst_74 = arith.constant 0.000000e+00 : f32
    %108 = vector.broadcast %cst_74 : f32 to vector<16x350xf32>
    %109 = arith.maximumf %97, %108 : vector<16x350xf32>
    %cst_75 = arith.constant 0.000000e+00 : f32
    %110 = vector.broadcast %cst_75 : f32 to vector<16x350xf32>
    %111 = arith.maximumf %107, %110 : vector<16x350xf32>
    %112 = arith.maximumf %109, %111 : vector<16x350xf32>
    %c1_76 = arith.constant 1 : index
    %c0_77 = arith.constant 0 : index
    %c0_78 = arith.constant 0 : index
    %c0_79 = arith.constant 0 : index
    %113 = vector.load %arg1[%c1_76, %c0_77, %c0_78, %c0_79] : memref<2x4x96x351xbf16, #tpu.memory_space<vmem>>, vector<1x1x96x351xbf16>
    %114 = vector.shape_cast %113 : vector<1x1x96x351xbf16> to vector<96x351xbf16>
    %cst_80 = arith.constant dense<0.000000e+00> : vector<24x351xf32>
    %115 = tpu.matmul %1, %114, %cst_80 {dimension_numbers = #tpu.dot_dimension_numbers<[1], [0], [0], [1], [0, 0, 1, 1], [], []>} : vector<24x96xbf16>, vector<96x351xbf16>, vector<24x351xf32> -> vector<24x351xf32>
    %c1_81 = arith.constant 1 : index
    %c1_82 = arith.constant 1 : index
    %c0_83 = arith.constant 0 : index
    %c0_84 = arith.constant 0 : index
    %116 = vector.load %arg1[%c1_81, %c1_82, %c0_83, %c0_84] : memref<2x4x96x351xbf16, #tpu.memory_space<vmem>>, vector<1x1x96x351xbf16>
    %117 = vector.shape_cast %116 : vector<1x1x96x351xbf16> to vector<96x351xbf16>
    %cst_85 = arith.constant dense<0.000000e+00> : vector<24x351xf32>
    %118 = tpu.matmul %1, %117, %cst_85 {dimension_numbers = #tpu.dot_dimension_numbers<[1], [0], [0], [1], [0, 0, 1, 1], [], []>} : vector<24x96xbf16>, vector<96x351xbf16>, vector<24x351xf32> -> vector<24x351xf32>
    %c1_86 = arith.constant 1 : index
    %c2_87 = arith.constant 2 : index
    %c0_88 = arith.constant 0 : index
    %c0_89 = arith.constant 0 : index
    %119 = vector.load %arg1[%c1_86, %c2_87, %c0_88, %c0_89] : memref<2x4x96x351xbf16, #tpu.memory_space<vmem>>, vector<1x1x96x351xbf16>
    %120 = vector.shape_cast %119 : vector<1x1x96x351xbf16> to vector<96x351xbf16>
    %cst_90 = arith.constant dense<0.000000e+00> : vector<24x351xf32>
    %121 = tpu.matmul %1, %120, %cst_90 {dimension_numbers = #tpu.dot_dimension_numbers<[1], [0], [0], [1], [0, 0, 1, 1], [], []>} : vector<24x96xbf16>, vector<96x351xbf16>, vector<24x351xf32> -> vector<24x351xf32>
    %c1_91 = arith.constant 1 : index
    %c3_92 = arith.constant 3 : index
    %c0_93 = arith.constant 0 : index
    %c0_94 = arith.constant 0 : index
    %122 = vector.load %arg1[%c1_91, %c3_92, %c0_93, %c0_94] : memref<2x4x96x351xbf16, #tpu.memory_space<vmem>>, vector<1x1x96x351xbf16>
    %123 = vector.shape_cast %122 : vector<1x1x96x351xbf16> to vector<96x351xbf16>
    %cst_95 = arith.constant dense<0.000000e+00> : vector<24x351xf32>
    %124 = tpu.matmul %1, %123, %cst_95 {dimension_numbers = #tpu.dot_dimension_numbers<[1], [0], [0], [1], [0, 0, 1, 1], [], []>} : vector<24x96xbf16>, vector<96x351xbf16>, vector<24x351xf32> -> vector<24x351xf32>
    %125 = vector.extract_strided_slice %115 {offsets = [0, 0], sizes = [8, 350], strides = [1, 1]} : vector<24x351xf32> to vector<8x350xf32>
    %126 = vector.broadcast %3 : vector<8x1xf32> to vector<8x350xf32>
    %127 = arith.addf %126, %125 : vector<8x350xf32>
    %128 = vector.extract_strided_slice %118 {offsets = [8, 0], sizes = [8, 350], strides = [1, 1]} : vector<24x351xf32> to vector<8x350xf32>
    %129 = arith.addf %127, %128 : vector<8x350xf32>
    %130 = vector.extract_strided_slice %121 {offsets = [16, 0], sizes = [8, 350], strides = [1, 1]} : vector<24x351xf32> to vector<8x350xf32>
    %131 = arith.addf %129, %130 : vector<8x350xf32>
    %132 = vector.extract_strided_slice %118 {offsets = [0, 0], sizes = [8, 350], strides = [1, 1]} : vector<24x351xf32> to vector<8x350xf32>
    %133 = vector.broadcast %3 : vector<8x1xf32> to vector<8x350xf32>
    %134 = arith.addf %133, %132 : vector<8x350xf32>
    %135 = vector.extract_strided_slice %121 {offsets = [8, 0], sizes = [8, 350], strides = [1, 1]} : vector<24x351xf32> to vector<8x350xf32>
    %136 = arith.addf %134, %135 : vector<8x350xf32>
    %137 = vector.extract_strided_slice %124 {offsets = [16, 0], sizes = [8, 350], strides = [1, 1]} : vector<24x351xf32> to vector<8x350xf32>
    %138 = arith.addf %136, %137 : vector<8x350xf32>
    %139 = vector.extract_strided_slice %121 {offsets = [0, 0], sizes = [8, 350], strides = [1, 1]} : vector<24x351xf32> to vector<8x350xf32>
    %140 = vector.broadcast %3 : vector<8x1xf32> to vector<8x350xf32>
    %141 = arith.addf %140, %139 : vector<8x350xf32>
    %142 = vector.extract_strided_slice %124 {offsets = [8, 0], sizes = [8, 350], strides = [1, 1]} : vector<24x351xf32> to vector<8x350xf32>
    %143 = arith.addf %141, %142 : vector<8x350xf32>
    %144 = vector.extract_strided_slice %115 {offsets = [16, 1], sizes = [8, 350], strides = [1, 1]} : vector<24x351xf32> to vector<8x350xf32>
    %145 = arith.addf %143, %144 : vector<8x350xf32>
    %146 = vector.extract_strided_slice %124 {offsets = [0, 0], sizes = [8, 350], strides = [1, 1]} : vector<24x351xf32> to vector<8x350xf32>
    %147 = vector.broadcast %3 : vector<8x1xf32> to vector<8x350xf32>
    %148 = arith.addf %147, %146 : vector<8x350xf32>
    %149 = vector.extract_strided_slice %115 {offsets = [8, 1], sizes = [8, 350], strides = [1, 1]} : vector<24x351xf32> to vector<8x350xf32>
    %150 = arith.addf %148, %149 : vector<8x350xf32>
    %151 = vector.extract_strided_slice %118 {offsets = [16, 1], sizes = [8, 350], strides = [1, 1]} : vector<24x351xf32> to vector<8x350xf32>
    %152 = arith.addf %150, %151 : vector<8x350xf32>
    %cst_96 = arith.constant 0.000000e+00 : f32
    %153 = vector.broadcast %cst_96 : f32 to vector<8x350xf32>
    %154 = arith.maximumf %131, %153 : vector<8x350xf32>
    %cst_97 = arith.constant 0.000000e+00 : f32
    %155 = vector.broadcast %cst_97 : f32 to vector<8x350xf32>
    %156 = arith.maximumf %138, %155 : vector<8x350xf32>
    %157 = arith.maximumf %154, %156 : vector<8x350xf32>
    %cst_98 = arith.constant 0.000000e+00 : f32
    %158 = vector.broadcast %cst_98 : f32 to vector<8x350xf32>
    %159 = arith.maximumf %145, %158 : vector<8x350xf32>
    %cst_99 = arith.constant 0.000000e+00 : f32
    %160 = vector.broadcast %cst_99 : f32 to vector<8x350xf32>
    %161 = arith.maximumf %152, %160 : vector<8x350xf32>
    %162 = arith.maximumf %159, %161 : vector<8x350xf32>
    %163 = arith.truncf %157 : vector<8x350xf32> to vector<8x350xbf16>
    %cst_100 = arith.constant dense<0.000000e+00> : vector<48x350xf32>
    %164 = tpu.matmul %5, %163, %cst_100 {dimension_numbers = #tpu.dot_dimension_numbers<[1], [0], [0], [1], [0, 0, 1, 1], [], []>} : vector<48x8xbf16>, vector<8x350xbf16>, vector<48x350xf32> -> vector<48x350xf32>
    %165 = arith.truncf %162 : vector<8x350xf32> to vector<8x350xbf16>
    %cst_101 = arith.constant dense<0.000000e+00> : vector<48x350xf32>
    %166 = tpu.matmul %5, %165, %cst_101 {dimension_numbers = #tpu.dot_dimension_numbers<[1], [0], [0], [1], [0, 0, 1, 1], [], []>} : vector<48x8xbf16>, vector<8x350xbf16>, vector<48x350xf32> -> vector<48x350xf32>
    %167 = vector.extract_strided_slice %166 {offsets = [0, 0], sizes = [16, 350], strides = [1, 1]} : vector<48x350xf32> to vector<16x350xf32>
    %cst_102 = arith.constant 0.000000e+00 : f32
    %168 = vector.broadcast %cst_102 : f32 to vector<16x1xf32>
    %169 = vector.extract_strided_slice %167 {offsets = [0, 0], sizes = [16, 349], strides = [1, 1]} : vector<16x350xf32> to vector<16x349xf32>
    %170 = tpu.concatenate %168, %169 in 1 : vector<16x1xf32>, vector<16x349xf32> -> vector<16x350xf32>
    %171 = vector.broadcast %7 : vector<16x1xf32> to vector<16x350xf32>
    %172 = arith.addf %171, %170 : vector<16x350xf32>
    %173 = vector.extract_strided_slice %164 {offsets = [16, 0], sizes = [16, 350], strides = [1, 1]} : vector<48x350xf32> to vector<16x350xf32>
    %174 = arith.addf %172, %173 : vector<16x350xf32>
    %175 = vector.extract_strided_slice %166 {offsets = [32, 0], sizes = [16, 350], strides = [1, 1]} : vector<48x350xf32> to vector<16x350xf32>
    %176 = arith.addf %174, %175 : vector<16x350xf32>
    %177 = vector.extract_strided_slice %164 {offsets = [0, 0], sizes = [16, 350], strides = [1, 1]} : vector<48x350xf32> to vector<16x350xf32>
    %178 = vector.broadcast %7 : vector<16x1xf32> to vector<16x350xf32>
    %179 = arith.addf %178, %177 : vector<16x350xf32>
    %180 = vector.extract_strided_slice %166 {offsets = [16, 0], sizes = [16, 350], strides = [1, 1]} : vector<48x350xf32> to vector<16x350xf32>
    %181 = arith.addf %179, %180 : vector<16x350xf32>
    %182 = vector.extract_strided_slice %164 {offsets = [32, 0], sizes = [16, 350], strides = [1, 1]} : vector<48x350xf32> to vector<16x350xf32>
    %cst_103 = arith.constant 0.000000e+00 : f32
    %183 = vector.broadcast %cst_103 : f32 to vector<16x1xf32>
    %184 = vector.extract_strided_slice %182 {offsets = [0, 1], sizes = [16, 349], strides = [1, 1]} : vector<16x350xf32> to vector<16x349xf32>
    %185 = tpu.concatenate %184, %183 in 1 : vector<16x349xf32>, vector<16x1xf32> -> vector<16x350xf32>
    %186 = arith.addf %181, %185 : vector<16x350xf32>
    %cst_104 = arith.constant 0.000000e+00 : f32
    %187 = vector.broadcast %cst_104 : f32 to vector<16x350xf32>
    %188 = arith.maximumf %176, %187 : vector<16x350xf32>
    %cst_105 = arith.constant 0.000000e+00 : f32
    %189 = vector.broadcast %cst_105 : f32 to vector<16x350xf32>
    %190 = arith.maximumf %186, %189 : vector<16x350xf32>
    %191 = arith.maximumf %188, %190 : vector<16x350xf32>
    %cst_106 = arith.constant 0.000000e+00 : f32
    %192 = vector.broadcast %cst_106 : f32 to vector<16x16xf32>
    %cst_107 = arith.constant 0.000000e+00 : f32
    %193 = vector.broadcast %cst_107 : f32 to vector<16x16xf32>
    %cst_108 = arith.constant 0.000000e+00 : f32
    %194 = vector.broadcast %cst_108 : f32 to vector<16x16xf32>
    %cst_109 = arith.constant 0.000000e+00 : f32
    %195 = vector.broadcast %cst_109 : f32 to vector<16x16xf32>
    %cst_110 = arith.constant 0.000000e+00 : f32
    %196 = vector.broadcast %cst_110 : f32 to vector<16x16xf32>
    %cst_111 = arith.constant 0.000000e+00 : f32
    %197 = vector.broadcast %cst_111 : f32 to vector<16x16xf32>
    %198 = arith.truncf %112 : vector<16x350xf32> to vector<16x350xbf16>
    %cst_112 = arith.constant dense<0.000000e+00> : vector<16x64xf32>
    %199 = tpu.matmul %198, %9, %cst_112 {dimension_numbers = #tpu.dot_dimension_numbers<[1], [0], [0], [1], [0, 0, 1, 1], [], []>} : vector<16x350xbf16>, vector<350x64xbf16>, vector<16x64xf32> -> vector<16x64xf32>
    %cst_113 = arith.constant dense<0.000000e+00> : vector<16x64xf32>
    %200 = tpu.matmul %192, %11, %cst_113 {dimension_numbers = #tpu.dot_dimension_numbers<[1], [0], [0], [1], [0, 0, 1, 1], [], []>} : vector<16x16xf32>, vector<16x64xf32>, vector<16x64xf32> -> vector<16x64xf32>
    %201 = arith.addf %199, %200 : vector<16x64xf32>
    %202 = vector.broadcast %13 : vector<1x64xf32> to vector<16x64xf32>
    %203 = arith.addf %201, %202 : vector<16x64xf32>
    %204 = vector.extract_strided_slice %203 {offsets = [0, 0], sizes = [16, 16], strides = [1, 1]} : vector<16x64xf32> to vector<16x16xf32>
    %cst_114 = arith.constant 5.000000e-01 : f32
    %205 = vector.broadcast %cst_114 : f32 to vector<16x16xf32>
    %206 = arith.mulf %205, %204 : vector<16x16xf32>
    %207 = math.tanh %206 : vector<16x16xf32>
    %cst_115 = arith.constant 1.000000e+00 : f32
    %208 = vector.broadcast %cst_115 : f32 to vector<16x16xf32>
    %209 = arith.addf %207, %208 : vector<16x16xf32>
    %cst_116 = arith.constant 5.000000e-01 : f32
    %210 = vector.broadcast %cst_116 : f32 to vector<16x16xf32>
    %211 = arith.mulf %210, %209 : vector<16x16xf32>
    %212 = vector.extract_strided_slice %203 {offsets = [0, 16], sizes = [16, 16], strides = [1, 1]} : vector<16x64xf32> to vector<16x16xf32>
    %cst_117 = arith.constant 5.000000e-01 : f32
    %213 = vector.broadcast %cst_117 : f32 to vector<16x16xf32>
    %214 = arith.mulf %213, %212 : vector<16x16xf32>
    %215 = math.tanh %214 : vector<16x16xf32>
    %cst_118 = arith.constant 1.000000e+00 : f32
    %216 = vector.broadcast %cst_118 : f32 to vector<16x16xf32>
    %217 = arith.addf %215, %216 : vector<16x16xf32>
    %cst_119 = arith.constant 5.000000e-01 : f32
    %218 = vector.broadcast %cst_119 : f32 to vector<16x16xf32>
    %219 = arith.mulf %218, %217 : vector<16x16xf32>
    %220 = vector.extract_strided_slice %203 {offsets = [0, 32], sizes = [16, 16], strides = [1, 1]} : vector<16x64xf32> to vector<16x16xf32>
    %221 = math.tanh %220 : vector<16x16xf32>
    %222 = vector.extract_strided_slice %203 {offsets = [0, 48], sizes = [16, 16], strides = [1, 1]} : vector<16x64xf32> to vector<16x16xf32>
    %cst_120 = arith.constant 5.000000e-01 : f32
    %223 = vector.broadcast %cst_120 : f32 to vector<16x16xf32>
    %224 = arith.mulf %223, %222 : vector<16x16xf32>
    %225 = math.tanh %224 : vector<16x16xf32>
    %cst_121 = arith.constant 1.000000e+00 : f32
    %226 = vector.broadcast %cst_121 : f32 to vector<16x16xf32>
    %227 = arith.addf %225, %226 : vector<16x16xf32>
    %cst_122 = arith.constant 5.000000e-01 : f32
    %228 = vector.broadcast %cst_122 : f32 to vector<16x16xf32>
    %229 = arith.mulf %228, %227 : vector<16x16xf32>
    %230 = arith.mulf %219, %195 : vector<16x16xf32>
    %231 = arith.mulf %211, %221 : vector<16x16xf32>
    %232 = arith.addf %230, %231 : vector<16x16xf32>
    %233 = math.tanh %232 : vector<16x16xf32>
    %234 = arith.mulf %229, %233 : vector<16x16xf32>
    %cst_123 = arith.constant dense<0.000000e+00> : vector<16x64xf32>
    %235 = tpu.matmul %234, %15, %cst_123 {dimension_numbers = #tpu.dot_dimension_numbers<[1], [0], [0], [1], [0, 0, 1, 1], [], []>} : vector<16x16xf32>, vector<16x64xf32>, vector<16x64xf32> -> vector<16x64xf32>
    %cst_124 = arith.constant dense<0.000000e+00> : vector<16x64xf32>
    %236 = tpu.matmul %193, %17, %cst_124 {dimension_numbers = #tpu.dot_dimension_numbers<[1], [0], [0], [1], [0, 0, 1, 1], [], []>} : vector<16x16xf32>, vector<16x64xf32>, vector<16x64xf32> -> vector<16x64xf32>
    %237 = arith.addf %235, %236 : vector<16x64xf32>
    %238 = vector.broadcast %19 : vector<1x64xf32> to vector<16x64xf32>
    %239 = arith.addf %237, %238 : vector<16x64xf32>
    %240 = vector.extract_strided_slice %239 {offsets = [0, 0], sizes = [16, 16], strides = [1, 1]} : vector<16x64xf32> to vector<16x16xf32>
    %cst_125 = arith.constant 5.000000e-01 : f32
    %241 = vector.broadcast %cst_125 : f32 to vector<16x16xf32>
    %242 = arith.mulf %241, %240 : vector<16x16xf32>
    %243 = math.tanh %242 : vector<16x16xf32>
    %cst_126 = arith.constant 1.000000e+00 : f32
    %244 = vector.broadcast %cst_126 : f32 to vector<16x16xf32>
    %245 = arith.addf %243, %244 : vector<16x16xf32>
    %cst_127 = arith.constant 5.000000e-01 : f32
    %246 = vector.broadcast %cst_127 : f32 to vector<16x16xf32>
    %247 = arith.mulf %246, %245 : vector<16x16xf32>
    %248 = vector.extract_strided_slice %239 {offsets = [0, 16], sizes = [16, 16], strides = [1, 1]} : vector<16x64xf32> to vector<16x16xf32>
    %cst_128 = arith.constant 5.000000e-01 : f32
    %249 = vector.broadcast %cst_128 : f32 to vector<16x16xf32>
    %250 = arith.mulf %249, %248 : vector<16x16xf32>
    %251 = math.tanh %250 : vector<16x16xf32>
    %cst_129 = arith.constant 1.000000e+00 : f32
    %252 = vector.broadcast %cst_129 : f32 to vector<16x16xf32>
    %253 = arith.addf %251, %252 : vector<16x16xf32>
    %cst_130 = arith.constant 5.000000e-01 : f32
    %254 = vector.broadcast %cst_130 : f32 to vector<16x16xf32>
    %255 = arith.mulf %254, %253 : vector<16x16xf32>
    %256 = vector.extract_strided_slice %239 {offsets = [0, 32], sizes = [16, 16], strides = [1, 1]} : vector<16x64xf32> to vector<16x16xf32>
    %257 = math.tanh %256 : vector<16x16xf32>
    %258 = vector.extract_strided_slice %239 {offsets = [0, 48], sizes = [16, 16], strides = [1, 1]} : vector<16x64xf32> to vector<16x16xf32>
    %cst_131 = arith.constant 5.000000e-01 : f32
    %259 = vector.broadcast %cst_131 : f32 to vector<16x16xf32>
    %260 = arith.mulf %259, %258 : vector<16x16xf32>
    %261 = math.tanh %260 : vector<16x16xf32>
    %cst_132 = arith.constant 1.000000e+00 : f32
    %262 = vector.broadcast %cst_132 : f32 to vector<16x16xf32>
    %263 = arith.addf %261, %262 : vector<16x16xf32>
    %cst_133 = arith.constant 5.000000e-01 : f32
    %264 = vector.broadcast %cst_133 : f32 to vector<16x16xf32>
    %265 = arith.mulf %264, %263 : vector<16x16xf32>
    %266 = arith.mulf %255, %196 : vector<16x16xf32>
    %267 = arith.mulf %247, %257 : vector<16x16xf32>
    %268 = arith.addf %266, %267 : vector<16x16xf32>
    %269 = math.tanh %268 : vector<16x16xf32>
    %270 = arith.mulf %265, %269 : vector<16x16xf32>
    %cst_134 = arith.constant dense<0.000000e+00> : vector<16x64xf32>
    %271 = tpu.matmul %270, %21, %cst_134 {dimension_numbers = #tpu.dot_dimension_numbers<[1], [0], [0], [1], [0, 0, 1, 1], [], []>} : vector<16x16xf32>, vector<16x64xf32>, vector<16x64xf32> -> vector<16x64xf32>
    %cst_135 = arith.constant dense<0.000000e+00> : vector<16x64xf32>
    %272 = tpu.matmul %194, %23, %cst_135 {dimension_numbers = #tpu.dot_dimension_numbers<[1], [0], [0], [1], [0, 0, 1, 1], [], []>} : vector<16x16xf32>, vector<16x64xf32>, vector<16x64xf32> -> vector<16x64xf32>
    %273 = arith.addf %271, %272 : vector<16x64xf32>
    %274 = vector.broadcast %25 : vector<1x64xf32> to vector<16x64xf32>
    %275 = arith.addf %273, %274 : vector<16x64xf32>
    %276 = vector.extract_strided_slice %275 {offsets = [0, 0], sizes = [16, 16], strides = [1, 1]} : vector<16x64xf32> to vector<16x16xf32>
    %cst_136 = arith.constant 5.000000e-01 : f32
    %277 = vector.broadcast %cst_136 : f32 to vector<16x16xf32>
    %278 = arith.mulf %277, %276 : vector<16x16xf32>
    %279 = math.tanh %278 : vector<16x16xf32>
    %cst_137 = arith.constant 1.000000e+00 : f32
    %280 = vector.broadcast %cst_137 : f32 to vector<16x16xf32>
    %281 = arith.addf %279, %280 : vector<16x16xf32>
    %cst_138 = arith.constant 5.000000e-01 : f32
    %282 = vector.broadcast %cst_138 : f32 to vector<16x16xf32>
    %283 = arith.mulf %282, %281 : vector<16x16xf32>
    %284 = vector.extract_strided_slice %275 {offsets = [0, 16], sizes = [16, 16], strides = [1, 1]} : vector<16x64xf32> to vector<16x16xf32>
    %cst_139 = arith.constant 5.000000e-01 : f32
    %285 = vector.broadcast %cst_139 : f32 to vector<16x16xf32>
    %286 = arith.mulf %285, %284 : vector<16x16xf32>
    %287 = math.tanh %286 : vector<16x16xf32>
    %cst_140 = arith.constant 1.000000e+00 : f32
    %288 = vector.broadcast %cst_140 : f32 to vector<16x16xf32>
    %289 = arith.addf %287, %288 : vector<16x16xf32>
    %cst_141 = arith.constant 5.000000e-01 : f32
    %290 = vector.broadcast %cst_141 : f32 to vector<16x16xf32>
    %291 = arith.mulf %290, %289 : vector<16x16xf32>
    %292 = vector.extract_strided_slice %275 {offsets = [0, 32], sizes = [16, 16], strides = [1, 1]} : vector<16x64xf32> to vector<16x16xf32>
    %293 = math.tanh %292 : vector<16x16xf32>
    %294 = vector.extract_strided_slice %275 {offsets = [0, 48], sizes = [16, 16], strides = [1, 1]} : vector<16x64xf32> to vector<16x16xf32>
    %cst_142 = arith.constant 5.000000e-01 : f32
    %295 = vector.broadcast %cst_142 : f32 to vector<16x16xf32>
    %296 = arith.mulf %295, %294 : vector<16x16xf32>
    %297 = math.tanh %296 : vector<16x16xf32>
    %cst_143 = arith.constant 1.000000e+00 : f32
    %298 = vector.broadcast %cst_143 : f32 to vector<16x16xf32>
    %299 = arith.addf %297, %298 : vector<16x16xf32>
    %cst_144 = arith.constant 5.000000e-01 : f32
    %300 = vector.broadcast %cst_144 : f32 to vector<16x16xf32>
    %301 = arith.mulf %300, %299 : vector<16x16xf32>
    %302 = arith.mulf %291, %197 : vector<16x16xf32>
    %303 = arith.mulf %283, %293 : vector<16x16xf32>
    %304 = arith.addf %302, %303 : vector<16x16xf32>
    %305 = math.tanh %304 : vector<16x16xf32>
    %306 = arith.mulf %301, %305 : vector<16x16xf32>
    %307 = vector.extract_strided_slice %306 {offsets = [15, 0], sizes = [1, 16], strides = [1, 1]} : vector<16x16xf32> to vector<1x16xf32>
    %308 = arith.truncf %191 : vector<16x350xf32> to vector<16x350xbf16>
    %cst_145 = arith.constant dense<0.000000e+00> : vector<16x64xf32>
    %309 = tpu.matmul %308, %9, %cst_145 {dimension_numbers = #tpu.dot_dimension_numbers<[1], [0], [0], [1], [0, 0, 1, 1], [], []>} : vector<16x350xbf16>, vector<350x64xbf16>, vector<16x64xf32> -> vector<16x64xf32>
    %cst_146 = arith.constant dense<0.000000e+00> : vector<16x64xf32>
    %310 = tpu.matmul %234, %11, %cst_146 {dimension_numbers = #tpu.dot_dimension_numbers<[1], [0], [0], [1], [0, 0, 1, 1], [], []>} : vector<16x16xf32>, vector<16x64xf32>, vector<16x64xf32> -> vector<16x64xf32>
    %311 = arith.addf %309, %310 : vector<16x64xf32>
    %312 = vector.broadcast %13 : vector<1x64xf32> to vector<16x64xf32>
    %313 = arith.addf %311, %312 : vector<16x64xf32>
    %314 = vector.extract_strided_slice %313 {offsets = [0, 0], sizes = [16, 16], strides = [1, 1]} : vector<16x64xf32> to vector<16x16xf32>
    %cst_147 = arith.constant 5.000000e-01 : f32
    %315 = vector.broadcast %cst_147 : f32 to vector<16x16xf32>
    %316 = arith.mulf %315, %314 : vector<16x16xf32>
    %317 = math.tanh %316 : vector<16x16xf32>
    %cst_148 = arith.constant 1.000000e+00 : f32
    %318 = vector.broadcast %cst_148 : f32 to vector<16x16xf32>
    %319 = arith.addf %317, %318 : vector<16x16xf32>
    %cst_149 = arith.constant 5.000000e-01 : f32
    %320 = vector.broadcast %cst_149 : f32 to vector<16x16xf32>
    %321 = arith.mulf %320, %319 : vector<16x16xf32>
    %322 = vector.extract_strided_slice %313 {offsets = [0, 16], sizes = [16, 16], strides = [1, 1]} : vector<16x64xf32> to vector<16x16xf32>
    %cst_150 = arith.constant 5.000000e-01 : f32
    %323 = vector.broadcast %cst_150 : f32 to vector<16x16xf32>
    %324 = arith.mulf %323, %322 : vector<16x16xf32>
    %325 = math.tanh %324 : vector<16x16xf32>
    %cst_151 = arith.constant 1.000000e+00 : f32
    %326 = vector.broadcast %cst_151 : f32 to vector<16x16xf32>
    %327 = arith.addf %325, %326 : vector<16x16xf32>
    %cst_152 = arith.constant 5.000000e-01 : f32
    %328 = vector.broadcast %cst_152 : f32 to vector<16x16xf32>
    %329 = arith.mulf %328, %327 : vector<16x16xf32>
    %330 = vector.extract_strided_slice %313 {offsets = [0, 32], sizes = [16, 16], strides = [1, 1]} : vector<16x64xf32> to vector<16x16xf32>
    %331 = math.tanh %330 : vector<16x16xf32>
    %332 = vector.extract_strided_slice %313 {offsets = [0, 48], sizes = [16, 16], strides = [1, 1]} : vector<16x64xf32> to vector<16x16xf32>
    %cst_153 = arith.constant 5.000000e-01 : f32
    %333 = vector.broadcast %cst_153 : f32 to vector<16x16xf32>
    %334 = arith.mulf %333, %332 : vector<16x16xf32>
    %335 = math.tanh %334 : vector<16x16xf32>
    %cst_154 = arith.constant 1.000000e+00 : f32
    %336 = vector.broadcast %cst_154 : f32 to vector<16x16xf32>
    %337 = arith.addf %335, %336 : vector<16x16xf32>
    %cst_155 = arith.constant 5.000000e-01 : f32
    %338 = vector.broadcast %cst_155 : f32 to vector<16x16xf32>
    %339 = arith.mulf %338, %337 : vector<16x16xf32>
    %340 = arith.mulf %329, %232 : vector<16x16xf32>
    %341 = arith.mulf %321, %331 : vector<16x16xf32>
    %342 = arith.addf %340, %341 : vector<16x16xf32>
    %343 = math.tanh %342 : vector<16x16xf32>
    %344 = arith.mulf %339, %343 : vector<16x16xf32>
    %cst_156 = arith.constant dense<0.000000e+00> : vector<16x64xf32>
    %345 = tpu.matmul %344, %15, %cst_156 {dimension_numbers = #tpu.dot_dimension_numbers<[1], [0], [0], [1], [0, 0, 1, 1], [], []>} : vector<16x16xf32>, vector<16x64xf32>, vector<16x64xf32> -> vector<16x64xf32>
    %cst_157 = arith.constant dense<0.000000e+00> : vector<16x64xf32>
    %346 = tpu.matmul %270, %17, %cst_157 {dimension_numbers = #tpu.dot_dimension_numbers<[1], [0], [0], [1], [0, 0, 1, 1], [], []>} : vector<16x16xf32>, vector<16x64xf32>, vector<16x64xf32> -> vector<16x64xf32>
    %347 = arith.addf %345, %346 : vector<16x64xf32>
    %348 = vector.broadcast %19 : vector<1x64xf32> to vector<16x64xf32>
    %349 = arith.addf %347, %348 : vector<16x64xf32>
    %350 = vector.extract_strided_slice %349 {offsets = [0, 0], sizes = [16, 16], strides = [1, 1]} : vector<16x64xf32> to vector<16x16xf32>
    %cst_158 = arith.constant 5.000000e-01 : f32
    %351 = vector.broadcast %cst_158 : f32 to vector<16x16xf32>
    %352 = arith.mulf %351, %350 : vector<16x16xf32>
    %353 = math.tanh %352 : vector<16x16xf32>
    %cst_159 = arith.constant 1.000000e+00 : f32
    %354 = vector.broadcast %cst_159 : f32 to vector<16x16xf32>
    %355 = arith.addf %353, %354 : vector<16x16xf32>
    %cst_160 = arith.constant 5.000000e-01 : f32
    %356 = vector.broadcast %cst_160 : f32 to vector<16x16xf32>
    %357 = arith.mulf %356, %355 : vector<16x16xf32>
    %358 = vector.extract_strided_slice %349 {offsets = [0, 16], sizes = [16, 16], strides = [1, 1]} : vector<16x64xf32> to vector<16x16xf32>
    %cst_161 = arith.constant 5.000000e-01 : f32
    %359 = vector.broadcast %cst_161 : f32 to vector<16x16xf32>
    %360 = arith.mulf %359, %358 : vector<16x16xf32>
    %361 = math.tanh %360 : vector<16x16xf32>
    %cst_162 = arith.constant 1.000000e+00 : f32
    %362 = vector.broadcast %cst_162 : f32 to vector<16x16xf32>
    %363 = arith.addf %361, %362 : vector<16x16xf32>
    %cst_163 = arith.constant 5.000000e-01 : f32
    %364 = vector.broadcast %cst_163 : f32 to vector<16x16xf32>
    %365 = arith.mulf %364, %363 : vector<16x16xf32>
    %366 = vector.extract_strided_slice %349 {offsets = [0, 32], sizes = [16, 16], strides = [1, 1]} : vector<16x64xf32> to vector<16x16xf32>
    %367 = math.tanh %366 : vector<16x16xf32>
    %368 = vector.extract_strided_slice %349 {offsets = [0, 48], sizes = [16, 16], strides = [1, 1]} : vector<16x64xf32> to vector<16x16xf32>
    %cst_164 = arith.constant 5.000000e-01 : f32
    %369 = vector.broadcast %cst_164 : f32 to vector<16x16xf32>
    %370 = arith.mulf %369, %368 : vector<16x16xf32>
    %371 = math.tanh %370 : vector<16x16xf32>
    %cst_165 = arith.constant 1.000000e+00 : f32
    %372 = vector.broadcast %cst_165 : f32 to vector<16x16xf32>
    %373 = arith.addf %371, %372 : vector<16x16xf32>
    %cst_166 = arith.constant 5.000000e-01 : f32
    %374 = vector.broadcast %cst_166 : f32 to vector<16x16xf32>
    %375 = arith.mulf %374, %373 : vector<16x16xf32>
    %376 = arith.mulf %365, %268 : vector<16x16xf32>
    %377 = arith.mulf %357, %367 : vector<16x16xf32>
    %378 = arith.addf %376, %377 : vector<16x16xf32>
    %379 = math.tanh %378 : vector<16x16xf32>
    %380 = arith.mulf %375, %379 : vector<16x16xf32>
    %cst_167 = arith.constant dense<0.000000e+00> : vector<16x64xf32>
    %381 = tpu.matmul %380, %21, %cst_167 {dimension_numbers = #tpu.dot_dimension_numbers<[1], [0], [0], [1], [0, 0, 1, 1], [], []>} : vector<16x16xf32>, vector<16x64xf32>, vector<16x64xf32> -> vector<16x64xf32>
    %cst_168 = arith.constant dense<0.000000e+00> : vector<16x64xf32>
    %382 = tpu.matmul %306, %23, %cst_168 {dimension_numbers = #tpu.dot_dimension_numbers<[1], [0], [0], [1], [0, 0, 1, 1], [], []>} : vector<16x16xf32>, vector<16x64xf32>, vector<16x64xf32> -> vector<16x64xf32>
    %383 = arith.addf %381, %382 : vector<16x64xf32>
    %384 = vector.broadcast %25 : vector<1x64xf32> to vector<16x64xf32>
    %385 = arith.addf %383, %384 : vector<16x64xf32>
    %386 = vector.extract_strided_slice %385 {offsets = [0, 0], sizes = [16, 16], strides = [1, 1]} : vector<16x64xf32> to vector<16x16xf32>
    %cst_169 = arith.constant 5.000000e-01 : f32
    %387 = vector.broadcast %cst_169 : f32 to vector<16x16xf32>
    %388 = arith.mulf %387, %386 : vector<16x16xf32>
    %389 = math.tanh %388 : vector<16x16xf32>
    %cst_170 = arith.constant 1.000000e+00 : f32
    %390 = vector.broadcast %cst_170 : f32 to vector<16x16xf32>
    %391 = arith.addf %389, %390 : vector<16x16xf32>
    %cst_171 = arith.constant 5.000000e-01 : f32
    %392 = vector.broadcast %cst_171 : f32 to vector<16x16xf32>
    %393 = arith.mulf %392, %391 : vector<16x16xf32>
    %394 = vector.extract_strided_slice %385 {offsets = [0, 16], sizes = [16, 16], strides = [1, 1]} : vector<16x64xf32> to vector<16x16xf32>
    %cst_172 = arith.constant 5.000000e-01 : f32
    %395 = vector.broadcast %cst_172 : f32 to vector<16x16xf32>
    %396 = arith.mulf %395, %394 : vector<16x16xf32>
    %397 = math.tanh %396 : vector<16x16xf32>
    %cst_173 = arith.constant 1.000000e+00 : f32
    %398 = vector.broadcast %cst_173 : f32 to vector<16x16xf32>
    %399 = arith.addf %397, %398 : vector<16x16xf32>
    %cst_174 = arith.constant 5.000000e-01 : f32
    %400 = vector.broadcast %cst_174 : f32 to vector<16x16xf32>
    %401 = arith.mulf %400, %399 : vector<16x16xf32>
    %402 = vector.extract_strided_slice %385 {offsets = [0, 32], sizes = [16, 16], strides = [1, 1]} : vector<16x64xf32> to vector<16x16xf32>
    %403 = math.tanh %402 : vector<16x16xf32>
    %404 = vector.extract_strided_slice %385 {offsets = [0, 48], sizes = [16, 16], strides = [1, 1]} : vector<16x64xf32> to vector<16x16xf32>
    %cst_175 = arith.constant 5.000000e-01 : f32
    %405 = vector.broadcast %cst_175 : f32 to vector<16x16xf32>
    %406 = arith.mulf %405, %404 : vector<16x16xf32>
    %407 = math.tanh %406 : vector<16x16xf32>
    %cst_176 = arith.constant 1.000000e+00 : f32
    %408 = vector.broadcast %cst_176 : f32 to vector<16x16xf32>
    %409 = arith.addf %407, %408 : vector<16x16xf32>
    %cst_177 = arith.constant 5.000000e-01 : f32
    %410 = vector.broadcast %cst_177 : f32 to vector<16x16xf32>
    %411 = arith.mulf %410, %409 : vector<16x16xf32>
    %412 = arith.mulf %401, %304 : vector<16x16xf32>
    %413 = arith.mulf %393, %403 : vector<16x16xf32>
    %414 = arith.addf %412, %413 : vector<16x16xf32>
    %415 = math.tanh %414 : vector<16x16xf32>
    %416 = arith.mulf %411, %415 : vector<16x16xf32>
    %417 = vector.extract_strided_slice %416 {offsets = [15, 0], sizes = [1, 16], strides = [1, 1]} : vector<16x16xf32> to vector<1x16xf32>
    %418 = tpu.concatenate %307, %417 in 0 : vector<1x16xf32>, vector<1x16xf32> -> vector<2x16xf32>
    %cst_178 = arith.constant dense<0.000000e+00> : vector<2x32xf32>
    %419 = tpu.matmul %418, %27, %cst_178 {dimension_numbers = #tpu.dot_dimension_numbers<[1], [0], [0], [1], [0, 0, 1, 1], [], []>} : vector<2x16xf32>, vector<16x32xf32>, vector<2x32xf32> -> vector<2x32xf32>
    %420 = vector.broadcast %29 : vector<1x32xf32> to vector<2x32xf32>
    %421 = arith.addf %419, %420 : vector<2x32xf32>
    %cst_179 = arith.constant 0.000000e+00 : f32
    %422 = vector.broadcast %cst_179 : f32 to vector<2x32xf32>
    %423 = arith.maximumf %421, %422 : vector<2x32xf32>
    %424 = vector.broadcast %31 : vector<1x32xf32> to vector<2x32xf32>
    %425 = arith.mulf %423, %424 : vector<2x32xf32>
    %cst_180 = arith.constant dense<0.000000e+00> : vector<2xf32>
    %426 = vector.multi_reduction <add>, %425, %cst_180 [1] : vector<2x32xf32> to vector<2xf32>
    %427 = vector.shape_cast %426 : vector<2xf32> to vector<2x1xf32>
    %428 = vector.broadcast %33 : vector<1x1xf32> to vector<2x1xf32>
    %429 = arith.addf %427, %428 : vector<2x1xf32>
    %c0_181 = arith.constant 0 : index
    %c0_182 = arith.constant 0 : index
    %c0_183 = arith.constant 0 : index
    %430 = vector.load %arg19[%c0_181, %c0_182, %c0_183] : memref<1x2x1xf32, #tpu.memory_space<vmem>>, vector<1x2x1xf32>
    %431 = vector.shape_cast %430 : vector<1x2x1xf32> to vector<2x1xf32>
    %432 = vector.shape_cast %429 : vector<2x1xf32> to vector<1x2x1xf32>
    tpu.vector_store %arg19[%c0_181, %c0_182, %c0_183], %432 {strides = array<i32>} : memref<1x2x1xf32, #tpu.memory_space<vmem>>, vector<1x2x1xf32>,
    %c0_184 = arith.constant 0 : index
    %c0_185 = arith.constant 0 : index
    %c0_186 = arith.constant 0 : index
    %c0_187 = arith.constant 0 : index
    %433 = vector.load %arg20[%c0_184, %c0_185, %c0_186, %c0_187] : memref<1x3x16x16xf32, #tpu.memory_space<vmem>>, vector<1x1x16x16xf32>
    %434 = vector.shape_cast %433 : vector<1x1x16x16xf32> to vector<16x16xf32>
    %435 = vector.shape_cast %344 : vector<16x16xf32> to vector<1x1x16x16xf32>
    tpu.vector_store %arg20[%c0_184, %c0_185, %c0_186, %c0_187], %435 {strides = array<i32>} : memref<1x3x16x16xf32, #tpu.memory_space<vmem>>, vector<1x1x16x16xf32>,
    %c0_188 = arith.constant 0 : index
    %c0_189 = arith.constant 0 : index
    %c0_190 = arith.constant 0 : index
    %c0_191 = arith.constant 0 : index
    %436 = vector.load %arg21[%c0_188, %c0_189, %c0_190, %c0_191] : memref<1x3x16x16xf32, #tpu.memory_space<vmem>>, vector<1x1x16x16xf32>
    %437 = vector.shape_cast %436 : vector<1x1x16x16xf32> to vector<16x16xf32>
    %438 = vector.shape_cast %342 : vector<16x16xf32> to vector<1x1x16x16xf32>
    tpu.vector_store %arg21[%c0_188, %c0_189, %c0_190, %c0_191], %438 {strides = array<i32>} : memref<1x3x16x16xf32, #tpu.memory_space<vmem>>, vector<1x1x16x16xf32>,
    %c0_192 = arith.constant 0 : index
    %c1_193 = arith.constant 1 : index
    %c0_194 = arith.constant 0 : index
    %c0_195 = arith.constant 0 : index
    %439 = vector.load %arg20[%c0_192, %c1_193, %c0_194, %c0_195] : memref<1x3x16x16xf32, #tpu.memory_space<vmem>>, vector<1x1x16x16xf32>
    %440 = vector.shape_cast %439 : vector<1x1x16x16xf32> to vector<16x16xf32>
    %441 = vector.shape_cast %380 : vector<16x16xf32> to vector<1x1x16x16xf32>
    tpu.vector_store %arg20[%c0_192, %c1_193, %c0_194, %c0_195], %441 {strides = array<i32>} : memref<1x3x16x16xf32, #tpu.memory_space<vmem>>, vector<1x1x16x16xf32>,
    %c0_196 = arith.constant 0 : index
    %c1_197 = arith.constant 1 : index
    %c0_198 = arith.constant 0 : index
    %c0_199 = arith.constant 0 : index
    %442 = vector.load %arg21[%c0_196, %c1_197, %c0_198, %c0_199] : memref<1x3x16x16xf32, #tpu.memory_space<vmem>>, vector<1x1x16x16xf32>
    %443 = vector.shape_cast %442 : vector<1x1x16x16xf32> to vector<16x16xf32>
    %444 = vector.shape_cast %378 : vector<16x16xf32> to vector<1x1x16x16xf32>
    tpu.vector_store %arg21[%c0_196, %c1_197, %c0_198, %c0_199], %444 {strides = array<i32>} : memref<1x3x16x16xf32, #tpu.memory_space<vmem>>, vector<1x1x16x16xf32>,
    %c0_200 = arith.constant 0 : index
    %c2_201 = arith.constant 2 : index
    %c0_202 = arith.constant 0 : index
    %c0_203 = arith.constant 0 : index
    %445 = vector.load %arg20[%c0_200, %c2_201, %c0_202, %c0_203] : memref<1x3x16x16xf32, #tpu.memory_space<vmem>>, vector<1x1x16x16xf32>
    %446 = vector.shape_cast %445 : vector<1x1x16x16xf32> to vector<16x16xf32>
    %447 = vector.shape_cast %416 : vector<16x16xf32> to vector<1x1x16x16xf32>
    tpu.vector_store %arg20[%c0_200, %c2_201, %c0_202, %c0_203], %447 {strides = array<i32>} : memref<1x3x16x16xf32, #tpu.memory_space<vmem>>, vector<1x1x16x16xf32>,
    %c0_204 = arith.constant 0 : index
    %c2_205 = arith.constant 2 : index
    %c0_206 = arith.constant 0 : index
    %c0_207 = arith.constant 0 : index
    %448 = vector.load %arg21[%c0_204, %c2_205, %c0_206, %c0_207] : memref<1x3x16x16xf32, #tpu.memory_space<vmem>>, vector<1x1x16x16xf32>
    %449 = vector.shape_cast %448 : vector<1x1x16x16xf32> to vector<16x16xf32>
    %450 = vector.shape_cast %414 : vector<16x16xf32> to vector<1x1x16x16xf32>
    tpu.vector_store %arg21[%c0_204, %c2_205, %c0_206, %c0_207], %450 {strides = array<i32>} : memref<1x3x16x16xf32, #tpu.memory_space<vmem>>, vector<1x1x16x16xf32>,
    return
  }
  func.func @transform_0(%arg0: i32) -> (i32, i32, i32, i32) {
    %c0_i32 = arith.constant 0 : i32
    %c0_i32_0 = arith.constant 0 : i32
    %c0_i32_1 = arith.constant 0 : i32
    %c0_i32_2 = arith.constant 0 : i32
    %c0_i32_3 = arith.constant 0 : i32
    return %c0_i32, %c0_i32_0, %c0_i32_1, %c0_i32_2 : i32, i32, i32, i32
  }
  func.func @transform_1(%arg0: i32) -> (i32, i32, i32) {
    %c0_i32 = arith.constant 0 : i32
    %c0_i32_0 = arith.constant 0 : i32
    %c0_i32_1 = arith.constant 0 : i32
    return %arg0, %c0_i32, %c0_i32_0 : i32, i32, i32
  }
  func.func @transform_2(%arg0: i32) -> (i32, i32, i32) {
    %c0_i32 = arith.constant 0 : i32
    %c0_i32_0 = arith.constant 0 : i32
    %c0_i32_1 = arith.constant 0 : i32
    return %arg0, %c0_i32, %c0_i32_0 : i32, i32, i32
  }
  func.func @transform_3(%arg0: i32) -> (i32, i32, i32) {
    %c0_i32 = arith.constant 0 : i32
    %c0_i32_0 = arith.constant 0 : i32
    %c0_i32_1 = arith.constant 0 : i32
    return %arg0, %c0_i32, %c0_i32_0 : i32, i32, i32
  }
  func.func @transform_4(%arg0: i32) -> (i32, i32, i32) {
    %c0_i32 = arith.constant 0 : i32
    %c0_i32_0 = arith.constant 0 : i32
    %c0_i32_1 = arith.constant 0 : i32
    return %arg0, %c0_i32, %c0_i32_0 : i32, i32, i32
  }
  func.func @transform_5(%arg0: i32) -> (i32, i32, i32) {
    %c0_i32 = arith.constant 0 : i32
    %c0_i32_0 = arith.constant 0 : i32
    %c0_i32_1 = arith.constant 0 : i32
    return %arg0, %c0_i32, %c0_i32_0 : i32, i32, i32
  }
  func.func @transform_6(%arg0: i32) -> (i32, i32, i32) {
    %c0_i32 = arith.constant 0 : i32
    %c0_i32_0 = arith.constant 0 : i32
    %c0_i32_1 = arith.constant 0 : i32
    return %arg0, %c0_i32, %c0_i32_0 : i32, i32, i32
  }
  func.func @transform_7(%arg0: i32) -> (i32, i32, i32) {
    %c0_i32 = arith.constant 0 : i32
    %c0_i32_0 = arith.constant 0 : i32
    %c0_i32_1 = arith.constant 0 : i32
    return %arg0, %c0_i32, %c0_i32_0 : i32, i32, i32
  }
  func.func @transform_8(%arg0: i32) -> (i32, i32, i32) {
    %c0_i32 = arith.constant 0 : i32
    %c0_i32_0 = arith.constant 0 : i32
    %c0_i32_1 = arith.constant 0 : i32
    return %arg0, %c0_i32, %c0_i32_0 : i32, i32, i32
  }
  func.func @transform_9(%arg0: i32) -> (i32, i32, i32) {
    %c0_i32 = arith.constant 0 : i32
    %c0_i32_0 = arith.constant 0 : i32
    %c0_i32_1 = arith.constant 0 : i32
    return %arg0, %c0_i32, %c0_i32_0 : i32, i32, i32
  }
  func.func @transform_10(%arg0: i32) -> (i32, i32, i32) {
    %c0_i32 = arith.constant 0 : i32
    %c0_i32_0 = arith.constant 0 : i32
    %c0_i32_1 = arith.constant 0 : i32
    return %arg0, %c0_i32, %c0_i32_0 : i32, i32, i32
  }
  func.func @transform_11(%arg0: i32) -> (i32, i32, i32) {
    %c0_i32 = arith.constant 0 : i32
    %c0_i32_0 = arith.constant 0 : i32
    %c0_i32_1 = arith.constant 0 : i32
    return %arg0, %c0_i32, %c0_i32_0 : i32, i32, i32
  }
  func.func @transform_12(%arg0: i32) -> (i32, i32, i32) {
    %c0_i32 = arith.constant 0 : i32
    %c0_i32_0 = arith.constant 0 : i32
    %c0_i32_1 = arith.constant 0 : i32
    return %arg0, %c0_i32, %c0_i32_0 : i32, i32, i32
  }
  func.func @transform_13(%arg0: i32) -> (i32, i32, i32) {
    %c0_i32 = arith.constant 0 : i32
    %c0_i32_0 = arith.constant 0 : i32
    %c0_i32_1 = arith.constant 0 : i32
    return %arg0, %c0_i32, %c0_i32_0 : i32, i32, i32
  }
  func.func @transform_14(%arg0: i32) -> (i32, i32, i32) {
    %c0_i32 = arith.constant 0 : i32
    %c0_i32_0 = arith.constant 0 : i32
    %c0_i32_1 = arith.constant 0 : i32
    return %arg0, %c0_i32, %c0_i32_0 : i32, i32, i32
  }
  func.func @transform_15(%arg0: i32) -> (i32, i32, i32) {
    %c0_i32 = arith.constant 0 : i32
    %c0_i32_0 = arith.constant 0 : i32
    %c0_i32_1 = arith.constant 0 : i32
    return %arg0, %c0_i32, %c0_i32_0 : i32, i32, i32
  }
  func.func @transform_16(%arg0: i32) -> (i32, i32, i32) {
    %c0_i32 = arith.constant 0 : i32
    %c0_i32_0 = arith.constant 0 : i32
    %c0_i32_1 = arith.constant 0 : i32
    return %arg0, %c0_i32, %c0_i32_0 : i32, i32, i32
  }
  func.func @transform_17(%arg0: i32) -> (i32, i32, i32) {
    %c0_i32 = arith.constant 0 : i32
    %c0_i32_0 = arith.constant 0 : i32
    %c0_i32_1 = arith.constant 0 : i32
    return %arg0, %c0_i32, %c0_i32_0 : i32, i32, i32
  }
  func.func @transform_18(%arg0: i32) -> (i32, i32, i32) {
    %c0_i32 = arith.constant 0 : i32
    %c0_i32_0 = arith.constant 0 : i32
    %c0_i32_1 = arith.constant 0 : i32
    return %arg0, %c0_i32, %c0_i32_0 : i32, i32, i32
  }
  func.func @transform_19(%arg0: i32) -> (i32, i32, i32, i32) {
    %c0_i32 = arith.constant 0 : i32
    %c0_i32_0 = arith.constant 0 : i32
    %c0_i32_1 = arith.constant 0 : i32
    %c0_i32_2 = arith.constant 0 : i32
    return %arg0, %c0_i32, %c0_i32_0, %c0_i32_1 : i32, i32, i32, i32
  }
  func.func @transform_20(%arg0: i32) -> (i32, i32, i32, i32) {
    %c0_i32 = arith.constant 0 : i32
    %c0_i32_0 = arith.constant 0 : i32
    %c0_i32_1 = arith.constant 0 : i32
    %c0_i32_2 = arith.constant 0 : i32
    return %arg0, %c0_i32, %c0_i32_0, %c0_i32_1 : i32, i32, i32, i32
  }
}

</mosaic_0001>

<llo_original>
// kernel: super_model_forward.1
$region0: #{super_model_forward.1}
  #allocation0 [shape = 'u32[]', space=smem, size = 0x4, offset = 0x4, fixed_abs, tag = 'smem constant byte address 0x4 - core index']
  #allocation1 [shape = 'u32[72,128]{1,0:T(1,128)}', space=vmem, size = 0x9000, scoped, tag = 'internal scratch']
  %s0 = inlined_call_operand.vmem [shape: bf16[2,4,96,351], index: 0, kind: input, shape index: {}]
  %s1 = inlined_call_operand.vmem [shape: bf16[3,24,96], index: 1, kind: input, shape index: {}]
  %s2 = inlined_call_operand.vmem [shape: f32[3,8,1], index: 2, kind: input, shape index: {}]
  %s3 = inlined_call_operand.vmem [shape: bf16[3,48,8], index: 3, kind: input, shape index: {}]
  %s4 = inlined_call_operand.vmem [shape: f32[3,16,1], index: 4, kind: input, shape index: {}]
  %s5 = inlined_call_operand.vmem [shape: bf16[3,350,64], index: 5, kind: input, shape index: {}]
  %s6 = inlined_call_operand.vmem [shape: f32[3,16,64], index: 6, kind: input, shape index: {}]
  %s7 = inlined_call_operand.vmem [shape: f32[3,1,64], index: 7, kind: input, shape index: {}]
  %s8 = inlined_call_operand.vmem [shape: f32[3,16,64], index: 8, kind: input, shape index: {}]
  %s9 = inlined_call_operand.vmem [shape: f32[3,16,64], index: 9, kind: input, shape index: {}]
  %s10 = inlined_call_operand.vmem [shape: f32[3,1,64], index: 10, kind: input, shape index: {}]
  %s11 = inlined_call_operand.vmem [shape: f32[3,16,64], index: 11, kind: input, shape index: {}]
  %s12 = inlined_call_operand.vmem [shape: f32[3,16,64], index: 12, kind: input, shape index: {}]
  %s13 = inlined_call_operand.vmem [shape: f32[3,1,64], index: 13, kind: input, shape index: {}]
  %s14 = inlined_call_operand.vmem [shape: f32[3,16,32], index: 14, kind: input, shape index: {}]
  %s15 = inlined_call_operand.vmem [shape: f32[3,1,32], index: 15, kind: input, shape index: {}]
  %s16 = inlined_call_operand.vmem [shape: f32[3,1,32], index: 16, kind: input, shape index: {}]
  %s17 = inlined_call_operand.vmem [shape: f32[3,1,1], index: 17, kind: input, shape index: {}]
  %s18 = inlined_call_operand.vmem [shape: f32[3,2,1], index: 18, kind: output, shape index: {0}]
  %s19 = inlined_call_operand.hbm [shape: f32[3,3,16,16], index: 19, kind: output, shape index: {1}]
  %s20 = inlined_call_operand.hbm [shape: f32[3,3,16,16], index: 20, kind: output, shape index: {2}]
  %21 = xla_tuple %s18, %s19, %s20
  %s22 = sld [smem:[#allocation0]]
  $region121: #{super_model_forward.1} parent=0
    _
  %s24 = ssub.s32 1, %s22
  %s25 = scalar_select 0, %s24, %s22
  $region1: #{super_model_forward.1} parent=0
    #allocation2 [shape = 'u8[49152]{0}', space=vmem, size = 0xc000, scoped, tag = 'output window, operand 1']
    #allocation3 [shape = 's32[2]{0}', space=sflag, size = 0x8, scoped, tag = 'scoped memory for super_model_forward.1']
    #allocation4 [shape = 'u8[49152]{0}', space=vmem, size = 0xc000, scoped, tag = 'output window, operand 2']
    #allocation5 [shape = 's32[2]{0}', space=sflag, size = 0x8, scoped, tag = 'scoped memory for super_model_forward.1']
    %26 = vsyncpa [#allocation3], 0
    %s27 = scalar_lea.sflag [#allocation3], 1
    %28 = vsyncpa %s27, 0
    %29 = vsyncpa [#allocation5], 0
    %s30 = scalar_lea.sflag [#allocation5], 1
    %31 = vsyncpa %s30, 0
    loop: start=0, step=1, limit=5
    $region2: #{super_model_forward.1} parent=1 // loop_pre_header
      _
    $region3: #{super_model_forward.1} parent=1 // loop_header
      %s33 = sphi 0, %s37
      %p34 = scmp.ge.s32.totalorder %s33, 5
      %s41 = sphi 0, %s41
      %s43 = sphi 0, %s41
      %s44 = sphi 0, %s43
      %s58 = sphi 0, %s44
      %s64 = sphi 0, %s66
      %s67 = sphi 0, %s64
      %s68 = sphi 0, %s67
      %s84 = sphi 0, %s68
      %s90 = sphi 0, %s92
      %s93 = sphi 0, %s90
      %s94 = sphi 0, %s93
      %s110 = sphi 0, %s94
      %s116 = sphi 0, %s118
      %s119 = sphi 0, %s116
      %s120 = sphi 0, %s119
      %s136 = sphi 0, %s120
      %s142 = sphi 0, %s144
      %s145 = sphi 0, %s142
      %s146 = sphi 0, %s145
      %s162 = sphi 0, %s146
      %s168 = sphi 0, %s170
      %s171 = sphi 0, %s168
      %s172 = sphi 0, %s171
      %s188 = sphi 0, %s172
      %s194 = sphi 0, %s196
      %s197 = sphi 0, %s194
      %s198 = sphi 0, %s197
      %s214 = sphi 0, %s198
      %s220 = sphi 0, %s222
      %s223 = sphi 0, %s220
      %s224 = sphi 0, %s223
      %s240 = sphi 0, %s224
      %s246 = sphi 0, %s248
      %s249 = sphi 0, %s246
      %s250 = sphi 0, %s249
      %s266 = sphi 0, %s250
      %s272 = sphi 0, %s274
      %s275 = sphi 0, %s272
      %s276 = sphi 0, %s275
      %s292 = sphi 0, %s276
      %s298 = sphi 0, %s300
      %s301 = sphi 0, %s298
      %s302 = sphi 0, %s301
      %s318 = sphi 0, %s302
      %s324 = sphi 0, %s326
      %s327 = sphi 0, %s324
      %s328 = sphi 0, %s327
      %s344 = sphi 0, %s328
      %s350 = sphi 0, %s352
      %s353 = sphi 0, %s350
      %s354 = sphi 0, %s353
      %s370 = sphi 0, %s354
      %s376 = sphi 0, %s378
      %s379 = sphi 0, %s376
      %s380 = sphi 0, %s379
      %s396 = sphi 0, %s380
      %s402 = sphi 0, %s404
      %s405 = sphi 0, %s402
      %s406 = sphi 0, %s405
      %s422 = sphi 0, %s406
      %s428 = sphi 0, %s430
      %s431 = sphi 0, %s428
      %s432 = sphi 0, %s431
      %s448 = sphi 0, %s432
      %s454 = sphi 0, %s456
      %s457 = sphi 0, %s454
      %s458 = sphi 0, %s457
      %s474 = sphi 0, %s458
      %s480 = sphi 0, %s482
      %s483 = sphi 0, %s480
      %s484 = sphi 0, %s483
      %s500 = sphi 0, %s484
      %s506 = sphi 0, %s508
      %s509 = sphi 0, %s506
      %s510 = sphi 0, %s509
      %s526 = sphi 0, %s510
      %s532 = sphi 0, %s534
      %s535 = sphi 0, %s532
      %s536 = sphi 0, %s535
      %s552 = sphi 0, %s536
      %s558 = sphi 0, %s560
      %s561 = sphi 0, %s558
      %s562 = sphi 0, %s561
      %s578 = sphi 0, %s562
    $region4: #{super_model_forward.1} parent=1 // loop_header_branch
      %36 = sbr.rel (%p34) target = $region8
    $region5: #{super_model_forward.1} parent=1 // loop_body
      %s38 = ssub.s32 %s33, 1
      %s39 = ssub.s32 %s33, 2
      %s40 = sadd.s32 %s33, 1
      %s42 = sadd.s32 %s41, 1
      %p45 = scmp.eq.s32.totalorder %s33, 2
      %p46 = scmp.ne.s32.totalorder %s41, %s43
      %p47 = scmp.eq.s32.totalorder %s33, 0
      %p48 = por %p46, %p47
      %p49 = scmp.ne.s32.totalorder %s41, %s43
      %p50 = scmp.eq.s32.totalorder %s38, 2
      %p51 = por %p49, %p50
      %p52 = scmp.ne.s32.totalorder %s43, %s44
      %p53 = scmp.eq.s32.totalorder %s38, 0
      %p54 = por %p52, %p53
      %p55 = scmp.ne.s32.totalorder %s43, %s44
      %p56 = scmp.eq.s32.totalorder %s39, 2
      %p57 = por %p55, %p56
      %p59 = scmp.ne.s32.totalorder %s44, %s58
      %p60 = scmp.eq.s32.totalorder %s39, 0
      %p61 = por %p59, %p60
      %s62 = ssub.s32 %s33, %s40
      %p63 = scmp.eq.s32.totalorder %s62, 0
      %s65 = sadd.s32 %s64, 1
      %s66 = scalar_select %p63, %s64, %s65
      %p69 = pneg %p63
      %p70 = scmp.eq.s32.totalorder %s33, 2
      %p71 = por %p69, %p70
      %p72 = scmp.ne.s32.totalorder %s64, %s67
      %p73 = scmp.eq.s32.totalorder %s33, 0
      %p74 = por %p72, %p73
      %p75 = scmp.ne.s32.totalorder %s64, %s67
      %p76 = scmp.eq.s32.totalorder %s38, 2
      %p77 = por %p75, %p76
      %p78 = scmp.ne.s32.totalorder %s67, %s68
      %p79 = scmp.eq.s32.totalorder %s38, 0
      %p80 = por %p78, %p79
      %p81 = scmp.ne.s32.totalorder %s67, %s68
      %p82 = scmp.eq.s32.totalorder %s39, 2
      %p83 = por %p81, %p82
      %p85 = scmp.ne.s32.totalorder %s68, %s84
      %p86 = scmp.eq.s32.totalorder %s39, 0
      %p87 = por %p85, %p86
      %s88 = ssub.s32 %s33, %s40
      %p89 = scmp.eq.s32.totalorder %s88, 0
      %s91 = sadd.s32 %s90, 1
      %s92 = scalar_select %p89, %s90, %s91
      %p95 = pneg %p89
      %p96 = scmp.eq.s32.totalorder %s33, 2
      %p97 = por %p95, %p96
      %p98 = scmp.ne.s32.totalorder %s90, %s93
      %p99 = scmp.eq.s32.totalorder %s33, 0
      %p100 = por %p98, %p99
      %p101 = scmp.ne.s32.totalorder %s90, %s93
      %p102 = scmp.eq.s32.totalorder %s38, 2
      %p103 = por %p101, %p102
      %p104 = scmp.ne.s32.totalorder %s93, %s94
      %p105 = scmp.eq.s32.totalorder %s38, 0
      %p106 = por %p104, %p105
      %p107 = scmp.ne.s32.totalorder %s93, %s94
      %p108 = scmp.eq.s32.totalorder %s39, 2
      %p109 = por %p107, %p108
      %p111 = scmp.ne.s32.totalorder %s94, %s110
      %p112 = scmp.eq.s32.totalorder %s39, 0
      %p113 = por %p111, %p112
      %s114 = ssub.s32 %s33, %s40
      %p115 = scmp.eq.s32.totalorder %s114, 0
      %s117 = sadd.s32 %s116, 1
      %s118 = scalar_select %p115, %s116, %s117
      %p121 = pneg %p115
      %p122 = scmp.eq.s32.totalorder %s33, 2
      %p123 = por %p121, %p122
      %p124 = scmp.ne.s32.totalorder %s116, %s119
      %p125 = scmp.eq.s32.totalorder %s33, 0
      %p126 = por %p124, %p125
      %p127 = scmp.ne.s32.totalorder %s116, %s119
      %p128 = scmp.eq.s32.totalorder %s38, 2
      %p129 = por %p127, %p128
      %p130 = scmp.ne.s32.totalorder %s119, %s120
      %p131 = scmp.eq.s32.totalorder %s38, 0
      %p132 = por %p130, %p131
      %p133 = scmp.ne.s32.totalorder %s119, %s120
      %p134 = scmp.eq.s32.totalorder %s39, 2
      %p135 = por %p133, %p134
      %p137 = scmp.ne.s32.totalorder %s120, %s136
      %p138 = scmp.eq.s32.totalorder %s39, 0
      %p139 = por %p137, %p138
      %s140 = ssub.s32 %s33, %s40
      %p141 = scmp.eq.s32.totalorder %s140, 0
      %s143 = sadd.s32 %s142, 1
      %s144 = scalar_select %p141, %s142, %s143
      %p147 = pneg %p141
      %p148 = scmp.eq.s32.totalorder %s33, 2
      %p149 = por %p147, %p148
      %p150 = scmp.ne.s32.totalorder %s142, %s145
      %p151 = scmp.eq.s32.totalorder %s33, 0
      %p152 = por %p150, %p151
      %p153 = scmp.ne.s32.totalorder %s142, %s145
      %p154 = scmp.eq.s32.totalorder %s38, 2
      %p155 = por %p153, %p154
      %p156 = scmp.ne.s32.totalorder %s145, %s146
      %p157 = scmp.eq.s32.totalorder %s38, 0
      %p158 = por %p156, %p157
      %p159 = scmp.ne.s32.totalorder %s145, %s146
      %p160 = scmp.eq.s32.totalorder %s39, 2
      %p161 = por %p159, %p160
      %p163 = scmp.ne.s32.totalorder %s146, %s162
      %p164 = scmp.eq.s32.totalorder %s39, 0
      %p165 = por %p163, %p164
      %s166 = ssub.s32 %s33, %s40
      %p167 = scmp.eq.s32.totalorder %s166, 0
      %s169 = sadd.s32 %s168, 1
      %s170 = scalar_select %p167, %s168, %s169
      %p173 = pneg %p167
      %p174 = scmp.eq.s32.totalorder %s33, 2
      %p175 = por %p173, %p174
      %p176 = scmp.ne.s32.totalorder %s168, %s171
      %p177 = scmp.eq.s32.totalorder %s33, 0
      %p178 = por %p176, %p177
      %p179 = scmp.ne.s32.totalorder %s168, %s171
      %p180 = scmp.eq.s32.totalorder %s38, 2
      %p181 = por %p179, %p180
      %p182 = scmp.ne.s32.totalorder %s171, %s172
      %p183 = scmp.eq.s32.totalorder %s38, 0
      %p184 = por %p182, %p183
      %p185 = scmp.ne.s32.totalorder %s171, %s172
      %p186 = scmp.eq.s32.totalorder %s39, 2
      %p187 = por %p185, %p186
      %p189 = scmp.ne.s32.totalorder %s172, %s188
      %p190 = scmp.eq.s32.totalorder %s39, 0
      %p191 = por %p189, %p190
      %s192 = ssub.s32 %s33, %s40
      %p193 = scmp.eq.s32.totalorder %s192, 0
      %s195 = sadd.s32 %s194, 1
      %s196 = scalar_select %p193, %s194, %s195
      %p199 = pneg %p193
      %p200 = scmp.eq.s32.totalorder %s33, 2
      %p201 = por %p199, %p200
      %p202 = scmp.ne.s32.totalorder %s194, %s197
      %p203 = scmp.eq.s32.totalorder %s33, 0
      %p204 = por %p202, %p203
      %p205 = scmp.ne.s32.totalorder %s194, %s197
      %p206 = scmp.eq.s32.totalorder %s38, 2
      %p207 = por %p205, %p206
      %p208 = scmp.ne.s32.totalorder %s197, %s198
      %p209 = scmp.eq.s32.totalorder %s38, 0
      %p210 = por %p208, %p209
      %p211 = scmp.ne.s32.totalorder %s197, %s198
      %p212 = scmp.eq.s32.totalorder %s39, 2
      %p213 = por %p211, %p212
      %p215 = scmp.ne.s32.totalorder %s198, %s214
      %p216 = scmp.eq.s32.totalorder %s39, 0
      %p217 = por %p215, %p216
      %s218 = ssub.s32 %s33, %s40
      %p219 = scmp.eq.s32.totalorder %s218, 0
      %s221 = sadd.s32 %s220, 1
      %s222 = scalar_select %p219, %s220, %s221
      %p225 = pneg %p219
      %p226 = scmp.eq.s32.totalorder %s33, 2
      %p227 = por %p225, %p226
      %p228 = scmp.ne.s32.totalorder %s220, %s223
      %p229 = scmp.eq.s32.totalorder %s33, 0
      %p230 = por %p228, %p229
      %p231 = scmp.ne.s32.totalorder %s220, %s223
      %p232 = scmp.eq.s32.totalorder %s38, 2
      %p233 = por %p231, %p232
      %p234 = scmp.ne.s32.totalorder %s223, %s224
      %p235 = scmp.eq.s32.totalorder %s38, 0
      %p236 = por %p234, %p235
      %p237 = scmp.ne.s32.totalorder %s223, %s224
      %p238 = scmp.eq.s32.totalorder %s39, 2
      %p239 = por %p237, %p238
      %p241 = scmp.ne.s32.totalorder %s224, %s240
      %p242 = scmp.eq.s32.totalorder %s39, 0
      %p243 = por %p241, %p242
      %s244 = ssub.s32 %s33, %s40
      %p245 = scmp.eq.s32.totalorder %s244, 0
      %s247 = sadd.s32 %s246, 1
      %s248 = scalar_select %p245, %s246, %s247
      %p251 = pneg %p245
      %p252 = scmp.eq.s32.totalorder %s33, 2
      %p253 = por %p251, %p252
      %p254 = scmp.ne.s32.totalorder %s246, %s249
      %p255 = scmp.eq.s32.totalorder %s33, 0
      %p256 = por %p254, %p255
      %p257 = scmp.ne.s32.totalorder %s246, %s249
      %p258 = scmp.eq.s32.totalorder %s38, 2
      %p259 = por %p257, %p258
      %p260 = scmp.ne.s32.totalorder %s249, %s250
      %p261 = scmp.eq.s32.totalorder %s38, 0
      %p262 = por %p260, %p261
      %p263 = scmp.ne.s32.totalorder %s249, %s250
      %p264 = scmp.eq.s32.totalorder %s39, 2
      %p265 = por %p263, %p264
      %p267 = scmp.ne.s32.totalorder %s250, %s266
      %p268 = scmp.eq.s32.totalorder %s39, 0
      %p269 = por %p267, %p268
      %s270 = ssub.s32 %s33, %s40
      %p271 = scmp.eq.s32.totalorder %s270, 0
      %s273 = sadd.s32 %s272, 1
      %s274 = scalar_select %p271, %s272, %s273
      %p277 = pneg %p271
      %p278 = scmp.eq.s32.totalorder %s33, 2
      %p279 = por %p277, %p278
      %p280 = scmp.ne.s32.totalorder %s272, %s275
      %p281 = scmp.eq.s32.totalorder %s33, 0
      %p282 = por %p280, %p281
      %p283 = scmp.ne.s32.totalorder %s272, %s275
      %p284 = scmp.eq.s32.totalorder %s38, 2
      %p285 = por %p283, %p284
      %p286 = scmp.ne.s32.totalorder %s275, %s276
      %p287 = scmp.eq.s32.totalorder %s38, 0
      %p288 = por %p286, %p287
      %p289 = scmp.ne.s32.totalorder %s275, %s276
      %p290 = scmp.eq.s32.totalorder %s39, 2
      %p291 = por %p289, %p290
      %p293 = scmp.ne.s32.totalorder %s276, %s292
      %p294 = scmp.eq.s32.totalorder %s39, 0
      %p295 = por %p293, %p294
      %s296 = ssub.s32 %s33, %s40
      %p297 = scmp.eq.s32.totalorder %s296, 0
      %s299 = sadd.s32 %s298, 1
      %s300 = scalar_select %p297, %s298, %s299
      %p303 = pneg %p297
      %p304 = scmp.eq.s32.totalorder %s33, 2
      %p305 = por %p303, %p304
      %p306 = scmp.ne.s32.totalorder %s298, %s301
      %p307 = scmp.eq.s32.totalorder %s33, 0
      %p308 = por %p306, %p307
      %p309 = scmp.ne.s32.totalorder %s298, %s301
      %p310 = scmp.eq.s32.totalorder %s38, 2
      %p311 = por %p309, %p310
      %p312 = scmp.ne.s32.totalorder %s301, %s302
      %p313 = scmp.eq.s32.totalorder %s38, 0
      %p314 = por %p312, %p313
      %p315 = scmp.ne.s32.totalorder %s301, %s302
      %p316 = scmp.eq.s32.totalorder %s39, 2
      %p317 = por %p315, %p316
      %p319 = scmp.ne.s32.totalorder %s302, %s318
      %p320 = scmp.eq.s32.totalorder %s39, 0
      %p321 = por %p319, %p320
      %s322 = ssub.s32 %s33, %s40
      %p323 = scmp.eq.s32.totalorder %s322, 0
      %s325 = sadd.s32 %s324, 1
      %s326 = scalar_select %p323, %s324, %s325
      %p329 = pneg %p323
      %p330 = scmp.eq.s32.totalorder %s33, 2
      %p331 = por %p329, %p330
      %p332 = scmp.ne.s32.totalorder %s324, %s327
      %p333 = scmp.eq.s32.totalorder %s33, 0
      %p334 = por %p332, %p333
      %p335 = scmp.ne.s32.totalorder %s324, %s327
      %p336 = scmp.eq.s32.totalorder %s38, 2
      %p337 = por %p335, %p336
      %p338 = scmp.ne.s32.totalorder %s327, %s328
      %p339 = scmp.eq.s32.totalorder %s38, 0
      %p340 = por %p338, %p339
      %p341 = scmp.ne.s32.totalorder %s327, %s328
      %p342 = scmp.eq.s32.totalorder %s39, 2
      %p343 = por %p341, %p342
      %p345 = scmp.ne.s32.totalorder %s328, %s344
      %p346 = scmp.eq.s32.totalorder %s39, 0
      %p347 = por %p345, %p346
      %s348 = ssub.s32 %s33, %s40
      %p349 = scmp.eq.s32.totalorder %s348, 0
      %s351 = sadd.s32 %s350, 1
      %s352 = scalar_select %p349, %s350, %s351
      %p355 = pneg %p349
      %p356 = scmp.eq.s32.totalorder %s33, 2
      %p357 = por %p355, %p356
      %p358 = scmp.ne.s32.totalorder %s350, %s353
      %p359 = scmp.eq.s32.totalorder %s33, 0
      %p360 = por %p358, %p359
      %p361 = scmp.ne.s32.totalorder %s350, %s353
      %p362 = scmp.eq.s32.totalorder %s38, 2
      %p363 = por %p361, %p362
      %p364 = scmp.ne.s32.totalorder %s353, %s354
      %p365 = scmp.eq.s32.totalorder %s38, 0
      %p366 = por %p364, %p365
      %p367 = scmp.ne.s32.totalorder %s353, %s354
      %p368 = scmp.eq.s32.totalorder %s39, 2
      %p369 = por %p367, %p368
      %p371 = scmp.ne.s32.totalorder %s354, %s370
      %p372 = scmp.eq.s32.totalorder %s39, 0
      %p373 = por %p371, %p372
      %s374 = ssub.s32 %s33, %s40
      %p375 = scmp.eq.s32.totalorder %s374, 0
      %s377 = sadd.s32 %s376, 1
      %s378 = scalar_select %p375, %s376, %s377
      %p381 = pneg %p375
      %p382 = scmp.eq.s32.totalorder %s33, 2
      %p383 = por %p381, %p382
      %p384 = scmp.ne.s32.totalorder %s376, %s379
      %p385 = scmp.eq.s32.totalorder %s33, 0
      %p386 = por %p384, %p385
      %p387 = scmp.ne.s32.totalorder %s376, %s379
      %p388 = scmp.eq.s32.totalorder %s38, 2
      %p389 = por %p387, %p388
      %p390 = scmp.ne.s32.totalorder %s379, %s380
      %p391 = scmp.eq.s32.totalorder %s38, 0
      %p392 = por %p390, %p391
      %p393 = scmp.ne.s32.totalorder %s379, %s380
      %p394 = scmp.eq.s32.totalorder %s39, 2
      %p395 = por %p393, %p394
      %p397 = scmp.ne.s32.totalorder %s380, %s396
      %p398 = scmp.eq.s32.totalorder %s39, 0
      %p399 = por %p397, %p398
      %s400 = ssub.s32 %s33, %s40
      %p401 = scmp.eq.s32.totalorder %s400, 0
      %s403 = sadd.s32 %s402, 1
      %s404 = scalar_select %p401, %s402, %s403
      %p407 = pneg %p401
      %p408 = scmp.eq.s32.totalorder %s33, 2
      %p409 = por %p407, %p408
      %p410 = scmp.ne.s32.totalorder %s402, %s405
      %p411 = scmp.eq.s32.totalorder %s33, 0
      %p412 = por %p410, %p411
      %p413 = scmp.ne.s32.totalorder %s402, %s405
      %p414 = scmp.eq.s32.totalorder %s38, 2
      %p415 = por %p413, %p414
      %p416 = scmp.ne.s32.totalorder %s405, %s406
      %p417 = scmp.eq.s32.totalorder %s38, 0
      %p418 = por %p416, %p417
      %p419 = scmp.ne.s32.totalorder %s405, %s406
      %p420 = scmp.eq.s32.totalorder %s39, 2
      %p421 = por %p419, %p420
      %p423 = scmp.ne.s32.totalorder %s406, %s422
      %p424 = scmp.eq.s32.totalorder %s39, 0
      %p425 = por %p423, %p424
      %s426 = ssub.s32 %s33, %s40
      %p427 = scmp.eq.s32.totalorder %s426, 0
      %s429 = sadd.s32 %s428, 1
      %s430 = scalar_select %p427, %s428, %s429
      %p433 = pneg %p427
      %p434 = scmp.eq.s32.totalorder %s33, 2
      %p435 = por %p433, %p434
      %p436 = scmp.ne.s32.totalorder %s428, %s431
      %p437 = scmp.eq.s32.totalorder %s33, 0
      %p438 = por %p436, %p437
      %p439 = scmp.ne.s32.totalorder %s428, %s431
      %p440 = scmp.eq.s32.totalorder %s38, 2
      %p441 = por %p439, %p440
      %p442 = scmp.ne.s32.totalorder %s431, %s432
      %p443 = scmp.eq.s32.totalorder %s38, 0
      %p444 = por %p442, %p443
      %p445 = scmp.ne.s32.totalorder %s431, %s432
      %p446 = scmp.eq.s32.totalorder %s39, 2
      %p447 = por %p445, %p446
      %p449 = scmp.ne.s32.totalorder %s432, %s448
      %p450 = scmp.eq.s32.totalorder %s39, 0
      %p451 = por %p449, %p450
      %s452 = ssub.s32 %s33, %s40
      %p453 = scmp.eq.s32.totalorder %s452, 0
      %s455 = sadd.s32 %s454, 1
      %s456 = scalar_select %p453, %s454, %s455
      %p459 = pneg %p453
      %p460 = scmp.eq.s32.totalorder %s33, 2
      %p461 = por %p459, %p460
      %p462 = scmp.ne.s32.totalorder %s454, %s457
      %p463 = scmp.eq.s32.totalorder %s33, 0
      %p464 = por %p462, %p463
      %p465 = scmp.ne.s32.totalorder %s454, %s457
      %p466 = scmp.eq.s32.totalorder %s38, 2
      %p467 = por %p465, %p466
      %p468 = scmp.ne.s32.totalorder %s457, %s458
      %p469 = scmp.eq.s32.totalorder %s38, 0
      %p470 = por %p468, %p469
      %p471 = scmp.ne.s32.totalorder %s457, %s458
      %p472 = scmp.eq.s32.totalorder %s39, 2
      %p473 = por %p471, %p472
      %p475 = scmp.ne.s32.totalorder %s458, %s474
      %p476 = scmp.eq.s32.totalorder %s39, 0
      %p477 = por %p475, %p476
      %s478 = ssub.s32 %s33, %s40
      %p479 = scmp.eq.s32.totalorder %s478, 0
      %s481 = sadd.s32 %s480, 1
      %s482 = scalar_select %p479, %s480, %s481
      %p485 = pneg %p479
      %p486 = scmp.eq.s32.totalorder %s33, 2
      %p487 = por %p485, %p486
      %p488 = scmp.ne.s32.totalorder %s480, %s483
      %p489 = scmp.eq.s32.totalorder %s33, 0
      %p490 = por %p488, %p489
      %p491 = scmp.ne.s32.totalorder %s480, %s483
      %p492 = scmp.eq.s32.totalorder %s38, 2
      %p493 = por %p491, %p492
      %p494 = scmp.ne.s32.totalorder %s483, %s484
      %p495 = scmp.eq.s32.totalorder %s38, 0
      %p496 = por %p494, %p495
      %p497 = scmp.ne.s32.totalorder %s483, %s484
      %p498 = scmp.eq.s32.totalorder %s39, 2
      %p499 = por %p497, %p498
      %p501 = scmp.ne.s32.totalorder %s484, %s500
      %p502 = scmp.eq.s32.totalorder %s39, 0
      %p503 = por %p501, %p502
      %s504 = ssub.s32 %s33, %s40
      %p505 = scmp.eq.s32.totalorder %s504, 0
      %s507 = sadd.s32 %s506, 1
      %s508 = scalar_select %p505, %s506, %s507
      %p511 = pneg %p505
      %p512 = scmp.eq.s32.totalorder %s33, 2
      %p513 = por %p511, %p512
      %p514 = scmp.ne.s32.totalorder %s506, %s509
      %p515 = scmp.eq.s32.totalorder %s33, 0
      %p516 = por %p514, %p515
      %p517 = scmp.ne.s32.totalorder %s506, %s509
      %p518 = scmp.eq.s32.totalorder %s38, 2
      %p519 = por %p517, %p518
      %p520 = scmp.ne.s32.totalorder %s509, %s510
      %p521 = scmp.eq.s32.totalorder %s38, 0
      %p522 = por %p520, %p521
      %p523 = scmp.ne.s32.totalorder %s509, %s510
      %p524 = scmp.eq.s32.totalorder %s39, 2
      %p525 = por %p523, %p524
      %p527 = scmp.ne.s32.totalorder %s510, %s526
      %p528 = scmp.eq.s32.totalorder %s39, 0
      %p529 = por %p527, %p528
      %s530 = ssub.s32 %s33, %s40
      %p531 = scmp.eq.s32.totalorder %s530, 0
      %s533 = sadd.s32 %s532, 1
      %s534 = scalar_select %p531, %s532, %s533
      %p537 = pneg %p531
      %p538 = scmp.eq.s32.totalorder %s33, 2
      %p539 = por %p537, %p538
      %p540 = scmp.ne.s32.totalorder %s532, %s535
      %p541 = scmp.eq.s32.totalorder %s33, 0
      %p542 = por %p540, %p541
      %p543 = scmp.ne.s32.totalorder %s532, %s535
      %p544 = scmp.eq.s32.totalorder %s38, 2
      %p545 = por %p543, %p544
      %p546 = scmp.ne.s32.totalorder %s535, %s536
      %p547 = scmp.eq.s32.totalorder %s38, 0
      %p548 = por %p546, %p547
      %p549 = scmp.ne.s32.totalorder %s535, %s536
      %p550 = scmp.eq.s32.totalorder %s39, 2
      %p551 = por %p549, %p550
      %p553 = scmp.ne.s32.totalorder %s536, %s552
      %p554 = scmp.eq.s32.totalorder %s39, 0
      %p555 = por %p553, %p554
      %s556 = ssub.s32 %s33, %s40
      %p557 = scmp.eq.s32.totalorder %s556, 0
      %s559 = sadd.s32 %s558, 1
      %s560 = scalar_select %p557, %s558, %s559
      %p563 = pneg %p557
      %p564 = scmp.eq.s32.totalorder %s33, 2
      %p565 = por %p563, %p564
      %p566 = scmp.ne.s32.totalorder %s558, %s561
      %p567 = scmp.eq.s32.totalorder %s33, 0
      %p568 = por %p566, %p567
      %p569 = scmp.ne.s32.totalorder %s558, %s561
      %p570 = scmp.eq.s32.totalorder %s38, 2
      %p571 = por %p569, %p570
      %p572 = scmp.ne.s32.totalorder %s561, %s562
      %p573 = scmp.eq.s32.totalorder %s38, 0
      %p574 = por %p572, %p573
      %p575 = scmp.ne.s32.totalorder %s561, %s562
      %p576 = scmp.eq.s32.totalorder %s39, 2
      %p577 = por %p575, %p576
      %p579 = scmp.ne.s32.totalorder %s562, %s578
      %p580 = scmp.eq.s32.totalorder %s39, 0
      %p581 = por %p579, %p580
      %p582 = scmp.le.s32.totalorder 1, %s33
      %p583 = scmp.lt.s32.totalorder %s33, 4
      %p584 = pnand %p582, %p583
      %p585 = pneg %p584
      // Predicated region
      $region9: #{super_model_forward.1} parent=5 // pred_check
        _
      $region10: #{super_model_forward.1} parent=5 // pred_check_branch
        %587 = sbr.rel (%p584) target = $region12
      $region11: #{super_model_forward.1} parent=5 // pred_region
        %s588 = ssub.s32 %s33, 1
        // Predicated region
        $region13: #{super_model_forward.1} parent=11 // pred_check
          %p589 = pneg %p54
        $region14: #{super_model_forward.1} parent=11 // pred_check_branch
          %591 = sbr.rel (%p589) target = $region16
        $region15: #{super_model_forward.1} parent=11 // pred_region
          _
        $region16: #{super_model_forward.1} parent=11 // pred_fallthru
          _
      $region12: #{super_model_forward.1} parent=5 // pred_fallthru
        _
      %p592 = scmp.lt.s32.totalorder %s33, 3
      // Predicated region
      $region17: #{super_model_forward.1} parent=5 // pred_check
        %p593 = pneg %p592
      $region18: #{super_model_forward.1} parent=5 // pred_check_branch
        %595 = sbr.rel (%p593) target = $region20
      $region19: #{super_model_forward.1} parent=5 // pred_region
        // Predicated region
        $region21: #{super_model_forward.1} parent=19 // pred_check
          %p596 = pneg %p74
        $region22: #{super_model_forward.1} parent=19 // pred_check_branch
          %598 = sbr.rel (%p596) target = $region24
        $region23: #{super_model_forward.1} parent=19 // pred_region
          %p599 = scmp.lt.s32.totalorder %s33, 2
          %s600 = scalar_select %p599, %s33, 2
          %s601 = smul.addr %s600, 3
          %s602 = smul.addr %s601, 4
          %s603 = scalar_lea.vmem %s1, %s602
        $region24: #{super_model_forward.1} parent=19 // pred_fallthru
          _
        // Predicated region
        $region25: #{super_model_forward.1} parent=19 // pred_check
          %p604 = pneg %p100
        $region26: #{super_model_forward.1} parent=19 // pred_check_branch
          %606 = sbr.rel (%p604) target = $region28
        $region27: #{super_model_forward.1} parent=19 // pred_region
          %p607 = scmp.lt.s32.totalorder %s33, 2
          %s608 = scalar_select %p607, %s33, 2
          %s609 = smul.addr %s608, 8
          %s610 = scalar_lea.vmem %s2, %s609
        $region28: #{super_model_forward.1} parent=19 // pred_fallthru
          _
        // Predicated region
        $region29: #{super_model_forward.1} parent=19 // pred_check
          %p611 = pneg %p126
        $region30: #{super_model_forward.1} parent=19 // pred_check_branch
          %613 = sbr.rel (%p611) target = $region32
        $region31: #{super_model_forward.1} parent=19 // pred_region
          %p614 = scmp.lt.s32.totalorder %s33, 2
          %s615 = scalar_select %p614, %s33, 2
          %s616 = smul.addr %s615, 6
          %s617 = smul.addr %s616, 4
          %s618 = scalar_lea.vmem %s3, %s617
        $region32: #{super_model_forward.1} parent=19 // pred_fallthru
          _
        // Predicated region
        $region33: #{super_model_forward.1} parent=19 // pred_check
          %p619 = pneg %p152
        $region34: #{super_model_forward.1} parent=19 // pred_check_branch
          %621 = sbr.rel (%p619) target = $region36
        $region35: #{super_model_forward.1} parent=19 // pred_region
          %p622 = scmp.lt.s32.totalorder %s33, 2
          %s623 = scalar_select %p622, %s33, 2
          %s624 = smul.addr %s623, 2
          %s625 = smul.addr %s624, 8
          %s626 = scalar_lea.vmem %s4, %s625
        $region36: #{super_model_forward.1} parent=19 // pred_fallthru
          _
        // Predicated region
        $region37: #{super_model_forward.1} parent=19 // pred_check
          %p627 = pneg %p178
        $region38: #{super_model_forward.1} parent=19 // pred_check_branch
          %629 = sbr.rel (%p627) target = $region40
        $region39: #{super_model_forward.1} parent=19 // pred_region
          %p630 = scmp.lt.s32.totalorder %s33, 2
          %s631 = scalar_select %p630, %s33, 2
          %s632 = smul.addr %s631, 44
          %s633 = smul.addr %s632, 4
          %s634 = scalar_lea.vmem %s5, %s633
        $region40: #{super_model_forward.1} parent=19 // pred_fallthru
          _
        // Predicated region
        $region41: #{super_model_forward.1} parent=19 // pred_check
          %p635 = pneg %p204
        $region42: #{super_model_forward.1} parent=19 // pred_check_branch
          %637 = sbr.rel (%p635) target = $region44
        $region43: #{super_model_forward.1} parent=19 // pred_region
          %p638 = scmp.lt.s32.totalorder %s33, 2
          %s639 = scalar_select %p638, %s33, 2
          %s640 = smul.addr %s639, 2
          %s641 = smul.addr %s640, 8
          %s642 = scalar_lea.vmem %s6, %s641
        $region44: #{super_model_forward.1} parent=19 // pred_fallthru
          _
        // Predicated region
        $region45: #{super_model_forward.1} parent=19 // pred_check
          %p643 = pneg %p230
        $region46: #{super_model_forward.1} parent=19 // pred_check_branch
          %645 = sbr.rel (%p643) target = $region48
        $region47: #{super_model_forward.1} parent=19 // pred_region
          %p646 = scmp.lt.s32.totalorder %s33, 2
          %s647 = scalar_select %p646, %s33, 2
          %s648 = scalar_lea.vmem %s7, %s647
        $region48: #{super_model_forward.1} parent=19 // pred_fallthru
          _
        // Predicated region
        $region49: #{super_model_forward.1} parent=19 // pred_check
          %p649 = pneg %p256
        $region50: #{super_model_forward.1} parent=19 // pred_check_branch
          %651 = sbr.rel (%p649) target = $region52
        $region51: #{super_model_forward.1} parent=19 // pred_region
          %p652 = scmp.lt.s32.totalorder %s33, 2
          %s653 = scalar_select %p652, %s33, 2
          %s654 = smul.addr %s653, 2
          %s655 = smul.addr %s654, 8
          %s656 = scalar_lea.vmem %s8, %s655
        $region52: #{super_model_forward.1} parent=19 // pred_fallthru
          _
        // Predicated region
        $region53: #{super_model_forward.1} parent=19 // pred_check
          %p657 = pneg %p282
        $region54: #{super_model_forward.1} parent=19 // pred_check_branch
          %659 = sbr.rel (%p657) target = $region56
        $region55: #{super_model_forward.1} parent=19 // pred_region
          %p660 = scmp.lt.s32.totalorder %s33, 2
          %s661 = scalar_select %p660, %s33, 2
          %s662 = smul.addr %s661, 2
          %s663 = smul.addr %s662, 8
          %s664 = scalar_lea.vmem %s9, %s663
        $region56: #{super_model_forward.1} parent=19 // pred_fallthru
          _
        // Predicated region
        $region57: #{super_model_forward.1} parent=19 // pred_check
          %p665 = pneg %p308
        $region58: #{super_model_forward.1} parent=19 // pred_check_branch
          %667 = sbr.rel (%p665) target = $region60
        $region59: #{super_model_forward.1} parent=19 // pred_region
          %p668 = scmp.lt.s32.totalorder %s33, 2
          %s669 = scalar_select %p668, %s33, 2
          %s670 = scalar_lea.vmem %s10, %s669
        $region60: #{super_model_forward.1} parent=19 // pred_fallthru
          _
        // Predicated region
        $region61: #{super_model_forward.1} parent=19 // pred_check
          %p671 = pneg %p334
        $region62: #{super_model_forward.1} parent=19 // pred_check_branch
          %673 = sbr.rel (%p671) target = $region64
        $region63: #{super_model_forward.1} parent=19 // pred_region
          %p674 = scmp.lt.s32.totalorder %s33, 2
          %s675 = scalar_select %p674, %s33, 2
          %s676 = smul.addr %s675, 2
          %s677 = smul.addr %s676, 8
          %s678 = scalar_lea.vmem %s11, %s677
        $region64: #{super_model_forward.1} parent=19 // pred_fallthru
          _
        // Predicated region
        $region65: #{super_model_forward.1} parent=19 // pred_check
          %p679 = pneg %p360
        $region66: #{super_model_forward.1} parent=19 // pred_check_branch
          %681 = sbr.rel (%p679) target = $region68
        $region67: #{super_model_forward.1} parent=19 // pred_region
          %p682 = scmp.lt.s32.totalorder %s33, 2
          %s683 = scalar_select %p682, %s33, 2
          %s684 = smul.addr %s683, 2
          %s685 = smul.addr %s684, 8
          %s686 = scalar_lea.vmem %s12, %s685
        $region68: #{super_model_forward.1} parent=19 // pred_fallthru
          _
        // Predicated region
        $region69: #{super_model_forward.1} parent=19 // pred_check
          %p687 = pneg %p386
        $region70: #{super_model_forward.1} parent=19 // pred_check_branch
          %689 = sbr.rel (%p687) target = $region72
        $region71: #{super_model_forward.1} parent=19 // pred_region
          %p690 = scmp.lt.s32.totalorder %s33, 2
          %s691 = scalar_select %p690, %s33, 2
          %s692 = scalar_lea.vmem %s13, %s691
        $region72: #{super_model_forward.1} parent=19 // pred_fallthru
          _
        // Predicated region
        $region73: #{super_model_forward.1} parent=19 // pred_check
          %p693 = pneg %p412
        $region74: #{super_model_forward.1} parent=19 // pred_check_branch
          %695 = sbr.rel (%p693) target = $region76
        $region75: #{super_model_forward.1} parent=19 // pred_region
          %p696 = scmp.lt.s32.totalorder %s33, 2
          %s697 = scalar_select %p696, %s33, 2
          %s698 = smul.addr %s697, 2
          %s699 = smul.addr %s698, 8
          %s700 = scalar_lea.vmem %s14, %s699
        $region76: #{super_model_forward.1} parent=19 // pred_fallthru
          _
        // Predicated region
        $region77: #{super_model_forward.1} parent=19 // pred_check
          %p701 = pneg %p438
        $region78: #{super_model_forward.1} parent=19 // pred_check_branch
          %703 = sbr.rel (%p701) target = $region80
        $region79: #{super_model_forward.1} parent=19 // pred_region
          %p704 = scmp.lt.s32.totalorder %s33, 2
          %s705 = scalar_select %p704, %s33, 2
          %s706 = scalar_lea.vmem %s15, %s705
        $region80: #{super_model_forward.1} parent=19 // pred_fallthru
          _
        // Predicated region
        $region81: #{super_model_forward.1} parent=19 // pred_check
          %p707 = pneg %p464
        $region82: #{super_model_forward.1} parent=19 // pred_check_branch
          %709 = sbr.rel (%p707) target = $region84
        $region83: #{super_model_forward.1} parent=19 // pred_region
          %p710 = scmp.lt.s32.totalorder %s33, 2
          %s711 = scalar_select %p710, %s33, 2
          %s712 = scalar_lea.vmem %s16, %s711
        $region84: #{super_model_forward.1} parent=19 // pred_fallthru
          _
        // Predicated region
        $region85: #{super_model_forward.1} parent=19 // pred_check
          %p713 = pneg %p490
        $region86: #{super_model_forward.1} parent=19 // pred_check_branch
          %715 = sbr.rel (%p713) target = $region88
        $region87: #{super_model_forward.1} parent=19 // pred_region
          %p716 = scmp.lt.s32.totalorder %s33, 2
          %s717 = scalar_select %p716, %s33, 2
          %s718 = scalar_lea.vmem %s17, %s717
        $region88: #{super_model_forward.1} parent=19 // pred_fallthru
          _
      $region20: #{super_model_forward.1} parent=5 // pred_fallthru
        _
      %p719 = scmp.le.s32.totalorder 1, %s33
      %p720 = scmp.lt.s32.totalorder %s33, 4
      %p721 = pnand %p719, %p720
      %p722 = pneg %p721
      // Predicated region
      $region89: #{super_model_forward.1} parent=5 // pred_check
        _
      $region90: #{super_model_forward.1} parent=5 // pred_check_branch
        %724 = sbr.rel (%p721) target = $region92
      $region91: #{super_model_forward.1} parent=5 // pred_region
        %s725 = ssub.s32 %s33, 1
        %p726 = pneg %p54
        %p727 = pneg %p51
        %p728 = scmp.lt.s32.totalorder %s38, 2
        %s729 = scalar_select %p728, %s38, 2
        %s730 = smul.addr %s729, 3
        %s731 = smul.addr %s730, 4
        %s732 = scalar_lea.vmem %s1, %s731
        %p733 = pneg %p80
        %p734 = pneg %p77
        %p735 = scmp.lt.s32.totalorder %s38, 2
        %s736 = scalar_select %p735, %s38, 2
        %s737 = smul.addr %s736, 8
        %s738 = scalar_lea.vmem %s2, %s737
        %p739 = pneg %p106
        %p740 = pneg %p103
        %p741 = scmp.lt.s32.totalorder %s38, 2
        %s742 = scalar_select %p741, %s38, 2
        %s743 = smul.addr %s742, 6
        %s744 = smul.addr %s743, 4
        %s745 = scalar_lea.vmem %s3, %s744
        %p746 = pneg %p132
        %p747 = pneg %p129
        %p748 = scmp.lt.s32.totalorder %s38, 2
        %s749 = scalar_select %p748, %s38, 2
        %s750 = smul.addr %s749, 2
        %s751 = smul.addr %s750, 8
        %s752 = scalar_lea.vmem %s4, %s751
        %p753 = pneg %p158
        %p754 = pneg %p155
        %p755 = scmp.lt.s32.totalorder %s38, 2
        %s756 = scalar_select %p755, %s38, 2
        %s757 = smul.addr %s756, 44
        %s758 = smul.addr %s757, 4
        %s759 = scalar_lea.vmem %s5, %s758
        %p760 = pneg %p184
        %p761 = pneg %p181
        %p762 = scmp.lt.s32.totalorder %s38, 2
        %s763 = scalar_select %p762, %s38, 2
        %s764 = smul.addr %s763, 2
        %s765 = smul.addr %s764, 8
        %s766 = scalar_lea.vmem %s6, %s765
        %p767 = pneg %p210
        %p768 = pneg %p207
        %p769 = scmp.lt.s32.totalorder %s38, 2
        %s770 = scalar_select %p769, %s38, 2
        %s771 = scalar_lea.vmem %s7, %s770
        %p772 = pneg %p236
        %p773 = pneg %p233
        %p774 = scmp.lt.s32.totalorder %s38, 2
        %s775 = scalar_select %p774, %s38, 2
        %s776 = smul.addr %s775, 2
        %s777 = smul.addr %s776, 8
        %s778 = scalar_lea.vmem %s8, %s777
        %p779 = pneg %p262
        %p780 = pneg %p259
        %p781 = scmp.lt.s32.totalorder %s38, 2
        %s782 = scalar_select %p781, %s38, 2
        %s783 = smul.addr %s782, 2
        %s784 = smul.addr %s783, 8
        %s785 = scalar_lea.vmem %s9, %s784
        %p786 = pneg %p288
        %p787 = pneg %p285
        %p788 = scmp.lt.s32.totalorder %s38, 2
        %s789 = scalar_select %p788, %s38, 2
        %s790 = scalar_lea.vmem %s10, %s789
        %p791 = pneg %p314
        %p792 = pneg %p311
        %p793 = scmp.lt.s32.totalorder %s38, 2
        %s794 = scalar_select %p793, %s38, 2
        %s795 = smul.addr %s794, 2
        %s796 = smul.addr %s795, 8
        %s797 = scalar_lea.vmem %s11, %s796
        %p798 = pneg %p340
        %p799 = pneg %p337
        %p800 = scmp.lt.s32.totalorder %s38, 2
        %s801 = scalar_select %p800, %s38, 2
        %s802 = smul.addr %s801, 2
        %s803 = smul.addr %s802, 8
        %s804 = scalar_lea.vmem %s12, %s803
        %p805 = pneg %p366
        %p806 = pneg %p363
        %p807 = scmp.lt.s32.totalorder %s38, 2
        %s808 = scalar_select %p807, %s38, 2
        %s809 = scalar_lea.vmem %s13, %s808
        %p810 = pneg %p392
        %p811 = pneg %p389
        %p812 = scmp.lt.s32.totalorder %s38, 2
        %s813 = scalar_select %p812, %s38, 2
        %s814 = smul.addr %s813, 2
        %s815 = smul.addr %s814, 8
        %s816 = scalar_lea.vmem %s14, %s815
        %p817 = pneg %p418
        %p818 = pneg %p415
        %p819 = scmp.lt.s32.totalorder %s38, 2
        %s820 = scalar_select %p819, %s38, 2
        %s821 = scalar_lea.vmem %s15, %s820
        %p822 = pneg %p444
        %p823 = pneg %p441
        %p824 = scmp.lt.s32.totalorder %s38, 2
        %s825 = scalar_select %p824, %s38, 2
        %s826 = scalar_lea.vmem %s16, %s825
        %p827 = pneg %p470
        %p828 = pneg %p467
        %p829 = scmp.lt.s32.totalorder %s38, 2
        %s830 = scalar_select %p829, %s38, 2
        %s831 = scalar_lea.vmem %s17, %s830
        %p832 = pneg %p496
        %p833 = pneg %p493
        %p834 = pneg %p522
        %p835 = pneg %p519
        %p836 = scmp.lt.s32.totalorder %s38, 2
        %s837 = scalar_select %p836, %s38, 2
        %s838 = smul.addr %s837, 2
        %s839 = scalar_lea.vmem %s18, %s838
        %p840 = pneg %p548
        %p841 = pneg %p545
        %s842 = sand.u32 %s535, 1
        %s843 = scalar_lea.sflag [#allocation3], %s842
        %s844 = sand.u32 %s535, 1
        %s845 = smul.addr %s844, 48
        %s846 = scalar_lea.vmem [#allocation2], %s845
        %p847 = pneg %p574
        %p848 = pneg %p571
        %s849 = sand.u32 %s561, 1
        %s850 = scalar_lea.sflag [#allocation5], %s849
        %s851 = sand.u32 %s561, 1
        %s852 = smul.addr %s851, 48
        %s853 = scalar_lea.vmem [#allocation4], %s852
        %p854 = scmp.lt.s32.totalorder %s38, 2
        %s855 = scalar_select %p854, %s38, 2
        %s856 = smul.addr %s855, 3
        %s857 = smul.addr %s856, 4
        %s858 = scalar_lea.vmem %s1, %s857
        %p859 = scmp.lt.s32.totalorder %s38, 2
        %s860 = scalar_select %p859, %s38, 2
        %s861 = smul.addr %s860, 8
        %s862 = scalar_lea.vmem %s2, %s861
        %p863 = scmp.lt.s32.totalorder %s38, 2
        %s864 = scalar_select %p863, %s38, 2
        %s865 = smul.addr %s864, 6
        %s866 = smul.addr %s865, 4
        %s867 = scalar_lea.vmem %s3, %s866
        %p868 = scmp.lt.s32.totalorder %s38, 2
        %s869 = scalar_select %p868, %s38, 2
        %s870 = smul.addr %s869, 2
        %s871 = smul.addr %s870, 8
        %s872 = scalar_lea.vmem %s4, %s871
        %p873 = scmp.lt.s32.totalorder %s38, 2
        %s874 = scalar_select %p873, %s38, 2
        %s875 = smul.addr %s874, 44
        %s876 = smul.addr %s875, 4
        %s877 = scalar_lea.vmem %s5, %s876
        %p878 = scmp.lt.s32.totalorder %s38, 2
        %s879 = scalar_select %p878, %s38, 2
        %s880 = smul.addr %s879, 2
        %s881 = smul.addr %s880, 8
        %s882 = scalar_lea.vmem %s6, %s881
        %p883 = scmp.lt.s32.totalorder %s38, 2
        %s884 = scalar_select %p883, %s38, 2
        %s885 = scalar_lea.vmem %s7, %s884
        %p886 = scmp.lt.s32.totalorder %s38, 2
        %s887 = scalar_select %p886, %s38, 2
        %s888 = smul.addr %s887, 2
        %s889 = smul.addr %s888, 8
        %s890 = scalar_lea.vmem %s8, %s889
        %p891 = scmp.lt.s32.totalorder %s38, 2
        %s892 = scalar_select %p891, %s38, 2
        %s893 = smul.addr %s892, 2
        %s894 = smul.addr %s893, 8
        %s895 = scalar_lea.vmem %s9, %s894
        %p896 = scmp.lt.s32.totalorder %s38, 2
        %s897 = scalar_select %p896, %s38, 2
        %s898 = scalar_lea.vmem %s10, %s897
        %p899 = scmp.lt.s32.totalorder %s38, 2
        %s900 = scalar_select %p899, %s38, 2
        %s901 = smul.addr %s900, 2
        %s902 = smul.addr %s901, 8
        %s903 = scalar_lea.vmem %s11, %s902
        %p904 = scmp.lt.s32.totalorder %s38, 2
        %s905 = scalar_select %p904, %s38, 2
        %s906 = smul.addr %s905, 2
        %s907 = smul.addr %s906, 8
        %s908 = scalar_lea.vmem %s12, %s907
        %p909 = scmp.lt.s32.totalorder %s38, 2
        %s910 = scalar_select %p909, %s38, 2
        %s911 = scalar_lea.vmem %s13, %s910
        %p912 = scmp.lt.s32.totalorder %s38, 2
        %s913 = scalar_select %p912, %s38, 2
        %s914 = smul.addr %s913, 2
        %s915 = smul.addr %s914, 8
        %s916 = scalar_lea.vmem %s14, %s915
        %p917 = scmp.lt.s32.totalorder %s38, 2
        %s918 = scalar_select %p917, %s38, 2
        %s919 = scalar_lea.vmem %s15, %s918
        %p920 = scmp.lt.s32.totalorder %s38, 2
        %s921 = scalar_select %p920, %s38, 2
        %s922 = scalar_lea.vmem %s16, %s921
        %p923 = scmp.lt.s32.totalorder %s38, 2
        %s924 = scalar_select %p923, %s38, 2
        %s925 = scalar_lea.vmem %s17, %s924
        %p926 = scmp.lt.s32.totalorder %s38, 2
        %s927 = scalar_select %p926, %s38, 2
        %s928 = smul.addr %s927, 2
        %s929 = scalar_lea.vmem %s18, %s928
        %v931 = vld [vmem:[%s858] sm:$0xf]
        %v932 = vld [vmem:[%s858 + $0x4] sm:$0xf]
        %v933 = vld [vmem:[%s858 + $0x8] sm:$0xf]
        %v934 = vld [vmem:[%s862] sm:$0xff]
        %v935 = vld [vmem:[%s867] sm:$0xf]
        %v936 = vld [vmem:[%s867 + $0x4] sm:$0xf]
        %v937 = vld [vmem:[%s867 + $0x8] sm:$0xf]
        %v938 = vld [vmem:[%s867 + $0xc] sm:$0xf]
        %v939 = vld [vmem:[%s867 + $0x10] sm:$0xf]
        %v940 = vld [vmem:[%s867 + $0x14] sm:$0xf]
        %v941 = vld [vmem:[%s872] sm:$0xff]
        %v942 = vld [vmem:[%s872 + $0x8] sm:$0xff]
        %v943 = vld [vmem:[%s877] sm:$0xf]
        %v944 = vld [vmem:[%s877 + $0x4] sm:$0xf]
        %v945 = vld [vmem:[%s877 + $0x8] sm:$0xf]
        %v946 = vld [vmem:[%s877 + $0xc] sm:$0xf]
        %v947 = vld [vmem:[%s877 + $0x10] sm:$0xf]
        %v948 = vld [vmem:[%s877 + $0x14] sm:$0xf]
        %v949 = vld [vmem:[%s877 + $0x18] sm:$0xf]
        %v950 = vld [vmem:[%s877 + $0x1c] sm:$0xf]
        %v951 = vld [vmem:[%s877 + $0x20] sm:$0xf]
        %v952 = vld [vmem:[%s877 + $0x24] sm:$0xf]
        %v953 = vld [vmem:[%s877 + $0x28] sm:$0xf]
        %v954 = vld [vmem:[%s877 + $0x2c] sm:$0xf]
        %v955 = vld [vmem:[%s877 + $0x30] sm:$0xf]
        %v956 = vld [vmem:[%s877 + $0x34] sm:$0xf]
        %v957 = vld [vmem:[%s877 + $0x38] sm:$0xf]
        %v958 = vld [vmem:[%s877 + $0x3c] sm:$0xf]
        %v959 = vld [vmem:[%s877 + $0x40] sm:$0xf]
        %v960 = vld [vmem:[%s877 + $0x44] sm:$0xf]
        %v961 = vld [vmem:[%s877 + $0x48] sm:$0xf]
        %v962 = vld [vmem:[%s877 + $0x4c] sm:$0xf]
        %v963 = vld [vmem:[%s877 + $0x50] sm:$0xf]
        %v964 = vld [vmem:[%s877 + $0x54] sm:$0xf]
        %v965 = vld [vmem:[%s877 + $0x58] sm:$0xf]
        %v966 = vld [vmem:[%s877 + $0x5c] sm:$0xf]
        %v967 = vld [vmem:[%s877 + $0x60] sm:$0xf]
        %v968 = vld [vmem:[%s877 + $0x64] sm:$0xf]
        %v969 = vld [vmem:[%s877 + $0x68] sm:$0xf]
        %v970 = vld [vmem:[%s877 + $0x6c] sm:$0xf]
        %v971 = vld [vmem:[%s877 + $0x70] sm:$0xf]
        %v972 = vld [vmem:[%s877 + $0x74] sm:$0xf]
        %v973 = vld [vmem:[%s877 + $0x78] sm:$0xf]
        %v974 = vld [vmem:[%s877 + $0x7c] sm:$0xf]
        %v975 = vld [vmem:[%s877 + $0x80] sm:$0xf]
        %v976 = vld [vmem:[%s877 + $0x84] sm:$0xf]
        %v977 = vld [vmem:[%s877 + $0x88] sm:$0xf]
        %v978 = vld [vmem:[%s877 + $0x8c] sm:$0xf]
        %v979 = vld [vmem:[%s877 + $0x90] sm:$0xf]
        %v980 = vld [vmem:[%s877 + $0x94] sm:$0xf]
        %v981 = vld [vmem:[%s877 + $0x98] sm:$0xf]
        %v982 = vld [vmem:[%s877 + $0x9c] sm:$0xf]
        %v983 = vld [vmem:[%s877 + $0xa0] sm:$0xf]
        %v984 = vld [vmem:[%s877 + $0xa4] sm:$0xf]
        %v985 = vld [vmem:[%s877 + $0xa8] sm:$0xf]
        %v986 = vld [vmem:[%s877 + $0xac] sm:$0x7]
        %v987 = vld [vmem:[%s882] sm:$0xff]
        %v988 = vld [vmem:[%s882 + $0x8] sm:$0xff]
        %v989 = vld [vmem:[%s885] sm:$0x1]
        %v990 = vld [vmem:[%s890] sm:$0xff]
        %v991 = vld [vmem:[%s890 + $0x8] sm:$0xff]
        %v992 = vld [vmem:[%s895] sm:$0xff]
        %v993 = vld [vmem:[%s895 + $0x8] sm:$0xff]
        %v994 = vld [vmem:[%s898] sm:$0x1]
        %v995 = vld [vmem:[%s903] sm:$0xff]
        %v996 = vld [vmem:[%s903 + $0x8] sm:$0xff]
        %v997 = vld [vmem:[%s908] sm:$0xff]
        %v998 = vld [vmem:[%s908 + $0x8] sm:$0xff]
        %v999 = vld [vmem:[%s911] sm:$0x1]
        %v1000 = vld [vmem:[%s916] sm:$0xff]
        %v1001 = vld [vmem:[%s916 + $0x8] sm:$0xff]
        %v1002 = vld [vmem:[%s919] sm:$0x1]
        %v1003 = vld [vmem:[%s922] sm:$0x1]
        %v1004 = vld [vmem:[%s925] sm:$0x1]
        %v1005 = vld [vmem:[%s0] sm:$0xff]
        %v1006 = vld [vmem:[%s0 + $0x8] sm:$0xf]
        %v1007 = vld [vmem:[%s0 + $0xc] sm:$0xff]
        %v1008 = vld [vmem:[%s0 + $0x14] sm:$0xf]
        %v1009 = vld [vmem:[%s0 + $0x18] sm:$0xff]
        %v1010 = vld [vmem:[%s0 + $0x20] sm:$0xf]
        %v1011 = vld [vmem:[%s0 + $0x24] sm:$0xff]
        %v1012 = vld [vmem:[%s0 + $0x2c] sm:$0xf]
        %v1013 = vld [vmem:[%s0 + $0x30] sm:$0xff]
        %v1014 = vld [vmem:[%s0 + $0x38] sm:$0xf]
        %v1015 = vld [vmem:[%s0 + $0x3c] sm:$0xff]
        %v1016 = vld [vmem:[%s0 + $0x44] sm:$0xf]
        %v1017 = vld [vmem:[%s0 + $0x48] sm:$0xff]
        %v1018 = vld [vmem:[%s0 + $0x50] sm:$0xf]
        %v1019 = vld [vmem:[%s0 + $0x54] sm:$0xff]
        %v1020 = vld [vmem:[%s0 + $0x5c] sm:$0xf]
        %v1021 = vld [vmem:[%s0 + $0x60] sm:$0xff]
        %v1022 = vld [vmem:[%s0 + $0x68] sm:$0xf]
        %v1023 = vld [vmem:[%s0 + $0x6c] sm:$0xff]
        %v1024 = vld [vmem:[%s0 + $0x74] sm:$0xf]
        %v1025 = vld [vmem:[%s0 + $0x78] sm:$0xff]
        %v1026 = vld [vmem:[%s0 + $0x80] sm:$0xf]
        %v1027 = vld [vmem:[%s0 + $0x84] sm:$0xff]
        %v1028 = vld [vmem:[%s0 + $0x8c] sm:$0xf]
        %v1032 = vunpack.c.l.b16 %v931
        %v1033 = vunpack.c.l.b16 %v932
        %v1034 = vunpack.c.l.b16 %v933
        %v1035 = vpack.c.b16 %v1033, %v1032
        %v1036 = vpack.c.b16 %v1034, %v1034
        %v1061 = vunpack.c.l.b16 %v1005
        %v1062 = vunpack.c.h.b16 %v1005
        %v1063 = vunpack.c.l.b16 %v1006
        %v1064 = vunpack.c.l.b16 %v1007
        %v1065 = vunpack.c.h.b16 %v1007
        %v1066 = vunpack.c.l.b16 %v1008
        %v1067 = vunpack.c.l.b16 %v1009
        %v1068 = vunpack.c.h.b16 %v1009
        %v1069 = vunpack.c.l.b16 %v1010
        %v1070 = vunpack.c.l.b16 %v1011
        %v1071 = vunpack.c.h.b16 %v1011
        %v1072 = vunpack.c.l.b16 %v1012
        %v1073 = vunpack.c.l.b16 %v1013
        %v1074 = vunpack.c.h.b16 %v1013
        %v1075 = vunpack.c.l.b16 %v1014
        %v1076 = vunpack.c.l.b16 %v1015
        %v1077 = vunpack.c.h.b16 %v1015
        %v1078 = vunpack.c.l.b16 %v1016
        %v1079 = vunpack.c.l.b16 %v1017
        %v1080 = vunpack.c.h.b16 %v1017
        %v1081 = vunpack.c.l.b16 %v1018
        %v1082 = vunpack.c.l.b16 %v1019
        %v1083 = vunpack.c.h.b16 %v1019
        %v1084 = vunpack.c.l.b16 %v1020
        %v1085 = vunpack.c.l.b16 %v1021
        %v1086 = vunpack.c.h.b16 %v1021
        %v1087 = vunpack.c.l.b16 %v1022
        %v1088 = vunpack.c.l.b16 %v1023
        %v1089 = vunpack.c.h.b16 %v1023
        %v1090 = vunpack.c.l.b16 %v1024
        %v1091 = vunpack.c.l.b16 %v1025
        %v1092 = vunpack.c.h.b16 %v1025
        %v1093 = vunpack.c.l.b16 %v1026
        %v1094 = vunpack.c.l.b16 %v1027
        %v1095 = vunpack.c.h.b16 %v1027
        %v1096 = vunpack.c.l.b16 %v1028
        %v1097 = vpack.c.b16 %v1064, %v1061
        %v1098 = vpack.c.b16 %v1065, %v1062
        %v1099 = vpack.c.b16 %v1066, %v1063
        %v1100 = vpack.c.b16 %v1070, %v1067
        %v1101 = vpack.c.b16 %v1071, %v1068
        %v1102 = vpack.c.b16 %v1072, %v1069
        %v1103 = vpack.c.b16 %v1076, %v1073
        %v1104 = vpack.c.b16 %v1077, %v1074
        %v1105 = vpack.c.b16 %v1078, %v1075
        %v1106 = vpack.c.b16 %v1082, %v1079
        %v1107 = vpack.c.b16 %v1083, %v1080
        %v1108 = vpack.c.b16 %v1084, %v1081
        %v1109 = vpack.c.b16 %v1088, %v1085
        %v1110 = vpack.c.b16 %v1089, %v1086
        %v1111 = vpack.c.b16 %v1090, %v1087
        %v1112 = vpack.c.b16 %v1094, %v1091
        %v1113 = vpack.c.b16 %v1095, %v1092
        %v1114 = vpack.c.b16 %v1096, %v1093
        %vm1133 = vcmask 785408
        %v1135 = vsel %vm1133, %v1035, 0
        %v1138 = vsel %vm1133, %v1036, 0
        %1140 = vmatpush.bf16.msra.mxu0 0
        %1141 = vmatpush.bf16.msra.mxu0 0
        %1142 = vmatpush.bf16.msra.mxu0 %v1112
        %1143 = vmatpush.bf16.msra.mxu0 %v1109
        %1144 = vmatpush.bf16.msra.mxu0 %v1106
        %1145 = vmatpush.bf16.msra.mxu0 %v1103
        %1146 = vmatpush.bf16.msra.mxu0 %v1100
        %1147 = vmatpush.bf16.msra.mxu0 %v1097
        %1148 = vmatmul.bf16.gmra.mxu0 %v1135
        %v1149 = vpop.f32.mrf.mxu0
        %v1150 = vadd.f32 0.0, %v1149
        %v1151 = vpop.f32.mrf.mxu0
        %v1152 = vadd.f32 0.0, %v1151
        %1153 = vmatmul.bf16.gmra.mxu0 %v1138
        %v1154 = vpop.f32.mrf.mxu0
        %v1155 = vadd.f32 0.0, %v1154
        %v1156 = vpop.f32.mrf.mxu0
        %1157 = vdwg.mxu0
        %1158 = vmatpush.bf16.msra.mxu0 0
        %1159 = vmatpush.bf16.msra.mxu0 0
        %1160 = vmatpush.bf16.msra.mxu0 %v1113
        %1161 = vmatpush.bf16.msra.mxu0 %v1110
        %1162 = vmatpush.bf16.msra.mxu0 %v1107
        %1163 = vmatpush.bf16.msra.mxu0 %v1104
        %1164 = vmatpush.bf16.msra.mxu0 %v1101
        %1165 = vmatpush.bf16.msra.mxu0 %v1098
        %1166 = vmatmul.bf16.gmra.mxu0 %v1135
        %v1167 = vpop.f32.mrf.mxu0
        %v1168 = vadd.f32 0.0, %v1167
        %v1169 = vpop.f32.mrf.mxu0
        %v1170 = vadd.f32 0.0, %v1169
        %1171 = vmatmul.bf16.gmra.mxu0 %v1138
        %v1172 = vpop.f32.mrf.mxu0
        %v1173 = vadd.f32 0.0, %v1172
        %v1174 = vpop.f32.mrf.mxu0
        %1175 = vdwg.mxu0
        %1176 = vmatpush.bf16.msra.mxu0 0
        %1177 = vmatpush.bf16.msra.mxu0 0
        %1178 = vmatpush.bf16.msra.mxu0 %v1114
        %1179 = vmatpush.bf16.msra.mxu0 %v1111
        %1180 = vmatpush.bf16.msra.mxu0 %v1108
        %1181 = vmatpush.bf16.msra.mxu0 %v1105
        %1182 = vmatpush.bf16.msra.mxu0 %v1102
        %1183 = vmatpush.bf16.msra.mxu0 %v1099
        %1184 = vmatmul.bf16.gmra.mxu0 %v1135
        %v1185 = vpop.f32.mrf.mxu0
        %v1186 = vadd.f32 0.0, %v1185
        %v1187 = vpop.f32.mrf.mxu0
        %v1188 = vadd.f32 0.0, %v1187
        %1189 = vmatmul.bf16.gmra.mxu0 %v1138
        %v1190 = vpop.f32.mrf.mxu0
        %v1191 = vadd.f32 0.0, %v1190
        %v1192 = vpop.f32.mrf.mxu0
        %1193 = vdwg.mxu0
        %s1194 = scalar_lea.vmem %s0, 144
        %v1195 = vld [vmem:[%s1194] sm:$0xff]
        %v1196 = vld [vmem:[%s1194 + $0x8] sm:$0xf]
        %v1197 = vld [vmem:[%s1194 + $0xc] sm:$0xff]
        %v1198 = vld [vmem:[%s1194 + $0x14] sm:$0xf]
        %v1199 = vld [vmem:[%s1194 + $0x18] sm:$0xff]
        %v1200 = vld [vmem:[%s1194 + $0x20] sm:$0xf]
        %v1201 = vld [vmem:[%s1194 + $0x24] sm:$0xff]
        %v1202 = vld [vmem:[%s1194 + $0x2c] sm:$0xf]
        %v1203 = vld [vmem:[%s1194 + $0x30] sm:$0xff]
        %v1204 = vld [vmem:[%s1194 + $0x38] sm:$0xf]
        %v1205 = vld [vmem:[%s1194 + $0x3c] sm:$0xff]
        %v1206 = vld [vmem:[%s1194 + $0x44] sm:$0xf]
        %v1207 = vld [vmem:[%s1194 + $0x48] sm:$0xff]
        %v1208 = vld [vmem:[%s1194 + $0x50] sm:$0xf]
        %v1209 = vld [vmem:[%s1194 + $0x54] sm:$0xff]
        %v1210 = vld [vmem:[%s1194 + $0x5c] sm:$0xf]
        %v1211 = vld [vmem:[%s1194 + $0x60] sm:$0xff]
        %v1212 = vld [vmem:[%s1194 + $0x68] sm:$0xf]
        %v1213 = vld [vmem:[%s1194 + $0x6c] sm:$0xff]
        %v1214 = vld [vmem:[%s1194 + $0x74] sm:$0xf]
        %v1215 = vld [vmem:[%s1194 + $0x78] sm:$0xff]
        %v1216 = vld [vmem:[%s1194 + $0x80] sm:$0xf]
        %v1217 = vld [vmem:[%s1194 + $0x84] sm:$0xff]
        %v1218 = vld [vmem:[%s1194 + $0x8c] sm:$0xf]
        %v1243 = vunpack.c.l.b16 %v1195
        %v1244 = vunpack.c.h.b16 %v1195
        %v1245 = vunpack.c.l.b16 %v1196
        %v1246 = vunpack.c.l.b16 %v1197
        %v1247 = vunpack.c.h.b16 %v1197
        %v1248 = vunpack.c.l.b16 %v1198
        %v1249 = vunpack.c.l.b16 %v1199
        %v1250 = vunpack.c.h.b16 %v1199
        %v1251 = vunpack.c.l.b16 %v1200
        %v1252 = vunpack.c.l.b16 %v1201
        %v1253 = vunpack.c.h.b16 %v1201
        %v1254 = vunpack.c.l.b16 %v1202
        %v1255 = vunpack.c.l.b16 %v1203
        %v1256 = vunpack.c.h.b16 %v1203
        %v1257 = vunpack.c.l.b16 %v1204
        %v1258 = vunpack.c.l.b16 %v1205
        %v1259 = vunpack.c.h.b16 %v1205
        %v1260 = vunpack.c.l.b16 %v1206
        %v1261 = vunpack.c.l.b16 %v1207
        %v1262 = vunpack.c.h.b16 %v1207
        %v1263 = vunpack.c.l.b16 %v1208
        %v1264 = vunpack.c.l.b16 %v1209
        %v1265 = vunpack.c.h.b16 %v1209
        %v1266 = vunpack.c.l.b16 %v1210
        %v1267 = vunpack.c.l.b16 %v1211
        %v1268 = vunpack.c.h.b16 %v1211
        %v1269 = vunpack.c.l.b16 %v1212
        %v1270 = vunpack.c.l.b16 %v1213
        %v1271 = vunpack.c.h.b16 %v1213
        %v1272 = vunpack.c.l.b16 %v1214
        %v1273 = vunpack.c.l.b16 %v1215
        %v1274 = vunpack.c.h.b16 %v1215
        %v1275 = vunpack.c.l.b16 %v1216
        %v1276 = vunpack.c.l.b16 %v1217
        %v1277 = vunpack.c.h.b16 %v1217
        %v1278 = vunpack.c.l.b16 %v1218
        %v1279 = vpack.c.b16 %v1246, %v1243
        %v1280 = vpack.c.b16 %v1247, %v1244
        %v1281 = vpack.c.b16 %v1248, %v1245
        %v1282 = vpack.c.b16 %v1252, %v1249
        %v1283 = vpack.c.b16 %v1253, %v1250
        %v1284 = vpack.c.b16 %v1254, %v1251
        %v1285 = vpack.c.b16 %v1258, %v1255
        %v1286 = vpack.c.b16 %v1259, %v1256
        %v1287 = vpack.c.b16 %v1260, %v1257
        %v1288 = vpack.c.b16 %v1264, %v1261
        %v1289 = vpack.c.b16 %v1265, %v1262
        %v1290 = vpack.c.b16 %v1266, %v1263
        %v1291 = vpack.c.b16 %v1270, %v1267
        %v1292 = vpack.c.b16 %v1271, %v1268
        %v1293 = vpack.c.b16 %v1272, %v1269
        %v1294 = vpack.c.b16 %v1276, %v1273
        %v1295 = vpack.c.b16 %v1277, %v1274
        %v1296 = vpack.c.b16 %v1278, %v1275
        %1315 = vmatpush.bf16.msra.mxu0 0
        %1316 = vmatpush.bf16.msra.mxu0 0
        %1317 = vmatpush.bf16.msra.mxu0 %v1294
        %1318 = vmatpush.bf16.msra.mxu0 %v1291
        %1319 = vmatpush.bf16.msra.mxu0 %v1288
        %1320 = vmatpush.bf16.msra.mxu0 %v1285
        %1321 = vmatpush.bf16.msra.mxu0 %v1282
        %1322 = vmatpush.bf16.msra.mxu0 %v1279
        %1323 = vmatmul.bf16.gmra.mxu0 %v1135
        %v1324 = vpop.f32.mrf.mxu0
        %v1325 = vadd.f32 0.0, %v1324
        %v1326 = vpop.f32.mrf.mxu0
        %v1327 = vadd.f32 0.0, %v1326
        %1328 = vmatmul.bf16.gmra.mxu0 %v1138
        %v1329 = vpop.f32.mrf.mxu0
        %v1330 = vadd.f32 0.0, %v1329
        %v1331 = vpop.f32.mrf.mxu0
        %1332 = vdwg.mxu0
        %1333 = vmatpush.bf16.msra.mxu0 0
        %1334 = vmatpush.bf16.msra.mxu0 0
        %1335 = vmatpush.bf16.msra.mxu0 %v1295
        %1336 = vmatpush.bf16.msra.mxu0 %v1292
        %1337 = vmatpush.bf16.msra.mxu0 %v1289
        %1338 = vmatpush.bf16.msra.mxu0 %v1286
        %1339 = vmatpush.bf16.msra.mxu0 %v1283
        %1340 = vmatpush.bf16.msra.mxu0 %v1280
        %1341 = vmatmul.bf16.gmra.mxu0 %v1135
        %v1342 = vpop.f32.mrf.mxu0
        %v1343 = vadd.f32 0.0, %v1342
        %v1344 = vpop.f32.mrf.mxu0
        %v1345 = vadd.f32 0.0, %v1344
        %1346 = vmatmul.bf16.gmra.mxu0 %v1138
        %v1347 = vpop.f32.mrf.mxu0
        %v1348 = vadd.f32 0.0, %v1347
        %v1349 = vpop.f32.mrf.mxu0
        %1350 = vdwg.mxu0
        %1351 = vmatpush.bf16.msra.mxu0 0
        %1352 = vmatpush.bf16.msra.mxu0 0
        %1353 = vmatpush.bf16.msra.mxu0 %v1296
        %1354 = vmatpush.bf16.msra.mxu0 %v1293
        %1355 = vmatpush.bf16.msra.mxu0 %v1290
        %1356 = vmatpush.bf16.msra.mxu0 %v1287
        %1357 = vmatpush.bf16.msra.mxu0 %v1284
        %1358 = vmatpush.bf16.msra.mxu0 %v1281
        %1359 = vmatmul.bf16.gmra.mxu0 %v1135
        %v1360 = vpop.f32.mrf.mxu0
        %v1361 = vadd.f32 0.0, %v1360
        %v1362 = vpop.f32.mrf.mxu0
        %v1363 = vadd.f32 0.0, %v1362
        %1364 = vmatmul.bf16.gmra.mxu0 %v1138
        %v1365 = vpop.f32.mrf.mxu0
        %v1366 = vadd.f32 0.0, %v1365
        %v1367 = vpop.f32.mrf.mxu0
        %1368 = vdwg.mxu0
        %s1369 = scalar_lea.vmem %s0, 288
        %v1370 = vld [vmem:[%s1369] sm:$0xff]
        %v1371 = vld [vmem:[%s1369 + $0x8] sm:$0xf]
        %v1372 = vld [vmem:[%s1369 + $0xc] sm:$0xff]
        %v1373 = vld [vmem:[%s1369 + $0x14] sm:$0xf]
        %v1374 = vld [vmem:[%s1369 + $0x18] sm:$0xff]
        %v1375 = vld [vmem:[%s1369 + $0x20] sm:$0xf]
        %v1376 = vld [vmem:[%s1369 + $0x24] sm:$0xff]
        %v1377 = vld [vmem:[%s1369 + $0x2c] sm:$0xf]
        %v1378 = vld [vmem:[%s1369 + $0x30] sm:$0xff]
        %v1379 = vld [vmem:[%s1369 + $0x38] sm:$0xf]
        %v1380 = vld [vmem:[%s1369 + $0x3c] sm:$0xff]
        %v1381 = vld [vmem:[%s1369 + $0x44] sm:$0xf]
        %v1382 = vld [vmem:[%s1369 + $0x48] sm:$0xff]
        %v1383 = vld [vmem:[%s1369 + $0x50] sm:$0xf]
        %v1384 = vld [vmem:[%s1369 + $0x54] sm:$0xff]
        %v1385 = vld [vmem:[%s1369 + $0x5c] sm:$0xf]
        %v1386 = vld [vmem:[%s1369 + $0x60] sm:$0xff]
        %v1387 = vld [vmem:[%s1369 + $0x68] sm:$0xf]
        %v1388 = vld [vmem:[%s1369 + $0x6c] sm:$0xff]
        %v1389 = vld [vmem:[%s1369 + $0x74] sm:$0xf]
        %v1390 = vld [vmem:[%s1369 + $0x78] sm:$0xff]
        %v1391 = vld [vmem:[%s1369 + $0x80] sm:$0xf]
        %v1392 = vld [vmem:[%s1369 + $0x84] sm:$0xff]
        %v1393 = vld [vmem:[%s1369 + $0x8c] sm:$0xf]
        %v1418 = vunpack.c.l.b16 %v1370
        %v1419 = vunpack.c.h.b16 %v1370
        %v1420 = vunpack.c.l.b16 %v1371
        %v1421 = vunpack.c.l.b16 %v1372
        %v1422 = vunpack.c.h.b16 %v1372
        %v1423 = vunpack.c.l.b16 %v1373
        %v1424 = vunpack.c.l.b16 %v1374
        %v1425 = vunpack.c.h.b16 %v1374
        %v1426 = vunpack.c.l.b16 %v1375
        %v1427 = vunpack.c.l.b16 %v1376
        %v1428 = vunpack.c.h.b16 %v1376
        %v1429 = vunpack.c.l.b16 %v1377
        %v1430 = vunpack.c.l.b16 %v1378
        %v1431 = vunpack.c.h.b16 %v1378
        %v1432 = vunpack.c.l.b16 %v1379
        %v1433 = vunpack.c.l.b16 %v1380
        %v1434 = vunpack.c.h.b16 %v1380
        %v1435 = vunpack.c.l.b16 %v1381
        %v1436 = vunpack.c.l.b16 %v1382
        %v1437 = vunpack.c.h.b16 %v1382
        %v1438 = vunpack.c.l.b16 %v1383
        %v1439 = vunpack.c.l.b16 %v1384
        %v1440 = vunpack.c.h.b16 %v1384
        %v1441 = vunpack.c.l.b16 %v1385
        %v1442 = vunpack.c.l.b16 %v1386
        %v1443 = vunpack.c.h.b16 %v1386
        %v1444 = vunpack.c.l.b16 %v1387
        %v1445 = vunpack.c.l.b16 %v1388
        %v1446 = vunpack.c.h.b16 %v1388
        %v1447 = vunpack.c.l.b16 %v1389
        %v1448 = vunpack.c.l.b16 %v1390
        %v1449 = vunpack.c.h.b16 %v1390
        %v1450 = vunpack.c.l.b16 %v1391
        %v1451 = vunpack.c.l.b16 %v1392
        %v1452 = vunpack.c.h.b16 %v1392
        %v1453 = vunpack.c.l.b16 %v1393
        %v1454 = vpack.c.b16 %v1421, %v1418
        %v1455 = vpack.c.b16 %v1422, %v1419
        %v1456 = vpack.c.b16 %v1423, %v1420
        %v1457 = vpack.c.b16 %v1427, %v1424
        %v1458 = vpack.c.b16 %v1428, %v1425
        %v1459 = vpack.c.b16 %v1429, %v1426
        %v1460 = vpack.c.b16 %v1433, %v1430
        %v1461 = vpack.c.b16 %v1434, %v1431
        %v1462 = vpack.c.b16 %v1435, %v1432
        %v1463 = vpack.c.b16 %v1439, %v1436
        %v1464 = vpack.c.b16 %v1440, %v1437
        %v1465 = vpack.c.b16 %v1441, %v1438
        %v1466 = vpack.c.b16 %v1445, %v1442
        %v1467 = vpack.c.b16 %v1446, %v1443
        %v1468 = vpack.c.b16 %v1447, %v1444
        %v1469 = vpack.c.b16 %v1451, %v1448
        %v1470 = vpack.c.b16 %v1452, %v1449
        %v1471 = vpack.c.b16 %v1453, %v1450
        %1490 = vmatpush.bf16.msra.mxu0 0
        %1491 = vmatpush.bf16.msra.mxu0 0
        %1492 = vmatpush.bf16.msra.mxu0 %v1469
        %1493 = vmatpush.bf16.msra.mxu0 %v1466
        %1494 = vmatpush.bf16.msra.mxu0 %v1463
        %1495 = vmatpush.bf16.msra.mxu0 %v1460
        %1496 = vmatpush.bf16.msra.mxu0 %v1457
        %1497 = vmatpush.bf16.msra.mxu0 %v1454
        %1498 = vmatmul.bf16.gmra.mxu0 %v1135
        %v1499 = vpop.f32.mrf.mxu0
        %v1500 = vadd.f32 0.0, %v1499
        %v1501 = vpop.f32.mrf.mxu0
        %v1502 = vadd.f32 0.0, %v1501
        %1503 = vmatmul.bf16.gmra.mxu0 %v1138
        %v1504 = vpop.f32.mrf.mxu0
        %v1505 = vadd.f32 0.0, %v1504
        %v1506 = vpop.f32.mrf.mxu0
        %1507 = vdwg.mxu0
        %1508 = vmatpush.bf16.msra.mxu0 0
        %1509 = vmatpush.bf16.msra.mxu0 0
        %1510 = vmatpush.bf16.msra.mxu0 %v1470
        %1511 = vmatpush.bf16.msra.mxu0 %v1467
        %1512 = vmatpush.bf16.msra.mxu0 %v1464
        %1513 = vmatpush.bf16.msra.mxu0 %v1461
        %1514 = vmatpush.bf16.msra.mxu0 %v1458
        %1515 = vmatpush.bf16.msra.mxu0 %v1455
        %1516 = vmatmul.bf16.gmra.mxu0 %v1135
        %v1517 = vpop.f32.mrf.mxu0
        %v1518 = vadd.f32 0.0, %v1517
        %v1519 = vpop.f32.mrf.mxu0
        %v1520 = vadd.f32 0.0, %v1519
        %1521 = vmatmul.bf16.gmra.mxu0 %v1138
        %v1522 = vpop.f32.mrf.mxu0
        %v1523 = vadd.f32 0.0, %v1522
        %v1524 = vpop.f32.mrf.mxu0
        %1525 = vdwg.mxu0
        %1526 = vmatpush.bf16.msra.mxu0 0
        %1527 = vmatpush.bf16.msra.mxu0 0
        %1528 = vmatpush.bf16.msra.mxu0 %v1471
        %1529 = vmatpush.bf16.msra.mxu0 %v1468
        %1530 = vmatpush.bf16.msra.mxu0 %v1465
        %1531 = vmatpush.bf16.msra.mxu0 %v1462
        %1532 = vmatpush.bf16.msra.mxu0 %v1459
        %1533 = vmatpush.bf16.msra.mxu0 %v1456
        %1534 = vmatmul.bf16.gmra.mxu0 %v1135
        %v1535 = vpop.f32.mrf.mxu0
        %v1536 = vadd.f32 0.0, %v1535
        %v1537 = vpop.f32.mrf.mxu0
        %v1538 = vadd.f32 0.0, %v1537
        %1539 = vmatmul.bf16.gmra.mxu0 %v1138
        %v1540 = vpop.f32.mrf.mxu0
        %v1541 = vadd.f32 0.0, %v1540
        %v1542 = vpop.f32.mrf.mxu0
        %1543 = vdwg.mxu0
        %s1544 = scalar_lea.vmem %s0, 432
        %v1545 = vld [vmem:[%s1544] sm:$0xff]
        %v1546 = vld [vmem:[%s1544 + $0x8] sm:$0xf]
        %v1547 = vld [vmem:[%s1544 + $0xc] sm:$0xff]
        %v1548 = vld [vmem:[%s1544 + $0x14] sm:$0xf]
        %v1549 = vld [vmem:[%s1544 + $0x18] sm:$0xff]
        %v1550 = vld [vmem:[%s1544 + $0x20] sm:$0xf]
        %v1551 = vld [vmem:[%s1544 + $0x24] sm:$0xff]
        %v1552 = vld [vmem:[%s1544 + $0x2c] sm:$0xf]
        %v1553 = vld [vmem:[%s1544 + $0x30] sm:$0xff]
        %v1554 = vld [vmem:[%s1544 + $0x38] sm:$0xf]
        %v1555 = vld [vmem:[%s1544 + $0x3c] sm:$0xff]
        %v1556 = vld [vmem:[%s1544 + $0x44] sm:$0xf]
        %v1557 = vld [vmem:[%s1544 + $0x48] sm:$0xff]
        %v1558 = vld [vmem:[%s1544 + $0x50] sm:$0xf]
        %v1559 = vld [vmem:[%s1544 + $0x54] sm:$0xff]
        %v1560 = vld [vmem:[%s1544 + $0x5c] sm:$0xf]
        %v1561 = vld [vmem:[%s1544 + $0x60] sm:$0xff]
        %v1562 = vld [vmem:[%s1544 + $0x68] sm:$0xf]
        %v1563 = vld [vmem:[%s1544 + $0x6c] sm:$0xff]
        %v1564 = vld [vmem:[%s1544 + $0x74] sm:$0xf]
        %v1565 = vld [vmem:[%s1544 + $0x78] sm:$0xff]
        %v1566 = vld [vmem:[%s1544 + $0x80] sm:$0xf]
        %v1567 = vld [vmem:[%s1544 + $0x84] sm:$0xff]
        %v1568 = vld [vmem:[%s1544 + $0x8c] sm:$0xf]
        %v1593 = vunpack.c.l.b16 %v1545
        %v1594 = vunpack.c.h.b16 %v1545
        %v1595 = vunpack.c.l.b16 %v1546
        %v1596 = vunpack.c.l.b16 %v1547
        %v1597 = vunpack.c.h.b16 %v1547
        %v1598 = vunpack.c.l.b16 %v1548
        %v1599 = vunpack.c.l.b16 %v1549
        %v1600 = vunpack.c.h.b16 %v1549
        %v1601 = vunpack.c.l.b16 %v1550
        %v1602 = vunpack.c.l.b16 %v1551
        %v1603 = vunpack.c.h.b16 %v1551
        %v1604 = vunpack.c.l.b16 %v1552
        %v1605 = vunpack.c.l.b16 %v1553
        %v1606 = vunpack.c.h.b16 %v1553
        %v1607 = vunpack.c.l.b16 %v1554
        %v1608 = vunpack.c.l.b16 %v1555
        %v1609 = vunpack.c.h.b16 %v1555
        %v1610 = vunpack.c.l.b16 %v1556
        %v1611 = vunpack.c.l.b16 %v1557
        %v1612 = vunpack.c.h.b16 %v1557
        %v1613 = vunpack.c.l.b16 %v1558
        %v1614 = vunpack.c.l.b16 %v1559
        %v1615 = vunpack.c.h.b16 %v1559
        %v1616 = vunpack.c.l.b16 %v1560
        %v1617 = vunpack.c.l.b16 %v1561
        %v1618 = vunpack.c.h.b16 %v1561
        %v1619 = vunpack.c.l.b16 %v1562
        %v1620 = vunpack.c.l.b16 %v1563
        %v1621 = vunpack.c.h.b16 %v1563
        %v1622 = vunpack.c.l.b16 %v1564
        %v1623 = vunpack.c.l.b16 %v1565
        %v1624 = vunpack.c.h.b16 %v1565
        %v1625 = vunpack.c.l.b16 %v1566
        %v1626 = vunpack.c.l.b16 %v1567
        %v1627 = vunpack.c.h.b16 %v1567
        %v1628 = vunpack.c.l.b16 %v1568
        %v1629 = vpack.c.b16 %v1596, %v1593
        %v1630 = vpack.c.b16 %v1597, %v1594
        %v1631 = vpack.c.b16 %v1598, %v1595
        %v1632 = vpack.c.b16 %v1602, %v1599
        %v1633 = vpack.c.b16 %v1603, %v1600
        %v1634 = vpack.c.b16 %v1604, %v1601
        %v1635 = vpack.c.b16 %v1608, %v1605
        %v1636 = vpack.c.b16 %v1609, %v1606
        %v1637 = vpack.c.b16 %v1610, %v1607
        %v1638 = vpack.c.b16 %v1614, %v1611
        %v1639 = vpack.c.b16 %v1615, %v1612
        %v1640 = vpack.c.b16 %v1616, %v1613
        %v1641 = vpack.c.b16 %v1620, %v1617
        %v1642 = vpack.c.b16 %v1621, %v1618
        %v1643 = vpack.c.b16 %v1622, %v1619
        %v1644 = vpack.c.b16 %v1626, %v1623
        %v1645 = vpack.c.b16 %v1627, %v1624
        %v1646 = vpack.c.b16 %v1628, %v1625
        %1665 = vmatpush.bf16.msra.mxu0 0
        %1666 = vmatpush.bf16.msra.mxu0 0
        %1667 = vmatpush.bf16.msra.mxu0 %v1644
        %1668 = vmatpush.bf16.msra.mxu0 %v1641
        %1669 = vmatpush.bf16.msra.mxu0 %v1638
        %1670 = vmatpush.bf16.msra.mxu0 %v1635
        %1671 = vmatpush.bf16.msra.mxu0 %v1632
        %1672 = vmatpush.bf16.msra.mxu0 %v1629
        %1673 = vmatmul.bf16.gmra.mxu0 %v1135
        %v1674 = vpop.f32.mrf.mxu0
        %v1675 = vadd.f32 0.0, %v1674
        %v1676 = vpop.f32.mrf.mxu0
        %v1677 = vadd.f32 0.0, %v1676
        %1678 = vmatmul.bf16.gmra.mxu0 %v1138
        %v1679 = vpop.f32.mrf.mxu0
        %v1680 = vadd.f32 0.0, %v1679
        %v1681 = vpop.f32.mrf.mxu0
        %1682 = vdwg.mxu0
        %1683 = vmatpush.bf16.msra.mxu0 0
        %1684 = vmatpush.bf16.msra.mxu0 0
        %1685 = vmatpush.bf16.msra.mxu0 %v1645
        %1686 = vmatpush.bf16.msra.mxu0 %v1642
        %1687 = vmatpush.bf16.msra.mxu0 %v1639
        %1688 = vmatpush.bf16.msra.mxu0 %v1636
        %1689 = vmatpush.bf16.msra.mxu0 %v1633
        %1690 = vmatpush.bf16.msra.mxu0 %v1630
        %1691 = vmatmul.bf16.gmra.mxu0 %v1135
        %v1692 = vpop.f32.mrf.mxu0
        %v1693 = vadd.f32 0.0, %v1692
        %v1694 = vpop.f32.mrf.mxu0
        %v1695 = vadd.f32 0.0, %v1694
        %1696 = vmatmul.bf16.gmra.mxu0 %v1138
        %v1697 = vpop.f32.mrf.mxu0
        %v1698 = vadd.f32 0.0, %v1697
        %v1699 = vpop.f32.mrf.mxu0
        %1700 = vdwg.mxu0
        %1701 = vmatpush.bf16.msra.mxu0 0
        %1702 = vmatpush.bf16.msra.mxu0 0
        %1703 = vmatpush.bf16.msra.mxu0 %v1646
        %1704 = vmatpush.bf16.msra.mxu0 %v1643
        %1705 = vmatpush.bf16.msra.mxu0 %v1640
        %1706 = vmatpush.bf16.msra.mxu0 %v1637
        %1707 = vmatpush.bf16.msra.mxu0 %v1634
        %1708 = vmatpush.bf16.msra.mxu0 %v1631
        %1709 = vmatmul.bf16.gmra.mxu0 %v1135
        %v1710 = vpop.f32.mrf.mxu0
        %v1711 = vadd.f32 0.0, %v1710
        %v1712 = vpop.f32.mrf.mxu0
        %v1713 = vadd.f32 0.0, %v1712
        %1714 = vmatmul.bf16.gmra.mxu0 %v1138
        %v1715 = vpop.f32.mrf.mxu0
        %v1716 = vadd.f32 0.0, %v1715
        %v1717 = vpop.f32.mrf.mxu0
        %1718 = vdwg.mxu0
        %1720 = vset.pattern.permute.xlu0 0
        %1721 = vperm.xlu0 %1720, %v934
        %v1722 = vpop.permute.xlu0 %1721
        %v1724 = vadd.f32 %v1722, %v1150
        %v1725 = vadd.f32 %v1722, %v1168
        %v1726 = vadd.f32 %v1722, %v1186
        %v1727 = vadd.f32 %v1724, %v1327
        %v1728 = vadd.f32 %v1725, %v1345
        %v1729 = vadd.f32 %v1726, %v1363
        %v1730 = vadd.f32 %v1727, %v1505
        %v1731 = vadd.f32 %v1728, %v1523
        %v1732 = vadd.f32 %v1729, %v1541
        %v1733 = vadd.f32 %v1722, %v1325
        %v1734 = vadd.f32 %v1722, %v1343
        %v1735 = vadd.f32 %v1722, %v1361
        %v1736 = vadd.f32 %v1733, %v1502
        %v1737 = vadd.f32 %v1734, %v1520
        %v1738 = vadd.f32 %v1735, %v1538
        %v1739 = vadd.f32 %v1736, %v1680
        %v1740 = vadd.f32 %v1737, %v1698
        %v1741 = vadd.f32 %v1738, %v1716
        %v1742 = vadd.f32 %v1722, %v1500
        %v1743 = vadd.f32 %v1722, %v1518
        %v1744 = vadd.f32 %v1722, %v1536
        %v1745 = vadd.f32 %v1742, %v1677
        %v1746 = vadd.f32 %v1743, %v1695
        %v1747 = vadd.f32 %v1744, %v1713
        %1751 = vrot.lane.b32.xlu0 %v1155, 127
        %v1752 = vpop.permute.xlu0 %1751
        %1753 = vrot.lane.b32.xlu0 %v1173, 127
        %v1754 = vpop.permute.xlu0 %1753
        %1755 = vrot.lane.b32.xlu0 %v1191, 127
        %v1756 = vpop.permute.xlu0 %1755
        %vm1757 = vcmask 1039360
        %v1758 = vsel %vm1757, %v1752, %v1754
        %v1759 = vsel %vm1757, %v1754, %v1756
        %v1763 = vadd.f32 %v1745, %v1758
        %v1764 = vadd.f32 %v1746, %v1759
        %v1765 = vadd.f32 %v1747, %v1756
        %v1766 = vadd.f32 %v1722, %v1675
        %v1767 = vadd.f32 %v1722, %v1693
        %v1768 = vadd.f32 %v1722, %v1711
        %1772 = vrot.lane.b32.xlu0 %v1152, 127
        %v1773 = vpop.permute.xlu0 %1772
        %1774 = vrot.lane.b32.xlu0 %v1170, 127
        %v1775 = vpop.permute.xlu0 %1774
        %1776 = vrot.lane.b32.xlu0 %v1188, 127
        %v1777 = vpop.permute.xlu0 %1776
        %v1778 = vsel %vm1757, %v1773, %v1775
        %v1779 = vsel %vm1757, %v1775, %v1777
        %v1783 = vadd.f32 %v1766, %v1778
        %v1784 = vadd.f32 %v1767, %v1779
        %v1785 = vadd.f32 %v1768, %v1777
        %1789 = vrot.lane.b32.xlu0 %v1330, 127
        %v1790 = vpop.permute.xlu0 %1789
        %1791 = vrot.lane.b32.xlu0 %v1348, 127
        %v1792 = vpop.permute.xlu0 %1791
        %1793 = vrot.lane.b32.xlu0 %v1366, 127
        %v1794 = vpop.permute.xlu0 %1793
        %v1795 = vsel %vm1757, %v1790, %v1792
        %v1796 = vsel %vm1757, %v1792, %v1794
        %v1800 = vadd.f32 %v1783, %v1795
        %v1801 = vadd.f32 %v1784, %v1796
        %v1802 = vadd.f32 %v1785, %v1794
        %v1803 = vmax.f32 %v1730, 0.0
        %v1804 = vmax.f32 %v1731, 0.0
        %v1805 = vmax.f32 %v1732, 0.0
        %v1806 = vmax.f32 %v1739, 0.0
        %v1807 = vmax.f32 %v1740, 0.0
        %v1808 = vmax.f32 %v1741, 0.0
        %v1809 = vmax.f32 %v1803, %v1806
        %v1810 = vmax.f32 %v1804, %v1807
        %v1811 = vmax.f32 %v1805, %v1808
        %v1812 = vmax.f32 %v1763, 0.0
        %v1813 = vmax.f32 %v1764, 0.0
        %v1814 = vmax.f32 %v1765, 0.0
        %v1815 = vmax.f32 %v1800, 0.0
        %v1816 = vmax.f32 %v1801, 0.0
        %v1817 = vmax.f32 %v1802, 0.0
        %v1818 = vmax.f32 %v1812, %v1815
        %v1819 = vmax.f32 %v1813, %v1816
        %v1820 = vmax.f32 %v1814, %v1817
        %v1821 = vpack.c.bf16 %v1809, %v1809
        %v1822 = vpack.c.bf16 %v1810, %v1810
        %v1823 = vpack.c.bf16 %v1811, %v1811
        %v1830 = vunpack.c.l.b16 %v935
        %v1831 = vunpack.c.l.b16 %v936
        %v1832 = vunpack.c.l.b16 %v937
        %v1833 = vunpack.c.l.b16 %v938
        %v1834 = vunpack.c.l.b16 %v939
        %v1835 = vunpack.c.l.b16 %v940
        %v1836 = vpack.c.b16 %v1831, %v1830
        %v1837 = vpack.c.b16 %v1833, %v1832
        %v1838 = vpack.c.b16 %v1835, %v1834
        %vm1839 = vcmask 64512
        %v1841 = vsel %vm1839, %v1836, 0
        %v1844 = vsel %vm1839, %v1837, 0
        %v1847 = vsel %vm1839, %v1838, 0
        %vm1849 = vcmask 1043456
        %v1851 = vsel %vm1849, %v1821, 0
        %v1854 = vsel %vm1849, %v1822, 0
        %v1857 = vsel %vm1849, %v1823, 0
        %1859 = vmatpush.bf16.msra.mxu0 0
        %1860 = vmatpush.bf16.msra.mxu0 0
        %1861 = vmatpush.bf16.msra.mxu0 0
        %1862 = vmatpush.bf16.msra.mxu0 0
        %1863 = vmatpush.bf16.msra.mxu0 0
        %1864 = vmatpush.bf16.msra.mxu0 0
        %1865 = vmatpush.bf16.msra.mxu0 0
        %1866 = vmatpush.bf16.msra.mxu0 %v1851
        %1867 = vmatmul.bf16.gmra.mxu0 %v1841
        %v1868 = vpop.f32.mrf.mxu0
        %v1869 = vadd.f32 0.0, %v1868
        %v1870 = vpop.f32.mrf.mxu0
        %v1871 = vadd.f32 0.0, %v1870
        %1872 = vmatmul.bf16.gmra.mxu0 %v1844
        %v1873 = vpop.f32.mrf.mxu0
        %v1874 = vadd.f32 0.0, %v1873
        %v1875 = vpop.f32.mrf.mxu0
        %v1876 = vadd.f32 0.0, %v1875
        %1877 = vmatmul.bf16.gmra.mxu0 %v1847
        %v1878 = vpop.f32.mrf.mxu0
        %v1879 = vadd.f32 0.0, %v1878
        %v1880 = vpop.f32.mrf.mxu0
        %v1881 = vadd.f32 0.0, %v1880
        %1882 = vdwg.mxu0
        %1883 = vmatpush.bf16.msra.mxu0 0
        %1884 = vmatpush.bf16.msra.mxu0 0
        %1885 = vmatpush.bf16.msra.mxu0 0
        %1886 = vmatpush.bf16.msra.mxu0 0
        %1887 = vmatpush.bf16.msra.mxu0 0
        %1888 = vmatpush.bf16.msra.mxu0 0
        %1889 = vmatpush.bf16.msra.mxu0 0
        %1890 = vmatpush.bf16.msra.mxu0 %v1854
        %1891 = vmatmul.bf16.gmra.mxu0 %v1841
        %v1892 = vpop.f32.mrf.mxu0
        %v1893 = vadd.f32 0.0, %v1892
        %v1894 = vpop.f32.mrf.mxu0
        %v1895 = vadd.f32 0.0, %v1894
        %1896 = vmatmul.bf16.gmra.mxu0 %v1844
        %v1897 = vpop.f32.mrf.mxu0
        %v1898 = vadd.f32 0.0, %v1897
        %v1899 = vpop.f32.mrf.mxu0
        %v1900 = vadd.f32 0.0, %v1899
        %1901 = vmatmul.bf16.gmra.mxu0 %v1847
        %v1902 = vpop.f32.mrf.mxu0
        %v1903 = vadd.f32 0.0, %v1902
        %v1904 = vpop.f32.mrf.mxu0
        %v1905 = vadd.f32 0.0, %v1904
        %1906 = vdwg.mxu0
        %1907 = vmatpush.bf16.msra.mxu0 0
        %1908 = vmatpush.bf16.msra.mxu0 0
        %1909 = vmatpush.bf16.msra.mxu0 0
        %1910 = vmatpush.bf16.msra.mxu0 0
        %1911 = vmatpush.bf16.msra.mxu0 0
        %1912 = vmatpush.bf16.msra.mxu0 0
        %1913 = vmatpush.bf16.msra.mxu0 0
        %1914 = vmatpush.bf16.msra.mxu0 %v1857
        %1915 = vmatmul.bf16.gmra.mxu0 %v1841
        %v1916 = vpop.f32.mrf.mxu0
        %v1917 = vadd.f32 0.0, %v1916
        %v1918 = vpop.f32.mrf.mxu0
        %v1919 = vadd.f32 0.0, %v1918
        %1920 = vmatmul.bf16.gmra.mxu0 %v1844
        %v1921 = vpop.f32.mrf.mxu0
        %v1922 = vadd.f32 0.0, %v1921
        %v1923 = vpop.f32.mrf.mxu0
        %v1924 = vadd.f32 0.0, %v1923
        %1925 = vmatmul.bf16.gmra.mxu0 %v1847
        %v1926 = vpop.f32.mrf.mxu0
        %v1927 = vadd.f32 0.0, %v1926
        %v1928 = vpop.f32.mrf.mxu0
        %v1929 = vadd.f32 0.0, %v1928
        %1930 = vdwg.mxu0
        %v1931 = vpack.c.bf16 %v1818, %v1818
        %v1932 = vpack.c.bf16 %v1819, %v1819
        %v1933 = vpack.c.bf16 %v1820, %v1820
        %v1935 = vsel %vm1849, %v1931, 0
        %v1938 = vsel %vm1849, %v1932, 0
        %v1941 = vsel %vm1849, %v1933, 0
        %1943 = vmatpush.bf16.msra.mxu0 0
        %1944 = vmatpush.bf16.msra.mxu0 0
        %1945 = vmatpush.bf16.msra.mxu0 0
        %1946 = vmatpush.bf16.msra.mxu0 0
        %1947 = vmatpush.bf16.msra.mxu0 0
        %1948 = vmatpush.bf16.msra.mxu0 0
        %1949 = vmatpush.bf16.msra.mxu0 0
        %1950 = vmatpush.bf16.msra.mxu0 %v1935
        %1951 = vmatmul.bf16.gmra.mxu0 %v1841
        %v1952 = vpop.f32.mrf.mxu0
        %v1953 = vadd.f32 0.0, %v1952
        %v1954 = vpop.f32.mrf.mxu0
        %v1955 = vadd.f32 0.0, %v1954
        %1956 = vmatmul.bf16.gmra.mxu0 %v1844
        %v1957 = vpop.f32.mrf.mxu0
        %v1958 = vadd.f32 0.0, %v1957
        %v1959 = vpop.f32.mrf.mxu0
        %v1960 = vadd.f32 0.0, %v1959
        %1961 = vmatmul.bf16.gmra.mxu0 %v1847
        %v1962 = vpop.f32.mrf.mxu0
        %v1963 = vadd.f32 0.0, %v1962
        %v1964 = vpop.f32.mrf.mxu0
        %v1965 = vadd.f32 0.0, %v1964
        %1966 = vdwg.mxu0
        %1967 = vmatpush.bf16.msra.mxu0 0
        %1968 = vmatpush.bf16.msra.mxu0 0
        %1969 = vmatpush.bf16.msra.mxu0 0
        %1970 = vmatpush.bf16.msra.mxu0 0
        %1971 = vmatpush.bf16.msra.mxu0 0
        %1972 = vmatpush.bf16.msra.mxu0 0
        %1973 = vmatpush.bf16.msra.mxu0 0
        %1974 = vmatpush.bf16.msra.mxu0 %v1938
        %1975 = vmatmul.bf16.gmra.mxu0 %v1841
        %v1976 = vpop.f32.mrf.mxu0
        %v1977 = vadd.f32 0.0, %v1976
        %v1978 = vpop.f32.mrf.mxu0
        %v1979 = vadd.f32 0.0, %v1978
        %1980 = vmatmul.bf16.gmra.mxu0 %v1844
        %v1981 = vpop.f32.mrf.mxu0
        %v1982 = vadd.f32 0.0, %v1981
        %v1983 = vpop.f32.mrf.mxu0
        %v1984 = vadd.f32 0.0, %v1983
        %1985 = vmatmul.bf16.gmra.mxu0 %v1847
        %v1986 = vpop.f32.mrf.mxu0
        %v1987 = vadd.f32 0.0, %v1986
        %v1988 = vpop.f32.mrf.mxu0
        %v1989 = vadd.f32 0.0, %v1988
        %1990 = vdwg.mxu0
        %1991 = vmatpush.bf16.msra.mxu0 0
        %1992 = vmatpush.bf16.msra.mxu0 0
        %1993 = vmatpush.bf16.msra.mxu0 0
        %1994 = vmatpush.bf16.msra.mxu0 0
        %1995 = vmatpush.bf16.msra.mxu0 0
        %1996 = vmatpush.bf16.msra.mxu0 0
        %1997 = vmatpush.bf16.msra.mxu0 0
        %1998 = vmatpush.bf16.msra.mxu0 %v1941
        %1999 = vmatmul.bf16.gmra.mxu0 %v1841
        %v2000 = vpop.f32.mrf.mxu0
        %v2001 = vadd.f32 0.0, %v2000
        %v2002 = vpop.f32.mrf.mxu0
        %v2003 = vadd.f32 0.0, %v2002
        %2004 = vmatmul.bf16.gmra.mxu0 %v1844
        %v2005 = vpop.f32.mrf.mxu0
        %v2006 = vadd.f32 0.0, %v2005
        %v2007 = vpop.f32.mrf.mxu0
        %v2008 = vadd.f32 0.0, %v2007
        %2009 = vmatmul.bf16.gmra.mxu0 %v1847
        %v2010 = vpop.f32.mrf.mxu0
        %v2011 = vadd.f32 0.0, %v2010
        %v2012 = vpop.f32.mrf.mxu0
        %v2013 = vadd.f32 0.0, %v2012
        %2014 = vdwg.mxu0
        %2021 = vrot.lane.b32.xlu0 %v1953, 1
        %v2022 = vpop.permute.xlu0 %2021
        %2023 = vrot.lane.b32.xlu0 %v1977, 1
        %v2024 = vpop.permute.xlu0 %2023
        %2025 = vrot.lane.b32.xlu0 %v2001, 1
        %v2026 = vpop.permute.xlu0 %2025
        %2027 = vrot.lane.b32.xlu0 %v1955, 1
        %v2028 = vpop.permute.xlu0 %2027
        %2029 = vrot.lane.b32.xlu0 %v1979, 1
        %v2030 = vpop.permute.xlu0 %2029
        %2031 = vrot.lane.b32.xlu0 %v2003, 1
        %v2032 = vpop.permute.xlu0 %2031
        %vm2033 = vcmask 7168
        %v2034 = vsel %vm2033, %v2022, %v2024
        %v2035 = vsel %vm2033, %v2024, %v2026
        %v2036 = vsel %vm2033, %v2028, %v2030
        %v2037 = vsel %vm2033, %v2030, %v2032
        %v2044 = vsel %vm2033, 0.0, %v2022
        %v2045 = vsel %vm2033, 0.0, %v2028
        %2047 = vset.pattern.permute.xlu0 0
        %2048 = vperm.xlu0 %2047, %v941
        %v2049 = vpop.permute.xlu0 %2048
        %2052 = vset.pattern.permute.xlu0 0
        %2053 = vperm.xlu0 %2052, %v942
        %v2054 = vpop.permute.xlu0 %2053
        %v2056 = vadd.f32 %v2049, %v2044
        %v2057 = vadd.f32 %v2049, %v2034
        %v2058 = vadd.f32 %v2049, %v2035
        %v2059 = vadd.f32 %v2054, %v2045
        %v2060 = vadd.f32 %v2054, %v2036
        %v2061 = vadd.f32 %v2054, %v2037
        %v2062 = vadd.f32 %v2056, %v1874
        %v2063 = vadd.f32 %v2057, %v1898
        %v2064 = vadd.f32 %v2058, %v1922
        %v2065 = vadd.f32 %v2059, %v1876
        %v2066 = vadd.f32 %v2060, %v1900
        %v2067 = vadd.f32 %v2061, %v1924
        %v2068 = vadd.f32 %v2062, %v1963
        %v2069 = vadd.f32 %v2063, %v1987
        %v2070 = vadd.f32 %v2064, %v2011
        %v2071 = vadd.f32 %v2065, %v1965
        %v2072 = vadd.f32 %v2066, %v1989
        %v2073 = vadd.f32 %v2067, %v2013
        %v2074 = vadd.f32 %v2049, %v1869
        %v2075 = vadd.f32 %v2049, %v1893
        %v2076 = vadd.f32 %v2049, %v1917
        %v2077 = vadd.f32 %v2054, %v1871
        %v2078 = vadd.f32 %v2054, %v1895
        %v2079 = vadd.f32 %v2054, %v1919
        %v2080 = vadd.f32 %v2074, %v1958
        %v2081 = vadd.f32 %v2075, %v1982
        %v2082 = vadd.f32 %v2076, %v2006
        %v2083 = vadd.f32 %v2077, %v1960
        %v2084 = vadd.f32 %v2078, %v1984
        %v2085 = vadd.f32 %v2079, %v2008
        %2092 = vrot.lane.b32.xlu0 %v1879, 127
        %v2093 = vpop.permute.xlu0 %2092
        %2094 = vrot.lane.b32.xlu0 %v1903, 127
        %v2095 = vpop.permute.xlu0 %2094
        %2096 = vrot.lane.b32.xlu0 %v1927, 127
        %v2097 = vpop.permute.xlu0 %2096
        %2098 = vrot.lane.b32.xlu0 %v1881, 127
        %v2099 = vpop.permute.xlu0 %2098
        %2100 = vrot.lane.b32.xlu0 %v1905, 127
        %v2101 = vpop.permute.xlu0 %2100
        %2102 = vrot.lane.b32.xlu0 %v1929, 127
        %v2103 = vpop.permute.xlu0 %2102
        %v2104 = vsel %vm1757, %v2093, %v2095
        %v2105 = vsel %vm1757, %v2095, %v2097
        %v2106 = vsel %vm1757, %v2099, %v2101
        %v2107 = vsel %vm1757, %v2101, %v2103
        %vm2114 = vcmask 760832
        %v2115 = vsel %vm2114, %v2097, 0.0
        %v2116 = vsel %vm2114, %v2103, 0.0
        %v2117 = vadd.f32 %v2080, %v2104
        %v2118 = vadd.f32 %v2081, %v2105
        %v2119 = vadd.f32 %v2082, %v2115
        %v2120 = vadd.f32 %v2083, %v2106
        %v2121 = vadd.f32 %v2084, %v2107
        %v2122 = vadd.f32 %v2085, %v2116
        %v2123 = vmax.f32 %v2068, 0.0
        %v2124 = vmax.f32 %v2069, 0.0
        %v2125 = vmax.f32 %v2070, 0.0
        %v2126 = vmax.f32 %v2071, 0.0
        %v2127 = vmax.f32 %v2072, 0.0
        %v2128 = vmax.f32 %v2073, 0.0
        %v2129 = vmax.f32 %v2117, 0.0
        %v2130 = vmax.f32 %v2118, 0.0
        %v2131 = vmax.f32 %v2119, 0.0
        %v2132 = vmax.f32 %v2120, 0.0
        %v2133 = vmax.f32 %v2121, 0.0
        %v2134 = vmax.f32 %v2122, 0.0
        %v2135 = vmax.f32 %v2123, %v2129
        %v2136 = vmax.f32 %v2124, %v2130
        %v2137 = vmax.f32 %v2125, %v2131
        %v2138 = vmax.f32 %v2126, %v2132
        %v2139 = vmax.f32 %v2127, %v2133
        %v2140 = vmax.f32 %v2128, %v2134
        %s2141 = scalar_lea.vmem %s0, 576
        %v2142 = vld [vmem:[%s2141] sm:$0xff]
        %v2143 = vld [vmem:[%s2141 + $0x8] sm:$0xf]
        %v2144 = vld [vmem:[%s2141 + $0xc] sm:$0xff]
        %v2145 = vld [vmem:[%s2141 + $0x14] sm:$0xf]
        %v2146 = vld [vmem:[%s2141 + $0x18] sm:$0xff]
        %v2147 = vld [vmem:[%s2141 + $0x20] sm:$0xf]
        %v2148 = vld [vmem:[%s2141 + $0x24] sm:$0xff]
        %v2149 = vld [vmem:[%s2141 + $0x2c] sm:$0xf]
        %v2150 = vld [vmem:[%s2141 + $0x30] sm:$0xff]
        %v2151 = vld [vmem:[%s2141 + $0x38] sm:$0xf]
        %v2152 = vld [vmem:[%s2141 + $0x3c] sm:$0xff]
        %v2153 = vld [vmem:[%s2141 + $0x44] sm:$0xf]
        %v2154 = vld [vmem:[%s2141 + $0x48] sm:$0xff]
        %v2155 = vld [vmem:[%s2141 + $0x50] sm:$0xf]
        %v2156 = vld [vmem:[%s2141 + $0x54] sm:$0xff]
        %v2157 = vld [vmem:[%s2141 + $0x5c] sm:$0xf]
        %v2158 = vld [vmem:[%s2141 + $0x60] sm:$0xff]
        %v2159 = vld [vmem:[%s2141 + $0x68] sm:$0xf]
        %v2160 = vld [vmem:[%s2141 + $0x6c] sm:$0xff]
        %v2161 = vld [vmem:[%s2141 + $0x74] sm:$0xf]
        %v2162 = vld [vmem:[%s2141 + $0x78] sm:$0xff]
        %v2163 = vld [vmem:[%s2141 + $0x80] sm:$0xf]
        %v2164 = vld [vmem:[%s2141 + $0x84] sm:$0xff]
        %v2165 = vld [vmem:[%s2141 + $0x8c] sm:$0xf]
        %v2190 = vunpack.c.l.b16 %v2142
        %v2191 = vunpack.c.h.b16 %v2142
        %v2192 = vunpack.c.l.b16 %v2143
        %v2193 = vunpack.c.l.b16 %v2144
        %v2194 = vunpack.c.h.b16 %v2144
        %v2195 = vunpack.c.l.b16 %v2145
        %v2196 = vunpack.c.l.b16 %v2146
        %v2197 = vunpack.c.h.b16 %v2146
        %v2198 = vunpack.c.l.b16 %v2147
        %v2199 = vunpack.c.l.b16 %v2148
        %v2200 = vunpack.c.h.b16 %v2148
        %v2201 = vunpack.c.l.b16 %v2149
        %v2202 = vunpack.c.l.b16 %v2150
        %v2203 = vunpack.c.h.b16 %v2150
        %v2204 = vunpack.c.l.b16 %v2151
        %v2205 = vunpack.c.l.b16 %v2152
        %v2206 = vunpack.c.h.b16 %v2152
        %v2207 = vunpack.c.l.b16 %v2153
        %v2208 = vunpack.c.l.b16 %v2154
        %v2209 = vunpack.c.h.b16 %v2154
        %v2210 = vunpack.c.l.b16 %v2155
        %v2211 = vunpack.c.l.b16 %v2156
        %v2212 = vunpack.c.h.b16 %v2156
        %v2213 = vunpack.c.l.b16 %v2157
        %v2214 = vunpack.c.l.b16 %v2158
        %v2215 = vunpack.c.h.b16 %v2158
        %v2216 = vunpack.c.l.b16 %v2159
        %v2217 = vunpack.c.l.b16 %v2160
        %v2218 = vunpack.c.h.b16 %v2160
        %v2219 = vunpack.c.l.b16 %v2161
        %v2220 = vunpack.c.l.b16 %v2162
        %v2221 = vunpack.c.h.b16 %v2162
        %v2222 = vunpack.c.l.b16 %v2163
        %v2223 = vunpack.c.l.b16 %v2164
        %v2224 = vunpack.c.h.b16 %v2164
        %v2225 = vunpack.c.l.b16 %v2165
        %v2226 = vpack.c.b16 %v2193, %v2190
        %v2227 = vpack.c.b16 %v2194, %v2191
        %v2228 = vpack.c.b16 %v2195, %v2192
        %v2229 = vpack.c.b16 %v2199, %v2196
        %v2230 = vpack.c.b16 %v2200, %v2197
        %v2231 = vpack.c.b16 %v2201, %v2198
        %v2232 = vpack.c.b16 %v2205, %v2202
        %v2233 = vpack.c.b16 %v2206, %v2203
        %v2234 = vpack.c.b16 %v2207, %v2204
        %v2235 = vpack.c.b16 %v2211, %v2208
        %v2236 = vpack.c.b16 %v2212, %v2209
        %v2237 = vpack.c.b16 %v2213, %v2210
        %v2238 = vpack.c.b16 %v2217, %v2214
        %v2239 = vpack.c.b16 %v2218, %v2215
        %v2240 = vpack.c.b16 %v2219, %v2216
        %v2241 = vpack.c.b16 %v2223, %v2220
        %v2242 = vpack.c.b16 %v2224, %v2221
        %v2243 = vpack.c.b16 %v2225, %v2222
        %2262 = vmatpush.bf16.msra.mxu0 0
        %2263 = vmatpush.bf16.msra.mxu0 0
        %2264 = vmatpush.bf16.msra.mxu0 %v2241
        %2265 = vmatpush.bf16.msra.mxu0 %v2238
        %2266 = vmatpush.bf16.msra.mxu0 %v2235
        %2267 = vmatpush.bf16.msra.mxu0 %v2232
        %2268 = vmatpush.bf16.msra.mxu0 %v2229
        %2269 = vmatpush.bf16.msra.mxu0 %v2226
        %2270 = vmatmul.bf16.gmra.mxu0 %v1135
        %v2271 = vpop.f32.mrf.mxu0
        %v2272 = vadd.f32 0.0, %v2271
        %v2273 = vpop.f32.mrf.mxu0
        %v2274 = vadd.f32 0.0, %v2273
        %2275 = vmatmul.bf16.gmra.mxu0 %v1138
        %v2276 = vpop.f32.mrf.mxu0
        %v2277 = vadd.f32 0.0, %v2276
        %v2278 = vpop.f32.mrf.mxu0
        %2279 = vdwg.mxu0
        %2280 = vmatpush.bf16.msra.mxu0 0
        %2281 = vmatpush.bf16.msra.mxu0 0
        %2282 = vmatpush.bf16.msra.mxu0 %v2242
        %2283 = vmatpush.bf16.msra.mxu0 %v2239
        %2284 = vmatpush.bf16.msra.mxu0 %v2236
        %2285 = vmatpush.bf16.msra.mxu0 %v2233
        %2286 = vmatpush.bf16.msra.mxu0 %v2230
        %2287 = vmatpush.bf16.msra.mxu0 %v2227
        %2288 = vmatmul.bf16.gmra.mxu0 %v1135
        %v2289 = vpop.f32.mrf.mxu0
        %v2290 = vadd.f32 0.0, %v2289
        %v2291 = vpop.f32.mrf.mxu0
        %v2292 = vadd.f32 0.0, %v2291
        %2293 = vmatmul.bf16.gmra.mxu0 %v1138
        %v2294 = vpop.f32.mrf.mxu0
        %v2295 = vadd.f32 0.0, %v2294
        %v2296 = vpop.f32.mrf.mxu0
        %2297 = vdwg.mxu0
        %2298 = vmatpush.bf16.msra.mxu0 0
        %2299 = vmatpush.bf16.msra.mxu0 0
        %2300 = vmatpush.bf16.msra.mxu0 %v2243
        %2301 = vmatpush.bf16.msra.mxu0 %v2240
        %2302 = vmatpush.bf16.msra.mxu0 %v2237
        %2303 = vmatpush.bf16.msra.mxu0 %v2234
        %2304 = vmatpush.bf16.msra.mxu0 %v2231
        %2305 = vmatpush.bf16.msra.mxu0 %v2228
        %2306 = vmatmul.bf16.gmra.mxu0 %v1135
        %v2307 = vpop.f32.mrf.mxu0
        %v2308 = vadd.f32 0.0, %v2307
        %v2309 = vpop.f32.mrf.mxu0
        %v2310 = vadd.f32 0.0, %v2309
        %2311 = vmatmul.bf16.gmra.mxu0 %v1138
        %v2312 = vpop.f32.mrf.mxu0
        %v2313 = vadd.f32 0.0, %v2312
        %v2314 = vpop.f32.mrf.mxu0
        %2315 = vdwg.mxu0
        %s2316 = scalar_lea.vmem %s0, 720
        %v2317 = vld [vmem:[%s2316] sm:$0xff]
        %v2318 = vld [vmem:[%s2316 + $0x8] sm:$0xf]
        %v2319 = vld [vmem:[%s2316 + $0xc] sm:$0xff]
        %v2320 = vld [vmem:[%s2316 + $0x14] sm:$0xf]
        %v2321 = vld [vmem:[%s2316 + $0x18] sm:$0xff]
        %v2322 = vld [vmem:[%s2316 + $0x20] sm:$0xf]
        %v2323 = vld [vmem:[%s2316 + $0x24] sm:$0xff]
        %v2324 = vld [vmem:[%s2316 + $0x2c] sm:$0xf]
        %v2325 = vld [vmem:[%s2316 + $0x30] sm:$0xff]
        %v2326 = vld [vmem:[%s2316 + $0x38] sm:$0xf]
        %v2327 = vld [vmem:[%s2316 + $0x3c] sm:$0xff]
        %v2328 = vld [vmem:[%s2316 + $0x44] sm:$0xf]
        %v2329 = vld [vmem:[%s2316 + $0x48] sm:$0xff]
        %v2330 = vld [vmem:[%s2316 + $0x50] sm:$0xf]
        %v2331 = vld [vmem:[%s2316 + $0x54] sm:$0xff]
        %v2332 = vld [vmem:[%s2316 + $0x5c] sm:$0xf]
        %v2333 = vld [vmem:[%s2316 + $0x60] sm:$0xff]
        %v2334 = vld [vmem:[%s2316 + $0x68] sm:$0xf]
        %v2335 = vld [vmem:[%s2316 + $0x6c] sm:$0xff]
        %v2336 = vld [vmem:[%s2316 + $0x74] sm:$0xf]
        %v2337 = vld [vmem:[%s2316 + $0x78] sm:$0xff]
        %v2338 = vld [vmem:[%s2316 + $0x80] sm:$0xf]
        %v2339 = vld [vmem:[%s2316 + $0x84] sm:$0xff]
        %v2340 = vld [vmem:[%s2316 + $0x8c] sm:$0xf]
        %v2365 = vunpack.c.l.b16 %v2317
        %v2366 = vunpack.c.h.b16 %v2317
        %v2367 = vunpack.c.l.b16 %v2318
        %v2368 = vunpack.c.l.b16 %v2319
        %v2369 = vunpack.c.h.b16 %v2319
        %v2370 = vunpack.c.l.b16 %v2320
        %v2371 = vunpack.c.l.b16 %v2321
        %v2372 = vunpack.c.h.b16 %v2321
        %v2373 = vunpack.c.l.b16 %v2322
        %v2374 = vunpack.c.l.b16 %v2323
        %v2375 = vunpack.c.h.b16 %v2323
        %v2376 = vunpack.c.l.b16 %v2324
        %v2377 = vunpack.c.l.b16 %v2325
        %v2378 = vunpack.c.h.b16 %v2325
        %v2379 = vunpack.c.l.b16 %v2326
        %v2380 = vunpack.c.l.b16 %v2327
        %v2381 = vunpack.c.h.b16 %v2327
        %v2382 = vunpack.c.l.b16 %v2328
        %v2383 = vunpack.c.l.b16 %v2329
        %v2384 = vunpack.c.h.b16 %v2329
        %v2385 = vunpack.c.l.b16 %v2330
        %v2386 = vunpack.c.l.b16 %v2331
        %v2387 = vunpack.c.h.b16 %v2331
        %v2388 = vunpack.c.l.b16 %v2332
        %v2389 = vunpack.c.l.b16 %v2333
        %v2390 = vunpack.c.h.b16 %v2333
        %v2391 = vunpack.c.l.b16 %v2334
        %v2392 = vunpack.c.l.b16 %v2335
        %v2393 = vunpack.c.h.b16 %v2335
        %v2394 = vunpack.c.l.b16 %v2336
        %v2395 = vunpack.c.l.b16 %v2337
        %v2396 = vunpack.c.h.b16 %v2337
        %v2397 = vunpack.c.l.b16 %v2338
        %v2398 = vunpack.c.l.b16 %v2339
        %v2399 = vunpack.c.h.b16 %v2339
        %v2400 = vunpack.c.l.b16 %v2340
        %v2401 = vpack.c.b16 %v2368, %v2365
        %v2402 = vpack.c.b16 %v2369, %v2366
        %v2403 = vpack.c.b16 %v2370, %v2367
        %v2404 = vpack.c.b16 %v2374, %v2371
        %v2405 = vpack.c.b16 %v2375, %v2372
        %v2406 = vpack.c.b16 %v2376, %v2373
        %v2407 = vpack.c.b16 %v2380, %v2377
        %v2408 = vpack.c.b16 %v2381, %v2378
        %v2409 = vpack.c.b16 %v2382, %v2379
        %v2410 = vpack.c.b16 %v2386, %v2383
        %v2411 = vpack.c.b16 %v2387, %v2384
        %v2412 = vpack.c.b16 %v2388, %v2385
        %v2413 = vpack.c.b16 %v2392, %v2389
        %v2414 = vpack.c.b16 %v2393, %v2390
        %v2415 = vpack.c.b16 %v2394, %v2391
        %v2416 = vpack.c.b16 %v2398, %v2395
        %v2417 = vpack.c.b16 %v2399, %v2396
        %v2418 = vpack.c.b16 %v2400, %v2397
        %2437 = vmatpush.bf16.msra.mxu0 0
        %2438 = vmatpush.bf16.msra.mxu0 0
        %2439 = vmatpush.bf16.msra.mxu0 %v2416
        %2440 = vmatpush.bf16.msra.mxu0 %v2413
        %2441 = vmatpush.bf16.msra.mxu0 %v2410
        %2442 = vmatpush.bf16.msra.mxu0 %v2407
        %2443 = vmatpush.bf16.msra.mxu0 %v2404
        %2444 = vmatpush.bf16.msra.mxu0 %v2401
        %2445 = vmatmul.bf16.gmra.mxu0 %v1135
        %v2446 = vpop.f32.mrf.mxu0
        %v2447 = vadd.f32 0.0, %v2446
        %v2448 = vpop.f32.mrf.mxu0
        %v2449 = vadd.f32 0.0, %v2448
        %2450 = vmatmul.bf16.gmra.mxu0 %v1138
        %v2451 = vpop.f32.mrf.mxu0
        %v2452 = vadd.f32 0.0, %v2451
        %v2453 = vpop.f32.mrf.mxu0
        %2454 = vdwg.mxu0
        %2455 = vmatpush.bf16.msra.mxu0 0
        %2456 = vmatpush.bf16.msra.mxu0 0
        %2457 = vmatpush.bf16.msra.mxu0 %v2417
        %2458 = vmatpush.bf16.msra.mxu0 %v2414
        %2459 = vmatpush.bf16.msra.mxu0 %v2411
        %2460 = vmatpush.bf16.msra.mxu0 %v2408
        %2461 = vmatpush.bf16.msra.mxu0 %v2405
        %2462 = vmatpush.bf16.msra.mxu0 %v2402
        %2463 = vmatmul.bf16.gmra.mxu0 %v1135
        %v2464 = vpop.f32.mrf.mxu0
        %v2465 = vadd.f32 0.0, %v2464
        %v2466 = vpop.f32.mrf.mxu0
        %v2467 = vadd.f32 0.0, %v2466
        %2468 = vmatmul.bf16.gmra.mxu0 %v1138
        %v2469 = vpop.f32.mrf.mxu0
        %v2470 = vadd.f32 0.0, %v2469
        %v2471 = vpop.f32.mrf.mxu0
        %2472 = vdwg.mxu0
        %2473 = vmatpush.bf16.msra.mxu0 0
        %2474 = vmatpush.bf16.msra.mxu0 0
        %2475 = vmatpush.bf16.msra.mxu0 %v2418
        %2476 = vmatpush.bf16.msra.mxu0 %v2415
        %2477 = vmatpush.bf16.msra.mxu0 %v2412
        %2478 = vmatpush.bf16.msra.mxu0 %v2409
        %2479 = vmatpush.bf16.msra.mxu0 %v2406
        %2480 = vmatpush.bf16.msra.mxu0 %v2403
        %2481 = vmatmul.bf16.gmra.mxu0 %v1135
        %v2482 = vpop.f32.mrf.mxu0
        %v2483 = vadd.f32 0.0, %v2482
        %v2484 = vpop.f32.mrf.mxu0
        %v2485 = vadd.f32 0.0, %v2484
        %2486 = vmatmul.bf16.gmra.mxu0 %v1138
        %v2487 = vpop.f32.mrf.mxu0
        %v2488 = vadd.f32 0.0, %v2487
        %v2489 = vpop.f32.mrf.mxu0
        %2490 = vdwg.mxu0
        %s2491 = scalar_lea.vmem %s0, 864
        %v2492 = vld [vmem:[%s2491] sm:$0xff]
        %v2493 = vld [vmem:[%s2491 + $0x8] sm:$0xf]
        %v2494 = vld [vmem:[%s2491 + $0xc] sm:$0xff]
        %v2495 = vld [vmem:[%s2491 + $0x14] sm:$0xf]
        %v2496 = vld [vmem:[%s2491 + $0x18] sm:$0xff]
        %v2497 = vld [vmem:[%s2491 + $0x20] sm:$0xf]
        %v2498 = vld [vmem:[%s2491 + $0x24] sm:$0xff]
        %v2499 = vld [vmem:[%s2491 + $0x2c] sm:$0xf]
        %v2500 = vld [vmem:[%s2491 + $0x30] sm:$0xff]
        %v2501 = vld [vmem:[%s2491 + $0x38] sm:$0xf]
        %v2502 = vld [vmem:[%s2491 + $0x3c] sm:$0xff]
        %v2503 = vld [vmem:[%s2491 + $0x44] sm:$0xf]
        %v2504 = vld [vmem:[%s2491 + $0x48] sm:$0xff]
        %v2505 = vld [vmem:[%s2491 + $0x50] sm:$0xf]
        %v2506 = vld [vmem:[%s2491 + $0x54] sm:$0xff]
        %v2507 = vld [vmem:[%s2491 + $0x5c] sm:$0xf]
        %v2508 = vld [vmem:[%s2491 + $0x60] sm:$0xff]
        %v2509 = vld [vmem:[%s2491 + $0x68] sm:$0xf]
        %v2510 = vld [vmem:[%s2491 + $0x6c] sm:$0xff]
        %v2511 = vld [vmem:[%s2491 + $0x74] sm:$0xf]
        %v2512 = vld [vmem:[%s2491 + $0x78] sm:$0xff]
        %v2513 = vld [vmem:[%s2491 + $0x80] sm:$0xf]
        %v2514 = vld [vmem:[%s2491 + $0x84] sm:$0xff]
        %v2515 = vld [vmem:[%s2491 + $0x8c] sm:$0xf]
        %v2540 = vunpack.c.l.b16 %v2492
        %v2541 = vunpack.c.h.b16 %v2492
        %v2542 = vunpack.c.l.b16 %v2493
        %v2543 = vunpack.c.l.b16 %v2494
        %v2544 = vunpack.c.h.b16 %v2494
        %v2545 = vunpack.c.l.b16 %v2495
        %v2546 = vunpack.c.l.b16 %v2496
        %v2547 = vunpack.c.h.b16 %v2496
        %v2548 = vunpack.c.l.b16 %v2497
        %v2549 = vunpack.c.l.b16 %v2498
        %v2550 = vunpack.c.h.b16 %v2498
        %v2551 = vunpack.c.l.b16 %v2499
        %v2552 = vunpack.c.l.b16 %v2500
        %v2553 = vunpack.c.h.b16 %v2500
        %v2554 = vunpack.c.l.b16 %v2501
        %v2555 = vunpack.c.l.b16 %v2502
        %v2556 = vunpack.c.h.b16 %v2502
        %v2557 = vunpack.c.l.b16 %v2503
        %v2558 = vunpack.c.l.b16 %v2504
        %v2559 = vunpack.c.h.b16 %v2504
        %v2560 = vunpack.c.l.b16 %v2505
        %v2561 = vunpack.c.l.b16 %v2506
        %v2562 = vunpack.c.h.b16 %v2506
        %v2563 = vunpack.c.l.b16 %v2507
        %v2564 = vunpack.c.l.b16 %v2508
        %v2565 = vunpack.c.h.b16 %v2508
        %v2566 = vunpack.c.l.b16 %v2509
        %v2567 = vunpack.c.l.b16 %v2510
        %v2568 = vunpack.c.h.b16 %v2510
        %v2569 = vunpack.c.l.b16 %v2511
        %v2570 = vunpack.c.l.b16 %v2512
        %v2571 = vunpack.c.h.b16 %v2512
        %v2572 = vunpack.c.l.b16 %v2513
        %v2573 = vunpack.c.l.b16 %v2514
        %v2574 = vunpack.c.h.b16 %v2514
        %v2575 = vunpack.c.l.b16 %v2515
        %v2576 = vpack.c.b16 %v2543, %v2540
        %v2577 = vpack.c.b16 %v2544, %v2541
        %v2578 = vpack.c.b16 %v2545, %v2542
        %v2579 = vpack.c.b16 %v2549, %v2546
        %v2580 = vpack.c.b16 %v2550, %v2547
        %v2581 = vpack.c.b16 %v2551, %v2548
        %v2582 = vpack.c.b16 %v2555, %v2552
        %v2583 = vpack.c.b16 %v2556, %v2553
        %v2584 = vpack.c.b16 %v2557, %v2554
        %v2585 = vpack.c.b16 %v2561, %v2558
        %v2586 = vpack.c.b16 %v2562, %v2559
        %v2587 = vpack.c.b16 %v2563, %v2560
        %v2588 = vpack.c.b16 %v2567, %v2564
        %v2589 = vpack.c.b16 %v2568, %v2565
        %v2590 = vpack.c.b16 %v2569, %v2566
        %v2591 = vpack.c.b16 %v2573, %v2570
        %v2592 = vpack.c.b16 %v2574, %v2571
        %v2593 = vpack.c.b16 %v2575, %v2572
        %2612 = vmatpush.bf16.msra.mxu0 0
        %2613 = vmatpush.bf16.msra.mxu0 0
        %2614 = vmatpush.bf16.msra.mxu0 %v2591
        %2615 = vmatpush.bf16.msra.mxu0 %v2588
        %2616 = vmatpush.bf16.msra.mxu0 %v2585
        %2617 = vmatpush.bf16.msra.mxu0 %v2582
        %2618 = vmatpush.bf16.msra.mxu0 %v2579
        %2619 = vmatpush.bf16.msra.mxu0 %v2576
        %2620 = vmatmul.bf16.gmra.mxu0 %v1135
        %v2621 = vpop.f32.mrf.mxu0
        %v2622 = vadd.f32 0.0, %v2621
        %v2623 = vpop.f32.mrf.mxu0
        %v2624 = vadd.f32 0.0, %v2623
        %2625 = vmatmul.bf16.gmra.mxu0 %v1138
        %v2626 = vpop.f32.mrf.mxu0
        %v2627 = vadd.f32 0.0, %v2626
        %v2628 = vpop.f32.mrf.mxu0
        %2629 = vdwg.mxu0
        %2630 = vmatpush.bf16.msra.mxu0 0
        %2631 = vmatpush.bf16.msra.mxu0 0
        %2632 = vmatpush.bf16.msra.mxu0 %v2592
        %2633 = vmatpush.bf16.msra.mxu0 %v2589
        %2634 = vmatpush.bf16.msra.mxu0 %v2586
        %2635 = vmatpush.bf16.msra.mxu0 %v2583
        %2636 = vmatpush.bf16.msra.mxu0 %v2580
        %2637 = vmatpush.bf16.msra.mxu0 %v2577
        %2638 = vmatmul.bf16.gmra.mxu0 %v1135
        %v2639 = vpop.f32.mrf.mxu0
        %v2640 = vadd.f32 0.0, %v2639
        %v2641 = vpop.f32.mrf.mxu0
        %v2642 = vadd.f32 0.0, %v2641
        %2643 = vmatmul.bf16.gmra.mxu0 %v1138
        %v2644 = vpop.f32.mrf.mxu0
        %v2645 = vadd.f32 0.0, %v2644
        %v2646 = vpop.f32.mrf.mxu0
        %2647 = vdwg.mxu0
        %2648 = vmatpush.bf16.msra.mxu0 0
        %2649 = vmatpush.bf16.msra.mxu0 0
        %2650 = vmatpush.bf16.msra.mxu0 %v2593
        %2651 = vmatpush.bf16.msra.mxu0 %v2590
        %2652 = vmatpush.bf16.msra.mxu0 %v2587
        %2653 = vmatpush.bf16.msra.mxu0 %v2584
        %2654 = vmatpush.bf16.msra.mxu0 %v2581
        %2655 = vmatpush.bf16.msra.mxu0 %v2578
        %2656 = vmatmul.bf16.gmra.mxu0 %v1135
        %v2657 = vpop.f32.mrf.mxu0
        %v2658 = vadd.f32 0.0, %v2657
        %v2659 = vpop.f32.mrf.mxu0
        %v2660 = vadd.f32 0.0, %v2659
        %2661 = vmatmul.bf16.gmra.mxu0 %v1138
        %v2662 = vpop.f32.mrf.mxu0
        %v2663 = vadd.f32 0.0, %v2662
        %v2664 = vpop.f32.mrf.mxu0
        %2665 = vdwg.mxu0
        %s2666 = scalar_lea.vmem %s0, 1008
        %v2667 = vld [vmem:[%s2666] sm:$0xff]
        %v2668 = vld [vmem:[%s2666 + $0x8] sm:$0xf]
        %v2669 = vld [vmem:[%s2666 + $0xc] sm:$0xff]
        %v2670 = vld [vmem:[%s2666 + $0x14] sm:$0xf]
        %v2671 = vld [vmem:[%s2666 + $0x18] sm:$0xff]
        %v2672 = vld [vmem:[%s2666 + $0x20] sm:$0xf]
        %v2673 = vld [vmem:[%s2666 + $0x24] sm:$0xff]
        %v2674 = vld [vmem:[%s2666 + $0x2c] sm:$0xf]
        %v2675 = vld [vmem:[%s2666 + $0x30] sm:$0xff]
        %v2676 = vld [vmem:[%s2666 + $0x38] sm:$0xf]
        %v2677 = vld [vmem:[%s2666 + $0x3c] sm:$0xff]
        %v2678 = vld [vmem:[%s2666 + $0x44] sm:$0xf]
        %v2679 = vld [vmem:[%s2666 + $0x48] sm:$0xff]
        %v2680 = vld [vmem:[%s2666 + $0x50] sm:$0xf]
        %v2681 = vld [vmem:[%s2666 + $0x54] sm:$0xff]
        %v2682 = vld [vmem:[%s2666 + $0x5c] sm:$0xf]
        %v2683 = vld [vmem:[%s2666 + $0x60] sm:$0xff]
        %v2684 = vld [vmem:[%s2666 + $0x68] sm:$0xf]
        %v2685 = vld [vmem:[%s2666 + $0x6c] sm:$0xff]
        %v2686 = vld [vmem:[%s2666 + $0x74] sm:$0xf]
        %v2687 = vld [vmem:[%s2666 + $0x78] sm:$0xff]
        %v2688 = vld [vmem:[%s2666 + $0x80] sm:$0xf]
        %v2689 = vld [vmem:[%s2666 + $0x84] sm:$0xff]
        %v2690 = vld [vmem:[%s2666 + $0x8c] sm:$0xf]
        %v2715 = vunpack.c.l.b16 %v2667
        %v2716 = vunpack.c.h.b16 %v2667
        %v2717 = vunpack.c.l.b16 %v2668
        %v2718 = vunpack.c.l.b16 %v2669
        %v2719 = vunpack.c.h.b16 %v2669
        %v2720 = vunpack.c.l.b16 %v2670
        %v2721 = vunpack.c.l.b16 %v2671
        %v2722 = vunpack.c.h.b16 %v2671
        %v2723 = vunpack.c.l.b16 %v2672
        %v2724 = vunpack.c.l.b16 %v2673
        %v2725 = vunpack.c.h.b16 %v2673
        %v2726 = vunpack.c.l.b16 %v2674
        %v2727 = vunpack.c.l.b16 %v2675
        %v2728 = vunpack.c.h.b16 %v2675
        %v2729 = vunpack.c.l.b16 %v2676
        %v2730 = vunpack.c.l.b16 %v2677
        %v2731 = vunpack.c.h.b16 %v2677
        %v2732 = vunpack.c.l.b16 %v2678
        %v2733 = vunpack.c.l.b16 %v2679
        %v2734 = vunpack.c.h.b16 %v2679
        %v2735 = vunpack.c.l.b16 %v2680
        %v2736 = vunpack.c.l.b16 %v2681
        %v2737 = vunpack.c.h.b16 %v2681
        %v2738 = vunpack.c.l.b16 %v2682
        %v2739 = vunpack.c.l.b16 %v2683
        %v2740 = vunpack.c.h.b16 %v2683
        %v2741 = vunpack.c.l.b16 %v2684
        %v2742 = vunpack.c.l.b16 %v2685
        %v2743 = vunpack.c.h.b16 %v2685
        %v2744 = vunpack.c.l.b16 %v2686
        %v2745 = vunpack.c.l.b16 %v2687
        %v2746 = vunpack.c.h.b16 %v2687
        %v2747 = vunpack.c.l.b16 %v2688
        %v2748 = vunpack.c.l.b16 %v2689
        %v2749 = vunpack.c.h.b16 %v2689
        %v2750 = vunpack.c.l.b16 %v2690
        %v2751 = vpack.c.b16 %v2718, %v2715
        %v2752 = vpack.c.b16 %v2719, %v2716
        %v2753 = vpack.c.b16 %v2720, %v2717
        %v2754 = vpack.c.b16 %v2724, %v2721
        %v2755 = vpack.c.b16 %v2725, %v2722
        %v2756 = vpack.c.b16 %v2726, %v2723
        %v2757 = vpack.c.b16 %v2730, %v2727
        %v2758 = vpack.c.b16 %v2731, %v2728
        %v2759 = vpack.c.b16 %v2732, %v2729
        %v2760 = vpack.c.b16 %v2736, %v2733
        %v2761 = vpack.c.b16 %v2737, %v2734
        %v2762 = vpack.c.b16 %v2738, %v2735
        %v2763 = vpack.c.b16 %v2742, %v2739
        %v2764 = vpack.c.b16 %v2743, %v2740
        %v2765 = vpack.c.b16 %v2744, %v2741
        %v2766 = vpack.c.b16 %v2748, %v2745
        %v2767 = vpack.c.b16 %v2749, %v2746
        %v2768 = vpack.c.b16 %v2750, %v2747
        %2787 = vmatpush.bf16.msra.mxu0 0
        %2788 = vmatpush.bf16.msra.mxu0 0
        %2789 = vmatpush.bf16.msra.mxu0 %v2766
        %2790 = vmatpush.bf16.msra.mxu0 %v2763
        %2791 = vmatpush.bf16.msra.mxu0 %v2760
        %2792 = vmatpush.bf16.msra.mxu0 %v2757
        %2793 = vmatpush.bf16.msra.mxu0 %v2754
        %2794 = vmatpush.bf16.msra.mxu0 %v2751
        %2795 = vmatmul.bf16.gmra.mxu0 %v1135
        %v2796 = vpop.f32.mrf.mxu0
        %v2797 = vadd.f32 0.0, %v2796
        %v2798 = vpop.f32.mrf.mxu0
        %v2799 = vadd.f32 0.0, %v2798
        %2800 = vmatmul.bf16.gmra.mxu0 %v1138
        %v2801 = vpop.f32.mrf.mxu0
        %v2802 = vadd.f32 0.0, %v2801
        %v2803 = vpop.f32.mrf.mxu0
        %2804 = vdwg.mxu0
        %2805 = vmatpush.bf16.msra.mxu0 0
        %2806 = vmatpush.bf16.msra.mxu0 0
        %2807 = vmatpush.bf16.msra.mxu0 %v2767
        %2808 = vmatpush.bf16.msra.mxu0 %v2764
        %2809 = vmatpush.bf16.msra.mxu0 %v2761
        %2810 = vmatpush.bf16.msra.mxu0 %v2758
        %2811 = vmatpush.bf16.msra.mxu0 %v2755
        %2812 = vmatpush.bf16.msra.mxu0 %v2752
        %2813 = vmatmul.bf16.gmra.mxu0 %v1135
        %v2814 = vpop.f32.mrf.mxu0
        %v2815 = vadd.f32 0.0, %v2814
        %v2816 = vpop.f32.mrf.mxu0
        %v2817 = vadd.f32 0.0, %v2816
        %2818 = vmatmul.bf16.gmra.mxu0 %v1138
        %v2819 = vpop.f32.mrf.mxu0
        %v2820 = vadd.f32 0.0, %v2819
        %v2821 = vpop.f32.mrf.mxu0
        %2822 = vdwg.mxu0
        %2823 = vmatpush.bf16.msra.mxu0 0
        %2824 = vmatpush.bf16.msra.mxu0 0
        %2825 = vmatpush.bf16.msra.mxu0 %v2768
        %2826 = vmatpush.bf16.msra.mxu0 %v2765
        %2827 = vmatpush.bf16.msra.mxu0 %v2762
        %2828 = vmatpush.bf16.msra.mxu0 %v2759
        %2829 = vmatpush.bf16.msra.mxu0 %v2756
        %2830 = vmatpush.bf16.msra.mxu0 %v2753
        %2831 = vmatmul.bf16.gmra.mxu0 %v1135
        %v2832 = vpop.f32.mrf.mxu0
        %v2833 = vadd.f32 0.0, %v2832
        %v2834 = vpop.f32.mrf.mxu0
        %v2835 = vadd.f32 0.0, %v2834
        %2836 = vmatmul.bf16.gmra.mxu0 %v1138
        %v2837 = vpop.f32.mrf.mxu0
        %v2838 = vadd.f32 0.0, %v2837
        %v2839 = vpop.f32.mrf.mxu0
        %2840 = vdwg.mxu0
        %v2841 = vadd.f32 %v1722, %v2272
        %v2842 = vadd.f32 %v1722, %v2290
        %v2843 = vadd.f32 %v1722, %v2308
        %v2844 = vadd.f32 %v2841, %v2449
        %v2845 = vadd.f32 %v2842, %v2467
        %v2846 = vadd.f32 %v2843, %v2485
        %v2847 = vadd.f32 %v2844, %v2627
        %v2848 = vadd.f32 %v2845, %v2645
        %v2849 = vadd.f32 %v2846, %v2663
        %v2850 = vadd.f32 %v1722, %v2447
        %v2851 = vadd.f32 %v1722, %v2465
        %v2852 = vadd.f32 %v1722, %v2483
        %v2853 = vadd.f32 %v2850, %v2624
        %v2854 = vadd.f32 %v2851, %v2642
        %v2855 = vadd.f32 %v2852, %v2660
        %v2856 = vadd.f32 %v2853, %v2802
        %v2857 = vadd.f32 %v2854, %v2820
        %v2858 = vadd.f32 %v2855, %v2838
        %v2859 = vadd.f32 %v1722, %v2622
        %v2860 = vadd.f32 %v1722, %v2640
        %v2861 = vadd.f32 %v1722, %v2658
        %v2862 = vadd.f32 %v2859, %v2799
        %v2863 = vadd.f32 %v2860, %v2817
        %v2864 = vadd.f32 %v2861, %v2835
        %2868 = vrot.lane.b32.xlu0 %v2277, 127
        %v2869 = vpop.permute.xlu0 %2868
        %2870 = vrot.lane.b32.xlu0 %v2295, 127
        %v2871 = vpop.permute.xlu0 %2870
        %2872 = vrot.lane.b32.xlu0 %v2313, 127
        %v2873 = vpop.permute.xlu0 %2872
        %v2874 = vsel %vm1757, %v2869, %v2871
        %v2875 = vsel %vm1757, %v2871, %v2873
        %v2879 = vadd.f32 %v2862, %v2874
        %v2880 = vadd.f32 %v2863, %v2875
        %v2881 = vadd.f32 %v2864, %v2873
        %v2882 = vadd.f32 %v1722, %v2797
        %v2883 = vadd.f32 %v1722, %v2815
        %v2884 = vadd.f32 %v1722, %v2833
        %2888 = vrot.lane.b32.xlu0 %v2274, 127
        %v2889 = vpop.permute.xlu0 %2888
        %2890 = vrot.lane.b32.xlu0 %v2292, 127
        %v2891 = vpop.permute.xlu0 %2890
        %2892 = vrot.lane.b32.xlu0 %v2310, 127
        %v2893 = vpop.permute.xlu0 %2892
        %v2894 = vsel %vm1757, %v2889, %v2891
        %v2895 = vsel %vm1757, %v2891, %v2893
        %v2899 = vadd.f32 %v2882, %v2894
        %v2900 = vadd.f32 %v2883, %v2895
        %v2901 = vadd.f32 %v2884, %v2893
        %2905 = vrot.lane.b32.xlu0 %v2452, 127
        %v2906 = vpop.permute.xlu0 %2905
        %2907 = vrot.lane.b32.xlu0 %v2470, 127
        %v2908 = vpop.permute.xlu0 %2907
        %2909 = vrot.lane.b32.xlu0 %v2488, 127
        %v2910 = vpop.permute.xlu0 %2909
        %v2911 = vsel %vm1757, %v2906, %v2908
        %v2912 = vsel %vm1757, %v2908, %v2910
        %v2916 = vadd.f32 %v2899, %v2911
        %v2917 = vadd.f32 %v2900, %v2912
        %v2918 = vadd.f32 %v2901, %v2910
        %v2919 = vmax.f32 %v2847, 0.0
        %v2920 = vmax.f32 %v2848, 0.0
        %v2921 = vmax.f32 %v2849, 0.0
        %v2922 = vmax.f32 %v2856, 0.0
        %v2923 = vmax.f32 %v2857, 0.0
        %v2924 = vmax.f32 %v2858, 0.0
        %v2925 = vmax.f32 %v2919, %v2922
        %v2926 = vmax.f32 %v2920, %v2923
        %v2927 = vmax.f32 %v2921, %v2924
        %v2928 = vmax.f32 %v2879, 0.0
        %v2929 = vmax.f32 %v2880, 0.0
        %v2930 = vmax.f32 %v2881, 0.0
        %v2931 = vmax.f32 %v2916, 0.0
        %v2932 = vmax.f32 %v2917, 0.0
        %v2933 = vmax.f32 %v2918, 0.0
        %v2934 = vmax.f32 %v2928, %v2931
        %v2935 = vmax.f32 %v2929, %v2932
        %v2936 = vmax.f32 %v2930, %v2933
        %v2937 = vpack.c.bf16 %v2925, %v2925
        %v2938 = vpack.c.bf16 %v2926, %v2926
        %v2939 = vpack.c.bf16 %v2927, %v2927
        %v2941 = vsel %vm1849, %v2937, 0
        %v2944 = vsel %vm1849, %v2938, 0
        %v2947 = vsel %vm1849, %v2939, 0
        %2949 = vmatpush.bf16.msra.mxu0 0
        %2950 = vmatpush.bf16.msra.mxu0 0
        %2951 = vmatpush.bf16.msra.mxu0 0
        %2952 = vmatpush.bf16.msra.mxu0 0
        %2953 = vmatpush.bf16.msra.mxu0 0
        %2954 = vmatpush.bf16.msra.mxu0 0
        %2955 = vmatpush.bf16.msra.mxu0 0
        %2956 = vmatpush.bf16.msra.mxu0 %v2941
        %2957 = vmatmul.bf16.gmra.mxu0 %v1841
        %v2958 = vpop.f32.mrf.mxu0
        %v2959 = vadd.f32 0.0, %v2958
        %v2960 = vpop.f32.mrf.mxu0
        %v2961 = vadd.f32 0.0, %v2960
        %2962 = vmatmul.bf16.gmra.mxu0 %v1844
        %v2963 = vpop.f32.mrf.mxu0
        %v2964 = vadd.f32 0.0, %v2963
        %v2965 = vpop.f32.mrf.mxu0
        %v2966 = vadd.f32 0.0, %v2965
        %2967 = vmatmul.bf16.gmra.mxu0 %v1847
        %v2968 = vpop.f32.mrf.mxu0
        %v2969 = vadd.f32 0.0, %v2968
        %v2970 = vpop.f32.mrf.mxu0
        %v2971 = vadd.f32 0.0, %v2970
        %2972 = vdwg.mxu0
        %2973 = vmatpush.bf16.msra.mxu0 0
        %2974 = vmatpush.bf16.msra.mxu0 0
        %2975 = vmatpush.bf16.msra.mxu0 0
        %2976 = vmatpush.bf16.msra.mxu0 0
        %2977 = vmatpush.bf16.msra.mxu0 0
        %2978 = vmatpush.bf16.msra.mxu0 0
        %2979 = vmatpush.bf16.msra.mxu0 0
        %2980 = vmatpush.bf16.msra.mxu0 %v2944
        %2981 = vmatmul.bf16.gmra.mxu0 %v1841
        %v2982 = vpop.f32.mrf.mxu0
        %v2983 = vadd.f32 0.0, %v2982
        %v2984 = vpop.f32.mrf.mxu0
        %v2985 = vadd.f32 0.0, %v2984
        %2986 = vmatmul.bf16.gmra.mxu0 %v1844
        %v2987 = vpop.f32.mrf.mxu0
        %v2988 = vadd.f32 0.0, %v2987
        %v2989 = vpop.f32.mrf.mxu0
        %v2990 = vadd.f32 0.0, %v2989
        %2991 = vmatmul.bf16.gmra.mxu0 %v1847
        %v2992 = vpop.f32.mrf.mxu0
        %v2993 = vadd.f32 0.0, %v2992
        %v2994 = vpop.f32.mrf.mxu0
        %v2995 = vadd.f32 0.0, %v2994
        %2996 = vdwg.mxu0
        %2997 = vmatpush.bf16.msra.mxu0 0
        %2998 = vmatpush.bf16.msra.mxu0 0
        %2999 = vmatpush.bf16.msra.mxu0 0
        %3000 = vmatpush.bf16.msra.mxu0 0
        %3001 = vmatpush.bf16.msra.mxu0 0
        %3002 = vmatpush.bf16.msra.mxu0 0
        %3003 = vmatpush.bf16.msra.mxu0 0
        %3004 = vmatpush.bf16.msra.mxu0 %v2947
        %3005 = vmatmul.bf16.gmra.mxu0 %v1841
        %v3006 = vpop.f32.mrf.mxu0
        %v3007 = vadd.f32 0.0, %v3006
        %v3008 = vpop.f32.mrf.mxu0
        %v3009 = vadd.f32 0.0, %v3008
        %3010 = vmatmul.bf16.gmra.mxu0 %v1844
        %v3011 = vpop.f32.mrf.mxu0
        %v3012 = vadd.f32 0.0, %v3011
        %v3013 = vpop.f32.mrf.mxu0
        %v3014 = vadd.f32 0.0, %v3013
        %3015 = vmatmul.bf16.gmra.mxu0 %v1847
        %v3016 = vpop.f32.mrf.mxu0
        %v3017 = vadd.f32 0.0, %v3016
        %v3018 = vpop.f32.mrf.mxu0
        %v3019 = vadd.f32 0.0, %v3018
        %3020 = vdwg.mxu0
        %v3021 = vpack.c.bf16 %v2934, %v2934
        %v3022 = vpack.c.bf16 %v2935, %v2935
        %v3023 = vpack.c.bf16 %v2936, %v2936
        %v3025 = vsel %vm1849, %v3021, 0
        %v3028 = vsel %vm1849, %v3022, 0
        %v3031 = vsel %vm1849, %v3023, 0
        %3033 = vmatpush.bf16.msra.mxu0 0
        %3034 = vmatpush.bf16.msra.mxu0 0
        %3035 = vmatpush.bf16.msra.mxu0 0
        %3036 = vmatpush.bf16.msra.mxu0 0
        %3037 = vmatpush.bf16.msra.mxu0 0
        %3038 = vmatpush.bf16.msra.mxu0 0
        %3039 = vmatpush.bf16.msra.mxu0 0
        %3040 = vmatpush.bf16.msra.mxu0 %v3025
        %3041 = vmatmul.bf16.gmra.mxu0 %v1841
        %v3042 = vpop.f32.mrf.mxu0
        %v3043 = vadd.f32 0.0, %v3042
        %v3044 = vpop.f32.mrf.mxu0
        %v3045 = vadd.f32 0.0, %v3044
        %3046 = vmatmul.bf16.gmra.mxu0 %v1844
        %v3047 = vpop.f32.mrf.mxu0
        %v3048 = vadd.f32 0.0, %v3047
        %v3049 = vpop.f32.mrf.mxu0
        %v3050 = vadd.f32 0.0, %v3049
        %3051 = vmatmul.bf16.gmra.mxu0 %v1847
        %v3052 = vpop.f32.mrf.mxu0
        %v3053 = vadd.f32 0.0, %v3052
        %v3054 = vpop.f32.mrf.mxu0
        %v3055 = vadd.f32 0.0, %v3054
        %3056 = vdwg.mxu0
        %3057 = vmatpush.bf16.msra.mxu0 0
        %3058 = vmatpush.bf16.msra.mxu0 0
        %3059 = vmatpush.bf16.msra.mxu0 0
        %3060 = vmatpush.bf16.msra.mxu0 0
        %3061 = vmatpush.bf16.msra.mxu0 0
        %3062 = vmatpush.bf16.msra.mxu0 0
        %3063 = vmatpush.bf16.msra.mxu0 0
        %3064 = vmatpush.bf16.msra.mxu0 %v3028
        %3065 = vmatmul.bf16.gmra.mxu0 %v1841
        %v3066 = vpop.f32.mrf.mxu0
        %v3067 = vadd.f32 0.0, %v3066
        %v3068 = vpop.f32.mrf.mxu0
        %v3069 = vadd.f32 0.0, %v3068
        %3070 = vmatmul.bf16.gmra.mxu0 %v1844
        %v3071 = vpop.f32.mrf.mxu0
        %v3072 = vadd.f32 0.0, %v3071
        %v3073 = vpop.f32.mrf.mxu0
        %v3074 = vadd.f32 0.0, %v3073
        %3075 = vmatmul.bf16.gmra.mxu0 %v1847
        %v3076 = vpop.f32.mrf.mxu0
        %v3077 = vadd.f32 0.0, %v3076
        %v3078 = vpop.f32.mrf.mxu0
        %v3079 = vadd.f32 0.0, %v3078
        %3080 = vdwg.mxu0
        %3081 = vmatpush.bf16.msra.mxu0 0
        %3082 = vmatpush.bf16.msra.mxu0 0
        %3083 = vmatpush.bf16.msra.mxu0 0
        %3084 = vmatpush.bf16.msra.mxu0 0
        %3085 = vmatpush.bf16.msra.mxu0 0
        %3086 = vmatpush.bf16.msra.mxu0 0
        %3087 = vmatpush.bf16.msra.mxu0 0
        %3088 = vmatpush.bf16.msra.mxu0 %v3031
        %3089 = vmatmul.bf16.gmra.mxu0 %v1841
        %v3090 = vpop.f32.mrf.mxu0
        %v3091 = vadd.f32 0.0, %v3090
        %v3092 = vpop.f32.mrf.mxu0
        %v3093 = vadd.f32 0.0, %v3092
        %3094 = vmatmul.bf16.gmra.mxu0 %v1844
        %v3095 = vpop.f32.mrf.mxu0
        %v3096 = vadd.f32 0.0, %v3095
        %v3097 = vpop.f32.mrf.mxu0
        %v3098 = vadd.f32 0.0, %v3097
        %3099 = vmatmul.bf16.gmra.mxu0 %v1847
        %v3100 = vpop.f32.mrf.mxu0
        %v3101 = vadd.f32 0.0, %v3100
        %v3102 = vpop.f32.mrf.mxu0
        %v3103 = vadd.f32 0.0, %v3102
        %3104 = vdwg.mxu0
        %3111 = vrot.lane.b32.xlu0 %v3043, 1
        %v3112 = vpop.permute.xlu0 %3111
        %3113 = vrot.lane.b32.xlu0 %v3067, 1
        %v3114 = vpop.permute.xlu0 %3113
        %3115 = vrot.lane.b32.xlu0 %v3091, 1
        %v3116 = vpop.permute.xlu0 %3115
        %3117 = vrot.lane.b32.xlu0 %v3045, 1
        %v3118 = vpop.permute.xlu0 %3117
        %3119 = vrot.lane.b32.xlu0 %v3069, 1
        %v3120 = vpop.permute.xlu0 %3119
        %3121 = vrot.lane.b32.xlu0 %v3093, 1
        %v3122 = vpop.permute.xlu0 %3121
        %v3123 = vsel %vm2033, %v3112, %v3114
        %v3124 = vsel %vm2033, %v3114, %v3116
        %v3125 = vsel %vm2033, %v3118, %v3120
        %v3126 = vsel %vm2033, %v3120, %v3122
        %v3133 = vsel %vm2033, 0.0, %v3112
        %v3134 = vsel %vm2033, 0.0, %v3118
        %v3135 = vadd.f32 %v2049, %v3133
        %v3136 = vadd.f32 %v2049, %v3123
        %v3137 = vadd.f32 %v2049, %v3124
        %v3138 = vadd.f32 %v2054, %v3134
        %v3139 = vadd.f32 %v2054, %v3125
        %v3140 = vadd.f32 %v2054, %v3126
        %v3141 = vadd.f32 %v3135, %v2964
        %v3142 = vadd.f32 %v3136, %v2988
        %v3143 = vadd.f32 %v3137, %v3012
        %v3144 = vadd.f32 %v3138, %v2966
        %v3145 = vadd.f32 %v3139, %v2990
        %v3146 = vadd.f32 %v3140, %v3014
        %v3147 = vadd.f32 %v3141, %v3053
        %v3148 = vadd.f32 %v3142, %v3077
        %v3149 = vadd.f32 %v3143, %v3101
        %v3150 = vadd.f32 %v3144, %v3055
        %v3151 = vadd.f32 %v3145, %v3079
        %v3152 = vadd.f32 %v3146, %v3103
        %v3153 = vadd.f32 %v2049, %v2959
        %v3154 = vadd.f32 %v2049, %v2983
        %v3155 = vadd.f32 %v2049, %v3007
        %v3156 = vadd.f32 %v2054, %v2961
        %v3157 = vadd.f32 %v2054, %v2985
        %v3158 = vadd.f32 %v2054, %v3009
        %v3159 = vadd.f32 %v3153, %v3048
        %v3160 = vadd.f32 %v3154, %v3072
        %v3161 = vadd.f32 %v3155, %v3096
        %v3162 = vadd.f32 %v3156, %v3050
        %v3163 = vadd.f32 %v3157, %v3074
        %v3164 = vadd.f32 %v3158, %v3098
        %3171 = vrot.lane.b32.xlu0 %v2969, 127
        %v3172 = vpop.permute.xlu0 %3171
        %3173 = vrot.lane.b32.xlu0 %v2993, 127
        %v3174 = vpop.permute.xlu0 %3173
        %3175 = vrot.lane.b32.xlu0 %v3017, 127
        %v3176 = vpop.permute.xlu0 %3175
        %3177 = vrot.lane.b32.xlu0 %v2971, 127
        %v3178 = vpop.permute.xlu0 %3177
        %3179 = vrot.lane.b32.xlu0 %v2995, 127
        %v3180 = vpop.permute.xlu0 %3179
        %3181 = vrot.lane.b32.xlu0 %v3019, 127
        %v3182 = vpop.permute.xlu0 %3181
        %v3183 = vsel %vm1757, %v3172, %v3174
        %v3184 = vsel %vm1757, %v3174, %v3176
        %v3185 = vsel %vm1757, %v3178, %v3180
        %v3186 = vsel %vm1757, %v3180, %v3182
        %v3193 = vsel %vm2114, %v3176, 0.0
        %v3194 = vsel %vm2114, %v3182, 0.0
        %v3195 = vadd.f32 %v3159, %v3183
        %v3196 = vadd.f32 %v3160, %v3184
        %v3197 = vadd.f32 %v3161, %v3193
        %v3198 = vadd.f32 %v3162, %v3185
        %v3199 = vadd.f32 %v3163, %v3186
        %v3200 = vadd.f32 %v3164, %v3194
        %v3201 = vmax.f32 %v3147, 0.0
        %v3202 = vmax.f32 %v3148, 0.0
        %v3203 = vmax.f32 %v3149, 0.0
        %v3204 = vmax.f32 %v3150, 0.0
        %v3205 = vmax.f32 %v3151, 0.0
        %v3206 = vmax.f32 %v3152, 0.0
        %v3207 = vmax.f32 %v3195, 0.0
        %v3208 = vmax.f32 %v3196, 0.0
        %v3209 = vmax.f32 %v3197, 0.0
        %v3210 = vmax.f32 %v3198, 0.0
        %v3211 = vmax.f32 %v3199, 0.0
        %v3212 = vmax.f32 %v3200, 0.0
        %v3213 = vmax.f32 %v3201, %v3207
        %v3214 = vmax.f32 %v3202, %v3208
        %v3215 = vmax.f32 %v3203, %v3209
        %v3216 = vmax.f32 %v3204, %v3210
        %v3217 = vmax.f32 %v3205, %v3211
        %v3218 = vmax.f32 %v3206, %v3212
        %v3219 = vpack.c.bf16 %v2138, %v2135
        %v3220 = vpack.c.bf16 %v2139, %v2136
        %v3221 = vpack.c.bf16 %v2140, %v2137
        %vm3222 = vcmask 130048
        %v3224 = vsel %vm3222, 0.0, 0
        %3226 = vmatpush.msra.mxu0 0.0
        %3227 = vmatpush.msra.mxu0 0.0
        %3228 = vmatpush.msra.mxu0 0.0
        %3229 = vmatpush.msra.mxu0 0.0
        %3230 = vmatpush.msra.mxu0 0.0
        %3231 = vmatpush.msra.mxu0 0.0
        %3232 = vmatpush.msra.mxu0 0.0
        %3233 = vmatpush.msra.mxu0 0.0
        %3234 = vmatpush.msra.mxu0 0.0
        %3235 = vmatpush.msra.mxu0 0.0
        %3236 = vmatpush.msra.mxu0 0.0
        %3237 = vmatpush.msra.mxu0 0.0
        %3238 = vmatpush.msra.mxu0 0.0
        %3239 = vmatpush.msra.mxu0 0.0
        %3240 = vmatpush.msra.mxu0 %v988
        %3241 = vmatpush.msra.mxu0 %v987
        %3242 = vmatmul.f32.gmra.mxu0 %v3224
        %v3243 = vpop.f32.mrf.mxu0
        %v3244 = vadd.f32 0.0, %v3243
        %3245 = vmatmul.f32.gmra.mxu0 %v3224
        %v3246 = vpop.f32.mrf.mxu0
        %v3247 = vadd.f32 0.0, %v3246
        %3248 = vdwg.mxu0
        %v3293 = vunpack.c.l.b16 %v943
        %v3294 = vunpack.c.l.b16 %v944
        %v3295 = vunpack.c.l.b16 %v945
        %v3296 = vunpack.c.l.b16 %v946
        %v3297 = vunpack.c.l.b16 %v947
        %v3298 = vunpack.c.l.b16 %v948
        %v3299 = vunpack.c.l.b16 %v949
        %v3300 = vunpack.c.l.b16 %v950
        %v3301 = vunpack.c.l.b16 %v951
        %v3302 = vunpack.c.l.b16 %v952
        %v3303 = vunpack.c.l.b16 %v953
        %v3304 = vunpack.c.l.b16 %v954
        %v3305 = vunpack.c.l.b16 %v955
        %v3306 = vunpack.c.l.b16 %v956
        %v3307 = vunpack.c.l.b16 %v957
        %v3308 = vunpack.c.l.b16 %v958
        %v3309 = vunpack.c.l.b16 %v959
        %v3310 = vunpack.c.l.b16 %v960
        %v3311 = vunpack.c.l.b16 %v961
        %v3312 = vunpack.c.l.b16 %v962
        %v3313 = vunpack.c.l.b16 %v963
        %v3314 = vunpack.c.l.b16 %v964
        %v3315 = vunpack.c.l.b16 %v965
        %v3316 = vunpack.c.l.b16 %v966
        %v3317 = vunpack.c.l.b16 %v967
        %v3318 = vunpack.c.l.b16 %v968
        %v3319 = vunpack.c.l.b16 %v969
        %v3320 = vunpack.c.l.b16 %v970
        %v3321 = vunpack.c.l.b16 %v971
        %v3322 = vunpack.c.l.b16 %v972
        %v3323 = vunpack.c.l.b16 %v973
        %v3324 = vunpack.c.l.b16 %v974
        %v3325 = vunpack.c.l.b16 %v975
        %v3326 = vunpack.c.l.b16 %v976
        %v3327 = vunpack.c.l.b16 %v977
        %v3328 = vunpack.c.l.b16 %v978
        %v3329 = vunpack.c.l.b16 %v979
        %v3330 = vunpack.c.l.b16 %v980
        %v3331 = vunpack.c.l.b16 %v981
        %v3332 = vunpack.c.l.b16 %v982
        %v3333 = vunpack.c.l.b16 %v983
        %v3334 = vunpack.c.l.b16 %v984
        %v3335 = vunpack.c.l.b16 %v985
        %v3336 = vunpack.c.l.b16 %v986
        %v3337 = vpack.c.b16 %v3294, %v3293
        %v3338 = vpack.c.b16 %v3296, %v3295
        %v3339 = vpack.c.b16 %v3298, %v3297
        %v3340 = vpack.c.b16 %v3300, %v3299
        %v3341 = vpack.c.b16 %v3302, %v3301
        %v3342 = vpack.c.b16 %v3304, %v3303
        %v3343 = vpack.c.b16 %v3306, %v3305
        %v3344 = vpack.c.b16 %v3308, %v3307
        %v3345 = vpack.c.b16 %v3310, %v3309
        %v3346 = vpack.c.b16 %v3312, %v3311
        %v3347 = vpack.c.b16 %v3314, %v3313
        %v3348 = vpack.c.b16 %v3316, %v3315
        %v3349 = vpack.c.b16 %v3318, %v3317
        %v3350 = vpack.c.b16 %v3320, %v3319
        %v3351 = vpack.c.b16 %v3322, %v3321
        %v3352 = vpack.c.b16 %v3324, %v3323
        %v3353 = vpack.c.b16 %v3326, %v3325
        %v3354 = vpack.c.b16 %v3328, %v3327
        %v3355 = vpack.c.b16 %v3330, %v3329
        %v3356 = vpack.c.b16 %v3332, %v3331
        %v3357 = vpack.c.b16 %v3334, %v3333
        %v3358 = vpack.c.b16 %v3336, %v3335
        %vm3380 = vcmask 769024
        %v3382 = vsel %vm3380, %v3221, 0
        %vm3384 = vcmask 1046528
        %v3386 = vsel %vm3384, %v3358, 0
        %3388 = vmatpush.bf16.msra.mxu0 %v3344
        %3389 = vmatpush.bf16.msra.mxu0 %v3343
        %3390 = vmatpush.bf16.msra.mxu0 %v3342
        %3391 = vmatpush.bf16.msra.mxu0 %v3341
        %3392 = vmatpush.bf16.msra.mxu0 %v3340
        %3393 = vmatpush.bf16.msra.mxu0 %v3339
        %3394 = vmatpush.bf16.msra.mxu0 %v3338
        %3395 = vmatpush.bf16.msra.mxu0 %v3337
        %3396 = vmatmul.bf16.gmra.mxu0 %v3219
        %v3397 = vpop.f32.mrf.mxu0
        %v3398 = vadd.f32 %v3244, %v3397
        %v3399 = vpop.f32.mrf.mxu0
        %v3400 = vadd.f32 %v3247, %v3399
        %3401 = vdwg.mxu0
        %3402 = vmatpush.bf16.msra.mxu0 %v3352
        %3403 = vmatpush.bf16.msra.mxu0 %v3351
        %3404 = vmatpush.bf16.msra.mxu0 %v3350
        %3405 = vmatpush.bf16.msra.mxu0 %v3349
        %3406 = vmatpush.bf16.msra.mxu0 %v3348
        %3407 = vmatpush.bf16.msra.mxu0 %v3347
        %3408 = vmatpush.bf16.msra.mxu0 %v3346
        %3409 = vmatpush.bf16.msra.mxu0 %v3345
        %3410 = vmatmul.bf16.gmra.mxu0 %v3220
        %v3411 = vpop.f32.mrf.mxu0
        %v3412 = vadd.f32 %v3398, %v3411
        %v3413 = vpop.f32.mrf.mxu0
        %v3414 = vadd.f32 %v3400, %v3413
        %3415 = vdwg.mxu0
        %3416 = vmatpush.bf16.msra.mxu0 0
        %3417 = vmatpush.bf16.msra.mxu0 0
        %3418 = vmatpush.bf16.msra.mxu0 %v3386
        %3419 = vmatpush.bf16.msra.mxu0 %v3357
        %3420 = vmatpush.bf16.msra.mxu0 %v3356
        %3421 = vmatpush.bf16.msra.mxu0 %v3355
        %3422 = vmatpush.bf16.msra.mxu0 %v3354
        %3423 = vmatpush.bf16.msra.mxu0 %v3353
        %3424 = vmatmul.bf16.gmra.mxu0 %v3382
        %v3425 = vpop.f32.mrf.mxu0
        %v3426 = vadd.f32 %v3412, %v3425
        %v3427 = vpop.f32.mrf.mxu0
        %v3428 = vadd.f32 %v3414, %v3427
        %3429 = vdwg.mxu0
        %v3431 = vperm.slane %v989, 0
        %v3433 = vadd.f32 %v3426, %v3431
        %v3434 = vadd.f32 %v3428, %v3431
        %v3435 = vmul.f32 %v3433, 0.5
        %v3436 = vmul.f32 %v3434, 0.5
        %v3437 = vtanh.pop %v3435
        %v3438 = vtanh.pop %v3436
        %v3439 = vadd.f32 %v3437, 1.0
        %v3440 = vadd.f32 %v3438, 1.0
        %v3441 = vmul.f32 %v3439, 0.5
        %v3442 = vmul.f32 %v3440, 0.5
        %v3443 = vtanh.pop %v3433
        %v3444 = vtanh.pop %v3434
        %v3445 = vmul.f32 %v3441, 0.0
        %v3446 = vmul.f32 %v3442, 0.0
        %3449 = vrot.lane.b32.xlu0 %v3443, 96
        %v3450 = vpop.permute.xlu0 %3449
        %3451 = vrot.lane.b32.xlu0 %v3444, 96
        %v3452 = vpop.permute.xlu0 %3451
        %v3455 = vmul.f32 %v3441, %v3450
        %v3456 = vmul.f32 %v3442, %v3452
        %3459 = vrot.lane.b32.xlu0 %v3455, 16
        %v3460 = vpop.permute.xlu0 %3459
        %3461 = vrot.lane.b32.xlu0 %v3456, 16
        %v3462 = vpop.permute.xlu0 %3461
        %v3465 = vadd.f32 %v3445, %v3460
        %v3466 = vadd.f32 %v3446, %v3462
        %v3467 = vtanh.pop %v3465
        %v3468 = vtanh.pop %v3466
        %3471 = vrot.lane.b32.xlu0 %v3467, 32
        %v3472 = vpop.permute.xlu0 %3471
        %3473 = vrot.lane.b32.xlu0 %v3468, 32
        %v3474 = vpop.permute.xlu0 %3473
        %v3477 = vmul.f32 %v3441, %v3472
        %v3478 = vmul.f32 %v3442, %v3474
        %3479 = vmatpush.msra.mxu0 0.0
        %3480 = vmatpush.msra.mxu0 0.0
        %3481 = vmatpush.msra.mxu0 0.0
        %3482 = vmatpush.msra.mxu0 0.0
        %3483 = vmatpush.msra.mxu0 0.0
        %3484 = vmatpush.msra.mxu0 0.0
        %3485 = vmatpush.msra.mxu0 0.0
        %3486 = vmatpush.msra.mxu0 0.0
        %3487 = vmatpush.msra.mxu0 0.0
        %3488 = vmatpush.msra.mxu0 0.0
        %3489 = vmatpush.msra.mxu0 0.0
        %3490 = vmatpush.msra.mxu0 0.0
        %3491 = vmatpush.msra.mxu0 0.0
        %3492 = vmatpush.msra.mxu0 0.0
        %3493 = vmatpush.msra.mxu0 %v993
        %3494 = vmatpush.msra.mxu0 %v992
        %3495 = vmatmul.f32.gmra.mxu0 %v3224
        %v3496 = vpop.f32.mrf.mxu0
        %v3497 = vadd.f32 0.0, %v3496
        %3498 = vmatmul.f32.gmra.mxu0 %v3224
        %v3499 = vpop.f32.mrf.mxu0
        %v3500 = vadd.f32 0.0, %v3499
        %3501 = vdwg.mxu0
        %3504 = vrot.lane.b32.xlu0 %v3477, 80
        %v3505 = vpop.permute.xlu0 %3504
        %3506 = vrot.lane.b32.xlu0 %v3478, 80
        %v3507 = vpop.permute.xlu0 %3506
        %v3508 = vsel %vm3222, %v3505, 0
        %v3510 = vsel %vm3222, %v3507, 0
        %3512 = vmatpush.msra.mxu0 0.0
        %3513 = vmatpush.msra.mxu0 0.0
        %3514 = vmatpush.msra.mxu0 0.0
        %3515 = vmatpush.msra.mxu0 0.0
        %3516 = vmatpush.msra.mxu0 0.0
        %3517 = vmatpush.msra.mxu0 0.0
        %3518 = vmatpush.msra.mxu0 0.0
        %3519 = vmatpush.msra.mxu0 0.0
        %3520 = vmatpush.msra.mxu0 0.0
        %3521 = vmatpush.msra.mxu0 0.0
        %3522 = vmatpush.msra.mxu0 0.0
        %3523 = vmatpush.msra.mxu0 0.0
        %3524 = vmatpush.msra.mxu0 0.0
        %3525 = vmatpush.msra.mxu0 0.0
        %3526 = vmatpush.msra.mxu0 %v991
        %3527 = vmatpush.msra.mxu0 %v990
        %3528 = vmatmul.f32.gmra.mxu0 %v3508
        %v3529 = vpop.f32.mrf.mxu0
        %v3530 = vadd.f32 %v3497, %v3529
        %3531 = vmatmul.f32.gmra.mxu0 %v3510
        %v3532 = vpop.f32.mrf.mxu0
        %v3533 = vadd.f32 %v3500, %v3532
        %3534 = vdwg.mxu0
        %v3536 = vperm.slane %v994, 0
        %v3538 = vadd.f32 %v3530, %v3536
        %v3539 = vadd.f32 %v3533, %v3536
        %v3540 = vmul.f32 %v3538, 0.5
        %v3541 = vmul.f32 %v3539, 0.5
        %v3542 = vtanh.pop %v3540
        %v3543 = vtanh.pop %v3541
        %v3544 = vadd.f32 %v3542, 1.0
        %v3545 = vadd.f32 %v3543, 1.0
        %v3546 = vmul.f32 %v3544, 0.5
        %v3547 = vmul.f32 %v3545, 0.5
        %v3548 = vtanh.pop %v3538
        %v3549 = vtanh.pop %v3539
        %v3550 = vmul.f32 %v3546, 0.0
        %v3551 = vmul.f32 %v3547, 0.0
        %3554 = vrot.lane.b32.xlu0 %v3548, 96
        %v3555 = vpop.permute.xlu0 %3554
        %3556 = vrot.lane.b32.xlu0 %v3549, 96
        %v3557 = vpop.permute.xlu0 %3556
        %v3560 = vmul.f32 %v3546, %v3555
        %v3561 = vmul.f32 %v3547, %v3557
        %3564 = vrot.lane.b32.xlu0 %v3560, 16
        %v3565 = vpop.permute.xlu0 %3564
        %3566 = vrot.lane.b32.xlu0 %v3561, 16
        %v3567 = vpop.permute.xlu0 %3566
        %v3570 = vadd.f32 %v3550, %v3565
        %v3571 = vadd.f32 %v3551, %v3567
        %v3572 = vtanh.pop %v3570
        %v3573 = vtanh.pop %v3571
        %3576 = vrot.lane.b32.xlu0 %v3572, 32
        %v3577 = vpop.permute.xlu0 %3576
        %3578 = vrot.lane.b32.xlu0 %v3573, 32
        %v3579 = vpop.permute.xlu0 %3578
        %v3582 = vmul.f32 %v3546, %v3577
        %v3583 = vmul.f32 %v3547, %v3579
        %3584 = vmatpush.msra.mxu0 0.0
        %3585 = vmatpush.msra.mxu0 0.0
        %3586 = vmatpush.msra.mxu0 0.0
        %3587 = vmatpush.msra.mxu0 0.0
        %3588 = vmatpush.msra.mxu0 0.0
        %3589 = vmatpush.msra.mxu0 0.0
        %3590 = vmatpush.msra.mxu0 0.0
        %3591 = vmatpush.msra.mxu0 0.0
        %3592 = vmatpush.msra.mxu0 0.0
        %3593 = vmatpush.msra.mxu0 0.0
        %3594 = vmatpush.msra.mxu0 0.0
        %3595 = vmatpush.msra.mxu0 0.0
        %3596 = vmatpush.msra.mxu0 0.0
        %3597 = vmatpush.msra.mxu0 0.0
        %3598 = vmatpush.msra.mxu0 %v998
        %3599 = vmatpush.msra.mxu0 %v997
        %3600 = vmatmul.f32.gmra.mxu0 %v3224
        %v3601 = vpop.f32.mrf.mxu0
        %v3602 = vadd.f32 0.0, %v3601
        %3603 = vmatmul.f32.gmra.mxu0 %v3224
        %v3604 = vpop.f32.mrf.mxu0
        %v3605 = vadd.f32 0.0, %v3604
        %3606 = vdwg.mxu0
        %3609 = vrot.lane.b32.xlu0 %v3582, 80
        %v3610 = vpop.permute.xlu0 %3609
        %3611 = vrot.lane.b32.xlu0 %v3583, 80
        %v3612 = vpop.permute.xlu0 %3611
        %v3613 = vsel %vm3222, %v3610, 0
        %v3615 = vsel %vm3222, %v3612, 0
        %3617 = vmatpush.msra.mxu0 0.0
        %3618 = vmatpush.msra.mxu0 0.0
        %3619 = vmatpush.msra.mxu0 0.0
        %3620 = vmatpush.msra.mxu0 0.0
        %3621 = vmatpush.msra.mxu0 0.0
        %3622 = vmatpush.msra.mxu0 0.0
        %3623 = vmatpush.msra.mxu0 0.0
        %3624 = vmatpush.msra.mxu0 0.0
        %3625 = vmatpush.msra.mxu0 0.0
        %3626 = vmatpush.msra.mxu0 0.0
        %3627 = vmatpush.msra.mxu0 0.0
        %3628 = vmatpush.msra.mxu0 0.0
        %3629 = vmatpush.msra.mxu0 0.0
        %3630 = vmatpush.msra.mxu0 0.0
        %3631 = vmatpush.msra.mxu0 %v996
        %3632 = vmatpush.msra.mxu0 %v995
        %3633 = vmatmul.f32.gmra.mxu0 %v3613
        %v3634 = vpop.f32.mrf.mxu0
        %v3635 = vadd.f32 %v3602, %v3634
        %3636 = vmatmul.f32.gmra.mxu0 %v3615
        %v3637 = vpop.f32.mrf.mxu0
        %v3638 = vadd.f32 %v3605, %v3637
        %3639 = vdwg.mxu0
        %v3641 = vperm.slane %v999, 0
        %v3643 = vadd.f32 %v3635, %v3641
        %v3644 = vadd.f32 %v3638, %v3641
        %v3645 = vmul.f32 %v3643, 0.5
        %v3646 = vmul.f32 %v3644, 0.5
        %v3647 = vtanh.pop %v3645
        %v3648 = vtanh.pop %v3646
        %v3649 = vadd.f32 %v3647, 1.0
        %v3650 = vadd.f32 %v3648, 1.0
        %v3651 = vmul.f32 %v3649, 0.5
        %v3652 = vmul.f32 %v3650, 0.5
        %v3653 = vtanh.pop %v3643
        %v3654 = vtanh.pop %v3644
        %v3655 = vmul.f32 %v3651, 0.0
        %v3656 = vmul.f32 %v3652, 0.0
        %3659 = vrot.lane.b32.xlu0 %v3653, 96
        %v3660 = vpop.permute.xlu0 %3659
        %3661 = vrot.lane.b32.xlu0 %v3654, 96
        %v3662 = vpop.permute.xlu0 %3661
        %v3665 = vmul.f32 %v3651, %v3660
        %v3666 = vmul.f32 %v3652, %v3662
        %3669 = vrot.lane.b32.xlu0 %v3665, 16
        %v3670 = vpop.permute.xlu0 %3669
        %3671 = vrot.lane.b32.xlu0 %v3666, 16
        %v3672 = vpop.permute.xlu0 %3671
        %v3675 = vadd.f32 %v3655, %v3670
        %v3676 = vadd.f32 %v3656, %v3672
        %v3677 = vtanh.pop %v3675
        %v3678 = vtanh.pop %v3676
        %3681 = vrot.lane.b32.xlu0 %v3677, 32
        %v3682 = vpop.permute.xlu0 %3681
        %3683 = vrot.lane.b32.xlu0 %v3678, 32
        %v3684 = vpop.permute.xlu0 %3683
        %v3687 = vmul.f32 %v3651, %v3682
        %v3688 = vmul.f32 %v3652, %v3684
        %v3689 = vpack.c.bf16 %v3216, %v3213
        %v3690 = vpack.c.bf16 %v3217, %v3214
        %v3691 = vpack.c.bf16 %v3218, %v3215
        %3692 = vmatpush.msra.mxu0 0.0
        %3693 = vmatpush.msra.mxu0 0.0
        %3694 = vmatpush.msra.mxu0 0.0
        %3695 = vmatpush.msra.mxu0 0.0
        %3696 = vmatpush.msra.mxu0 0.0
        %3697 = vmatpush.msra.mxu0 0.0
        %3698 = vmatpush.msra.mxu0 0.0
        %3699 = vmatpush.msra.mxu0 0.0
        %3700 = vmatpush.msra.mxu0 0.0
        %3701 = vmatpush.msra.mxu0 0.0
        %3702 = vmatpush.msra.mxu0 0.0
        %3703 = vmatpush.msra.mxu0 0.0
        %3704 = vmatpush.msra.mxu0 0.0
        %3705 = vmatpush.msra.mxu0 0.0
        %3706 = vmatpush.msra.mxu0 %v988
        %3707 = vmatpush.msra.mxu0 %v987
        %3708 = vmatmul.f32.gmra.mxu0 %v3508
        %v3709 = vpop.f32.mrf.mxu0
        %v3710 = vadd.f32 0.0, %v3709
        %3711 = vmatmul.f32.gmra.mxu0 %v3510
        %v3712 = vpop.f32.mrf.mxu0
        %v3713 = vadd.f32 0.0, %v3712
        %3714 = vdwg.mxu0
        %v3716 = vsel %vm3380, %v3691, 0
        %3718 = vmatpush.bf16.msra.mxu0 %v3344
        %3719 = vmatpush.bf16.msra.mxu0 %v3343
        %3720 = vmatpush.bf16.msra.mxu0 %v3342
        %3721 = vmatpush.bf16.msra.mxu0 %v3341
        %3722 = vmatpush.bf16.msra.mxu0 %v3340
        %3723 = vmatpush.bf16.msra.mxu0 %v3339
        %3724 = vmatpush.bf16.msra.mxu0 %v3338
        %3725 = vmatpush.bf16.msra.mxu0 %v3337
        %3726 = vmatmul.bf16.gmra.mxu0 %v3689
        %v3727 = vpop.f32.mrf.mxu0
        %v3728 = vadd.f32 %v3710, %v3727
        %v3729 = vpop.f32.mrf.mxu0
        %v3730 = vadd.f32 %v3713, %v3729
        %3731 = vdwg.mxu0
        %3732 = vmatpush.bf16.msra.mxu0 %v3352
        %3733 = vmatpush.bf16.msra.mxu0 %v3351
        %3734 = vmatpush.bf16.msra.mxu0 %v3350
        %3735 = vmatpush.bf16.msra.mxu0 %v3349
        %3736 = vmatpush.bf16.msra.mxu0 %v3348
        %3737 = vmatpush.bf16.msra.mxu0 %v3347
        %3738 = vmatpush.bf16.msra.mxu0 %v3346
        %3739 = vmatpush.bf16.msra.mxu0 %v3345
        %3740 = vmatmul.bf16.gmra.mxu0 %v3690
        %v3741 = vpop.f32.mrf.mxu0
        %v3742 = vadd.f32 %v3728, %v3741
        %v3743 = vpop.f32.mrf.mxu0
        %v3744 = vadd.f32 %v3730, %v3743
        %3745 = vdwg.mxu0
        %3746 = vmatpush.bf16.msra.mxu0 0
        %3747 = vmatpush.bf16.msra.mxu0 0
        %3748 = vmatpush.bf16.msra.mxu0 %v3386
        %3749 = vmatpush.bf16.msra.mxu0 %v3357
        %3750 = vmatpush.bf16.msra.mxu0 %v3356
        %3751 = vmatpush.bf16.msra.mxu0 %v3355
        %3752 = vmatpush.bf16.msra.mxu0 %v3354
        %3753 = vmatpush.bf16.msra.mxu0 %v3353
        %3754 = vmatmul.bf16.gmra.mxu0 %v3716
        %v3755 = vpop.f32.mrf.mxu0
        %v3756 = vadd.f32 %v3742, %v3755
        %v3757 = vpop.f32.mrf.mxu0
        %v3758 = vadd.f32 %v3744, %v3757
        %3759 = vdwg.mxu0
        %v3760 = vadd.f32 %v3756, %v3431
        %v3761 = vadd.f32 %v3758, %v3431
        %v3762 = vmul.f32 %v3760, 0.5
        %v3763 = vmul.f32 %v3761, 0.5
        %v3764 = vtanh.pop %v3762
        %v3765 = vtanh.pop %v3763
        %v3766 = vadd.f32 %v3764, 1.0
        %v3767 = vadd.f32 %v3765, 1.0
        %v3768 = vmul.f32 %v3766, 0.5
        %v3769 = vmul.f32 %v3767, 0.5
        %v3770 = vtanh.pop %v3760
        %v3771 = vtanh.pop %v3761
        %v3772 = vmul.f32 %v3768, %v3465
        %v3773 = vmul.f32 %v3769, %v3466
        %3776 = vrot.lane.b32.xlu0 %v3770, 96
        %v3777 = vpop.permute.xlu0 %3776
        %3778 = vrot.lane.b32.xlu0 %v3771, 96
        %v3779 = vpop.permute.xlu0 %3778
        %v3782 = vmul.f32 %v3768, %v3777
        %v3783 = vmul.f32 %v3769, %v3779
        %3786 = vrot.lane.b32.xlu0 %v3782, 16
        %v3787 = vpop.permute.xlu0 %3786
        %3788 = vrot.lane.b32.xlu0 %v3783, 16
        %v3789 = vpop.permute.xlu0 %3788
        %v3792 = vadd.f32 %v3772, %v3787
        %v3793 = vadd.f32 %v3773, %v3789
        %v3794 = vtanh.pop %v3792
        %v3795 = vtanh.pop %v3793
        %3798 = vrot.lane.b32.xlu0 %v3794, 32
        %v3799 = vpop.permute.xlu0 %3798
        %3800 = vrot.lane.b32.xlu0 %v3795, 32
        %v3801 = vpop.permute.xlu0 %3800
        %v3804 = vmul.f32 %v3768, %v3799
        %v3805 = vmul.f32 %v3769, %v3801
        %3806 = vmatpush.msra.mxu0 0.0
        %3807 = vmatpush.msra.mxu0 0.0
        %3808 = vmatpush.msra.mxu0 0.0
        %3809 = vmatpush.msra.mxu0 0.0
        %3810 = vmatpush.msra.mxu0 0.0
        %3811 = vmatpush.msra.mxu0 0.0
        %3812 = vmatpush.msra.mxu0 0.0
        %3813 = vmatpush.msra.mxu0 0.0
        %3814 = vmatpush.msra.mxu0 0.0
        %3815 = vmatpush.msra.mxu0 0.0
        %3816 = vmatpush.msra.mxu0 0.0
        %3817 = vmatpush.msra.mxu0 0.0
        %3818 = vmatpush.msra.mxu0 0.0
        %3819 = vmatpush.msra.mxu0 0.0
        %3820 = vmatpush.msra.mxu0 %v993
        %3821 = vmatpush.msra.mxu0 %v992
        %3822 = vmatmul.f32.gmra.mxu0 %v3613
        %v3823 = vpop.f32.mrf.mxu0
        %v3824 = vadd.f32 0.0, %v3823
        %3825 = vmatmul.f32.gmra.mxu0 %v3615
        %v3826 = vpop.f32.mrf.mxu0
        %v3827 = vadd.f32 0.0, %v3826
        %3828 = vdwg.mxu0
        %3831 = vrot.lane.b32.xlu0 %v3804, 80
        %v3832 = vpop.permute.xlu0 %3831
        %3833 = vrot.lane.b32.xlu0 %v3805, 80
        %v3834 = vpop.permute.xlu0 %3833
        %v3835 = vsel %vm3222, %v3832, 0
        %v3837 = vsel %vm3222, %v3834, 0
        %3839 = vmatpush.msra.mxu0 0.0
        %3840 = vmatpush.msra.mxu0 0.0
        %3841 = vmatpush.msra.mxu0 0.0
        %3842 = vmatpush.msra.mxu0 0.0
        %3843 = vmatpush.msra.mxu0 0.0
        %3844 = vmatpush.msra.mxu0 0.0
        %3845 = vmatpush.msra.mxu0 0.0
        %3846 = vmatpush.msra.mxu0 0.0
        %3847 = vmatpush.msra.mxu0 0.0
        %3848 = vmatpush.msra.mxu0 0.0
        %3849 = vmatpush.msra.mxu0 0.0
        %3850 = vmatpush.msra.mxu0 0.0
        %3851 = vmatpush.msra.mxu0 0.0
        %3852 = vmatpush.msra.mxu0 0.0
        %3853 = vmatpush.msra.mxu0 %v991
        %3854 = vmatpush.msra.mxu0 %v990
        %3855 = vmatmul.f32.gmra.mxu0 %v3835
        %v3856 = vpop.f32.mrf.mxu0
        %v3857 = vadd.f32 %v3824, %v3856
        %3858 = vmatmul.f32.gmra.mxu0 %v3837
        %v3859 = vpop.f32.mrf.mxu0
        %v3860 = vadd.f32 %v3827, %v3859
        %3861 = vdwg.mxu0
        %v3862 = vadd.f32 %v3857, %v3536
        %v3863 = vadd.f32 %v3860, %v3536
        %v3864 = vmul.f32 %v3862, 0.5
        %v3865 = vmul.f32 %v3863, 0.5
        %v3866 = vtanh.pop %v3864
        %v3867 = vtanh.pop %v3865
        %v3868 = vadd.f32 %v3866, 1.0
        %v3869 = vadd.f32 %v3867, 1.0
        %v3870 = vmul.f32 %v3868, 0.5
        %v3871 = vmul.f32 %v3869, 0.5
        %v3872 = vtanh.pop %v3862
        %v3873 = vtanh.pop %v3863
        %v3874 = vmul.f32 %v3870, %v3570
        %v3875 = vmul.f32 %v3871, %v3571
        %3878 = vrot.lane.b32.xlu0 %v3872, 96
        %v3879 = vpop.permute.xlu0 %3878
        %3880 = vrot.lane.b32.xlu0 %v3873, 96
        %v3881 = vpop.permute.xlu0 %3880
        %v3884 = vmul.f32 %v3870, %v3879
        %v3885 = vmul.f32 %v3871, %v3881
        %3888 = vrot.lane.b32.xlu0 %v3884, 16
        %v3889 = vpop.permute.xlu0 %3888
        %3890 = vrot.lane.b32.xlu0 %v3885, 16
        %v3891 = vpop.permute.xlu0 %3890
        %v3894 = vadd.f32 %v3874, %v3889
        %v3895 = vadd.f32 %v3875, %v3891
        %v3896 = vtanh.pop %v3894
        %v3897 = vtanh.pop %v3895
        %3900 = vrot.lane.b32.xlu0 %v3896, 32
        %v3901 = vpop.permute.xlu0 %3900
        %3902 = vrot.lane.b32.xlu0 %v3897, 32
        %v3903 = vpop.permute.xlu0 %3902
        %v3906 = vmul.f32 %v3870, %v3901
        %v3907 = vmul.f32 %v3871, %v3903
        %3910 = vrot.lane.b32.xlu0 %v3687, 80
        %v3911 = vpop.permute.xlu0 %3910
        %3912 = vrot.lane.b32.xlu0 %v3688, 80
        %v3913 = vpop.permute.xlu0 %3912
        %v3914 = vsel %vm3222, %v3911, 0
        %v3916 = vsel %vm3222, %v3913, 0
        %3918 = vmatpush.msra.mxu0 0.0
        %3919 = vmatpush.msra.mxu0 0.0
        %3920 = vmatpush.msra.mxu0 0.0
        %3921 = vmatpush.msra.mxu0 0.0
        %3922 = vmatpush.msra.mxu0 0.0
        %3923 = vmatpush.msra.mxu0 0.0
        %3924 = vmatpush.msra.mxu0 0.0
        %3925 = vmatpush.msra.mxu0 0.0
        %3926 = vmatpush.msra.mxu0 0.0
        %3927 = vmatpush.msra.mxu0 0.0
        %3928 = vmatpush.msra.mxu0 0.0
        %3929 = vmatpush.msra.mxu0 0.0
        %3930 = vmatpush.msra.mxu0 0.0
        %3931 = vmatpush.msra.mxu0 0.0
        %3932 = vmatpush.msra.mxu0 %v998
        %3933 = vmatpush.msra.mxu0 %v997
        %3934 = vmatmul.f32.gmra.mxu0 %v3914
        %v3935 = vpop.f32.mrf.mxu0
        %v3936 = vadd.f32 0.0, %v3935
        %3937 = vmatmul.f32.gmra.mxu0 %v3916
        %v3938 = vpop.f32.mrf.mxu0
        %v3939 = vadd.f32 0.0, %v3938
        %3940 = vdwg.mxu0
        %3943 = vrot.lane.b32.xlu0 %v3906, 80
        %v3944 = vpop.permute.xlu0 %3943
        %3945 = vrot.lane.b32.xlu0 %v3907, 80
        %v3946 = vpop.permute.xlu0 %3945
        %v3947 = vsel %vm3222, %v3944, 0
        %v3949 = vsel %vm3222, %v3946, 0
        %3951 = vmatpush.msra.mxu0 0.0
        %3952 = vmatpush.msra.mxu0 0.0
        %3953 = vmatpush.msra.mxu0 0.0
        %3954 = vmatpush.msra.mxu0 0.0
        %3955 = vmatpush.msra.mxu0 0.0
        %3956 = vmatpush.msra.mxu0 0.0
        %3957 = vmatpush.msra.mxu0 0.0
        %3958 = vmatpush.msra.mxu0 0.0
        %3959 = vmatpush.msra.mxu0 0.0
        %3960 = vmatpush.msra.mxu0 0.0
        %3961 = vmatpush.msra.mxu0 0.0
        %3962 = vmatpush.msra.mxu0 0.0
        %3963 = vmatpush.msra.mxu0 0.0
        %3964 = vmatpush.msra.mxu0 0.0
        %3965 = vmatpush.msra.mxu0 %v996
        %3966 = vmatpush.msra.mxu0 %v995
        %3967 = vmatmul.f32.gmra.mxu0 %v3947
        %v3968 = vpop.f32.mrf.mxu0
        %v3969 = vadd.f32 %v3936, %v3968
        %3970 = vmatmul.f32.gmra.mxu0 %v3949
        %v3971 = vpop.f32.mrf.mxu0
        %v3972 = vadd.f32 %v3939, %v3971
        %3973 = vdwg.mxu0
        %v3974 = vadd.f32 %v3969, %v3641
        %v3975 = vadd.f32 %v3972, %v3641
        %v3976 = vmul.f32 %v3974, 0.5
        %v3977 = vmul.f32 %v3975, 0.5
        %v3978 = vtanh.pop %v3976
        %v3979 = vtanh.pop %v3977
        %v3980 = vadd.f32 %v3978, 1.0
        %v3981 = vadd.f32 %v3979, 1.0
        %v3982 = vmul.f32 %v3980, 0.5
        %v3983 = vmul.f32 %v3981, 0.5
        %v3984 = vtanh.pop %v3974
        %v3985 = vtanh.pop %v3975
        %v3986 = vmul.f32 %v3982, %v3675
        %v3987 = vmul.f32 %v3983, %v3676
        %3990 = vrot.lane.b32.xlu0 %v3984, 96
        %v3991 = vpop.permute.xlu0 %3990
        %3992 = vrot.lane.b32.xlu0 %v3985, 96
        %v3993 = vpop.permute.xlu0 %3992
        %v3996 = vmul.f32 %v3982, %v3991
        %v3997 = vmul.f32 %v3983, %v3993
        %4000 = vrot.lane.b32.xlu0 %v3996, 16
        %v4001 = vpop.permute.xlu0 %4000
        %4002 = vrot.lane.b32.xlu0 %v3997, 16
        %v4003 = vpop.permute.xlu0 %4002
        %v4006 = vadd.f32 %v3986, %v4001
        %v4007 = vadd.f32 %v3987, %v4003
        %v4008 = vtanh.pop %v4006
        %v4009 = vtanh.pop %v4007
        %4012 = vrot.lane.b32.xlu0 %v4008, 32
        %v4013 = vpop.permute.xlu0 %4012
        %4014 = vrot.lane.b32.xlu0 %v4009, 32
        %v4015 = vpop.permute.xlu0 %4014
        %v4018 = vmul.f32 %v3982, %v4013
        %v4019 = vmul.f32 %v3983, %v4015
        %v4020 = vrot.slane %v3688, 7
        %v4023 = vrot.slane %v4019, 6
        %vm4025 = vcmask 1040384
        %v4026 = vsel %vm4025, %v4020, %v4023
        %v4028 = vperm.slane %v1002, 0
        %4031 = vrot.lane.b32.xlu0 %v4026, 80
        %v4032 = vpop.permute.xlu0 %4031
        %v4033 = vsel %vm3222, %v4032, 0
        %4035 = vmatpush.msra.mxu0 0.0
        %4036 = vmatpush.msra.mxu0 0.0
        %4037 = vmatpush.msra.mxu0 0.0
        %4038 = vmatpush.msra.mxu0 0.0
        %4039 = vmatpush.msra.mxu0 0.0
        %4040 = vmatpush.msra.mxu0 0.0
        %4041 = vmatpush.msra.mxu0 0.0
        %4042 = vmatpush.msra.mxu0 0.0
        %4043 = vmatpush.msra.mxu0 0.0
        %4044 = vmatpush.msra.mxu0 0.0
        %4045 = vmatpush.msra.mxu0 0.0
        %4046 = vmatpush.msra.mxu0 0.0
        %4047 = vmatpush.msra.mxu0 0.0
        %4048 = vmatpush.msra.mxu0 0.0
        %4049 = vmatpush.msra.mxu0 %v1001
        %4050 = vmatpush.msra.mxu0 %v1000
        %4051 = vmatmul.f32.gmra.mxu0 %v4033
        %v4052 = vpop.f32.mrf.mxu0
        %v4053 = vadd.f32 %v4028, %v4052
        %4054 = vdwg.mxu0
        %v4055 = vmax.f32 %v4053, 0.0
        %v4057 = vperm.slane %v1003, 0
        %v4059 = vmul.f32 %v4055, %v4057
        %vm4060 = vcmask 254976
        %v4061 = vsel %vm4060, %v4059, 0.0
        %4062 = vadd.xlane.f32.xlu0 %v4061
        %v4063 = vpop.xlane.xlu0 %4062
        %v4065 = vperm.slane %v1004, 0
        %v4067 = vadd.f32 %v4063, %v4065
        %vm4068 = vcmask 1024
        %4069 = vst.msk [vmem:[%s929] sm:$0x3] %vm4068, %v4067
        %4072 = vst.msk [vmem:[%s846] sm:$0xff] %vm3222, %v3832
        %4073 = vst.msk [vmem:[%s846 + $0x8] sm:$0xff] %vm3222, %v3834
        %4076 = vrot.lane.b32.xlu0 %v3792, 112
        %v4077 = vpop.permute.xlu0 %4076
        %4078 = vrot.lane.b32.xlu0 %v3793, 112
        %v4079 = vpop.permute.xlu0 %4078
        %4082 = vst.msk [vmem:[%s853] sm:$0xff] %vm3222, %v4077
        %4083 = vst.msk [vmem:[%s853 + $0x8] sm:$0xff] %vm3222, %v4079
        %s4086 = scalar_lea.vmem %s846, 16 [#allocation2]
        %4087 = vst.msk [vmem:[%s4086] sm:$0xff] %vm3222, %v3944
        %4088 = vst.msk [vmem:[%s4086 + $0x8] sm:$0xff] %vm3222, %v3946
        %4091 = vrot.lane.b32.xlu0 %v3894, 112
        %v4092 = vpop.permute.xlu0 %4091
        %4093 = vrot.lane.b32.xlu0 %v3895, 112
        %v4094 = vpop.permute.xlu0 %4093
        %s4097 = scalar_lea.vmem %s853, 16 [#allocation4]
        %4098 = vst.msk [vmem:[%s4097] sm:$0xff] %vm3222, %v4092
        %4099 = vst.msk [vmem:[%s4097 + $0x8] sm:$0xff] %vm3222, %v4094
        %4101 = vrot.lane.b32.xlu0 %v4018, 80
        %v4102 = vpop.permute.xlu0 %4101
        %4103 = vrot.lane.b32.xlu0 %v4019, 80
        %v4104 = vpop.permute.xlu0 %4103
        %s4107 = scalar_lea.vmem %s846, 32 [#allocation2]
        %4108 = vst.msk [vmem:[%s4107] sm:$0xff] %vm3222, %v4102
        %4109 = vst.msk [vmem:[%s4107 + $0x8] sm:$0xff] %vm3222, %v4104
        %4112 = vrot.lane.b32.xlu0 %v4006, 112
        %v4113 = vpop.permute.xlu0 %4112
        %4114 = vrot.lane.b32.xlu0 %v4007, 112
        %v4115 = vpop.permute.xlu0 %4114
        %s4118 = scalar_lea.vmem %s853, 32 [#allocation4]
        %4119 = vst.msk [vmem:[%s4118] sm:$0xff] %vm3222, %v4113
        %4120 = vst.msk [vmem:[%s4118 + $0x8] sm:$0xff] %vm3222, %v4115
        %p4121 = scmp.lt.s32.totalorder %s38, 2
        %s4122 = scalar_select %p4121, %s38, 2
        %s4123 = smul.addr %s4122, 2
        %s4124 = scalar_lea.vmem %s18, %s4123
        %s4125 = sand.u32 %s535, 1
        %s4126 = scalar_lea.sflag [#allocation3], %s4125
        %s4127 = sand.u32 %s535, 1
        %s4128 = smul.addr %s4127, 48
        %s4129 = scalar_lea.vmem [#allocation2], %s4128
        %s4130 = sand.u32 %s561, 1
        %s4131 = scalar_lea.sflag [#allocation5], %s4130
        %s4132 = sand.u32 %s561, 1
        %s4133 = smul.addr %s4132, 48
        %s4134 = scalar_lea.vmem [#allocation4], %s4133
        // Predicated region
        $region93: #{super_model_forward.1} parent=91 // pred_check
          %p4135 = pneg %p519
        $region94: #{super_model_forward.1} parent=91 // pred_check_branch
          %4137 = sbr.rel (%p4135) target = $region96
        $region95: #{super_model_forward.1} parent=91 // pred_region
          _
        $region96: #{super_model_forward.1} parent=91 // pred_fallthru
          _
        // Predicated region
        $region97: #{super_model_forward.1} parent=91 // pred_check
          %p4138 = pneg %p545
        $region98: #{super_model_forward.1} parent=91 // pred_check_branch
          %4140 = sbr.rel (%p4138) target = $region100
        $region99: #{super_model_forward.1} parent=91 // pred_region
          %4142 = vsyncadd %s4126, 0
          %s4143 = smul.addr %s38, 6
          %s4144 = smul.addr %s4143, 8
          %s4145 = scalar_lea.hbm %s19, %s4144
          %s4146 = sshll.u32 %s4129, 4
          %s4147 = int_to_ptr.vmem [resolvable:$true] %s4146
          %s4148 = sshll.u32 %s4145, 4
          %s4149 = int_to_ptr.hbm [resolvable:$true] %s4148
          %4154 = dma.vmem_to_hbm [thread:$0]  %s4147, 768, %s4149, %s4126, 128, 128, 8
        $region100: #{super_model_forward.1} parent=91 // pred_fallthru
          _
        // Predicated region
        $region101: #{super_model_forward.1} parent=91 // pred_check
          %p4155 = pneg %p571
        $region102: #{super_model_forward.1} parent=91 // pred_check_branch
          %4157 = sbr.rel (%p4155) target = $region104
        $region103: #{super_model_forward.1} parent=91 // pred_region
          %4159 = vsyncadd %s4131, 0
          %s4160 = smul.addr %s38, 6
          %s4161 = smul.addr %s4160, 8
          %s4162 = scalar_lea.hbm %s20, %s4161
          %s4163 = sshll.u32 %s4134, 4
          %s4164 = int_to_ptr.vmem [resolvable:$true] %s4163
          %s4165 = sshll.u32 %s4162, 4
          %s4166 = int_to_ptr.hbm [resolvable:$true] %s4165
          %4171 = dma.vmem_to_hbm [thread:$0]  %s4164, 768, %s4166, %s4131, 128, 128, 8
        $region104: #{super_model_forward.1} parent=91 // pred_fallthru
          _
      $region92: #{super_model_forward.1} parent=5 // pred_fallthru
        _
      %p4172 = scmp.le.s32.totalorder 2, %s33
      // Predicated region
      $region105: #{super_model_forward.1} parent=5 // pred_check
        %p4173 = pneg %p4172
      $region106: #{super_model_forward.1} parent=5 // pred_check_branch
        %4175 = sbr.rel (%p4173) target = $region108
      $region107: #{super_model_forward.1} parent=5 // pred_region
        %s4176 = ssub.s32 %s33, 2
        // Predicated region
        $region109: #{super_model_forward.1} parent=107 // pred_check
          %p4177 = pneg %p525
        $region110: #{super_model_forward.1} parent=107 // pred_check_branch
          %4179 = sbr.rel (%p4177) target = $region112
        $region111: #{super_model_forward.1} parent=107 // pred_region
          %p4180 = scmp.lt.s32.totalorder %s39, 2
          %s4181 = scalar_select %p4180, %s39, 2
          %s4182 = smul.addr %s4181, 2
          %s4183 = scalar_lea.vmem %s18, %s4182
        $region112: #{super_model_forward.1} parent=107 // pred_fallthru
          _
        // Predicated region
        $region113: #{super_model_forward.1} parent=107 // pred_check
          %p4184 = pneg %p551
        $region114: #{super_model_forward.1} parent=107 // pred_check_branch
          %4186 = sbr.rel (%p4184) target = $region116
        $region115: #{super_model_forward.1} parent=107 // pred_region
          %s4187 = sand.u32 %s536, 1
          %s4188 = scalar_lea.sflag [#allocation3], %s4187
          %s4189 = sand.u32 %s536, 1
          %s4190 = smul.addr %s4189, 48
          %s4191 = scalar_lea.vmem [#allocation2], %s4190
          %4193 = dma.done %s4188, 768
        $region116: #{super_model_forward.1} parent=107 // pred_fallthru
          _
        // Predicated region
        $region117: #{super_model_forward.1} parent=107 // pred_check
          %p4194 = pneg %p577
        $region118: #{super_model_forward.1} parent=107 // pred_check_branch
          %4196 = sbr.rel (%p4194) target = $region120
        $region119: #{super_model_forward.1} parent=107 // pred_region
          %s4197 = sand.u32 %s562, 1
          %s4198 = scalar_lea.sflag [#allocation5], %s4197
          %s4199 = sand.u32 %s562, 1
          %s4200 = smul.addr %s4199, 48
          %s4201 = scalar_lea.vmem [#allocation4], %s4200
          %4203 = dma.done %s4198, 768
        $region120: #{super_model_forward.1} parent=107 // pred_fallthru
          _
      $region108: #{super_model_forward.1} parent=5 // pred_fallthru
        _
    $region6: #{super_model_forward.1} parent=1 // loop_footer
      %s37 = sadd.s32 1, %s33
    $region7: #{super_model_forward.1} parent=1 // loop_footer_branch
      %32 = sbr.rel target = $region3
    $region8: #{super_model_forward.1} parent=1 // loop_exit
      _
    %4204 = vsyncpa [#allocation3], 1
    %s4205 = scalar_lea.sflag [#allocation3], 1
    %4206 = vsyncpa %s4205, 1
    %4207 = vsyncpa [#allocation5], 1
    %s4208 = scalar_lea.sflag [#allocation5], 1
    %4209 = vsyncpa %s4208, 1

</llo_original>
